<compile_context>
chip_gen: v7x
topology: tpu7x:2x2x1
jax: 0.10.0
libtpu: 0.0.40
codegen_flags: <defaults>
</compile_context>

<pallas_src>
import jax
import jax.numpy as jnp
from jax.experimental import pallas as pl
from jax.experimental.pallas import tpu as pltpu

# ---------------- configuration (small shapes, consistent with the module) ----
B = 2              # batch size
IN_DIM = 32        # backbone feature channels   (1280 in the reference)
HIDDEN = 32        # hidden_dim                  (256 in the reference)
A = 9              # num_anchors
NUM_CLASSES = 8    # num_classes                 (20 in the reference)
HF = WF = 8        # feature map H', W'
M = 16             # number of positive (= negative) anchors
IMG_H = IMG_W = 32
LEAKY_SLOPE = 0.01         # nn.LeakyReLU default
W_CONF, W_REG = 1.0, 5.0
ROI_H = ROI_W = 2

BHW = B * HF * WF          # 128: conv-head matmul rows (batch folded in)
HPAD = 128                 # lane-dense padded hidden width (>= HIDDEN)
NPAD = 128                 # lane-dense padded conv-head output width (>= A*6)
CPAD = 128                 # lane-dense padded class-logit width (>= NUM_CLASSES)


# ================================ Pallas kernel ===============================

def _fused_detector_kernel(x2c_ref, feats_ref, w1_ref, b1_ref, w2_ref, b2_ref,
                           row_ref, colb_ref, base_ref, cls_ref,
                           gtoff_ref, anc_ref,
                           fc1w_ref, fc1b_ref, fc2w_ref, fc2b_ref,
                           loss_ref):
    """Whole detector head in one kernel -> scalar total loss.

    x2c_ref  : (BHW, 9*IN_DIM) bf16  im2col activations (batch folded in rows)
    feats_ref: (BHW, IN_DIM)   bf16  flat NHWC backbone features
    w1/b1    : (9*IN_DIM, HPAD) bf16 / (1, HPAD) f32   conv1 (padded hidden)
    w2/b2    : (HPAD, NPAD) bf16 / (1, NPAD) f32       conv2 (padded A*6)
    row_ref  : (2M, 1) i32  conv-output row (b*H*W + h*W + w) per pos/neg anchor
    colb_ref : (2M, 1) i32  per-anchor column base a*6
    base_ref : (M, 1)  i32  per-pos-anchor flat batch offset b*H*W
    cls_ref  : (M, 1)  i32  GT class per positive anchor
    gtoff_ref: (M, 4)  f32  GT offsets
    anc_ref  : (M, 4)  f32  positive anchor coords (x1,y1,x2,y2)
    fc1/fc2  : padded cls_layer weights (bf16) / biases (f32)
    loss_ref : (1, 1)  f32  SMEM scalar output
    """
    # ---- 1) ProposalModule.pred_layer: im2col matmul -> LeakyReLU -> 1x1 -----
    # TODO(synk): nn.Dropout treated as identity (deterministic forward).
    x = x2c_ref[...]
    h = jnp.dot(x, w1_ref[...], preferred_element_type=jnp.float32) + b1_ref[...]
    h = jnp.maximum(h, LEAKY_SLOPE * h)                       # LeakyReLU(0.01)
    conv_out = jnp.dot(h.astype(jnp.bfloat16), w2_ref[...],
                       preferred_element_type=jnp.float32) + b2_ref[...]   # (BHW, NPAD)

    # ---- 2) gather the 2M anchor rows: exact 0/1 selection matmul ------------
    rows = row_ref[...]                                                    # (2M, 1)
    sub = jax.lax.broadcasted_iota(jnp.int32, (2 * M, BHW), 1)
    sel = (sub == rows).astype(jnp.float32)
    gath = jnp.dot(sel, conv_out, preferred_element_type=jnp.float32)      # (2M, NPAD)

    # ---- 3) per-anchor 6-column select (a*6 + d) via masked lane reductions --
    lane = jax.lax.broadcasted_iota(jnp.int32, (2 * M, NPAD), 1)
    colb = colb_ref[...]
    comp = [jnp.sum(jnp.where(lane == colb + d, gath, 0.0), axis=-1, keepdims=True)
            for d in range(6)]                                             # 6 x (2M, 1)

    # ---- 4) ConfScoreRegression: BCE-with-logits, targets built in-kernel ----
    ridx = jax.lax.broadcasted_iota(jnp.int32, (2 * M, 1), 0)
    t0 = (ridx < M).astype(jnp.float32)        # [1,0] for pos rows
    t1 = 1.0 - t0                              # [0,1] for neg rows

    def bce(xl, z):
        return jnp.maximum(xl, 0.0) - xl * z + jnp.log1p(jnp.exp(-jnp.abs(xl)))

    conf_loss = (jnp.sum(bce(comp[0], t0)) + jnp.sum(bce(comp[1], t1))) / float(B)

    # ---- 5) BboxRegression: SmoothL1 (beta=1), sum / B -----------------------
    reg_sum = 0.0
    for d in range(4):
        dd = comp[2 + d][:M] - gtoff_ref[:, d:d + 1]
        ad = jnp.abs(dd)
        reg_sum = reg_sum + jnp.sum(jnp.where(ad < 1.0, 0.5 * dd * dd, ad - 0.5))
    reg_loss = reg_sum / float(B)

    # ---- 6) GenerateProposal (standard Faster R-CNN box transform) -----------
    # TODO(synk): GenerateProposal is not defined in the reference snippet;
    # standard transform assumed (dx*w, dy*h, exp(dw), exp(dh)).
    tx, ty, tw, th = comp[2][:M], comp[3][:M], comp[4][:M], comp[5][:M]    # (M,1)
    ax1, ay1 = anc_ref[:, 0:1], anc_ref[:, 1:2]
    ax2, ay2 = anc_ref[:, 2:3], anc_ref[:, 3:4]
    acx, acy = (ax1 + ax2) * 0.5, (ay1 + ay2) * 0.5
    aw, ah = ax2 - ax1, ay2 - ay1
    ncx, ncy = acx + tx * aw, acy + ty * ah
    nw, nh = aw * jnp.exp(tw), ah * jnp.exp(th)
    px1, py1 = ncx - nw * 0.5, ncy - nh * 0.5
    px2, py2 = ncx + nw * 0.5, ncy + nh * 0.5

    # ---- 7) RoI align (2x2 bins) + mean pool as one bilinear-weight matmul ---
    # TODO(synk): torchvision.ops.roi_align approximated with sampling_ratio=1
    # (one bilinear sample per bin center, aligned=False, spatial_scale=1).
    base = base_ref[...]                                                   # (M,1)
    lane_bhw = jax.lax.broadcasted_iota(jnp.int32, (M, BHW), 1)
    binw = (px2 - px1) * (1.0 / ROI_W)
    binh = (py2 - py1) * (1.0 / ROI_H)
    inv_bins = 1.0 / float(ROI_H * ROI_W)
    wmat = jnp.zeros((M, BHW), jnp.float32)
    for sy in range(ROI_H):
        yc = jnp.clip(py1 + (sy + 0.5) * binh, 0.0, HF - 1.0)
        y0f = jnp.floor(yc)
        y0 = y0f.astype(jnp.int32)
        y1 = jnp.minimum(y0 + 1, HF - 1)
        ly = yc - y0f
        for sx in range(ROI_W):
            xc = jnp.clip(px1 + (sx + 0.5) * binw, 0.0, WF - 1.0)
            x0f = jnp.floor(xc)
            x0 = x0f.astype(jnp.int32)
            x1 = jnp.minimum(x0 + 1, WF - 1)
            lx = xc - x0f
            for yi, wy in ((y0, 1.0 - ly), (y1, ly)):
                for xi, wx in ((x0, 1.0 - lx), (x1, lx)):
                    idx = base + yi * WF + xi                              # (M,1)
                    wgt = wy * wx * inv_bins                               # (M,1)
                    wmat = wmat + jnp.where(lane_bhw == idx, wgt, 0.0)
    roi_pooled = jnp.dot(wmat.astype(jnp.bfloat16), feats_ref[...],
                         preferred_element_type=jnp.float32)               # (M, IN_DIM)

    # ---- 8) cls_layer: Linear -> (Dropout=identity) -> ReLU -> Linear --------
    # TODO(synk): nn.Dropout treated as identity (deterministic forward).
    h2 = jnp.dot(roi_pooled.astype(jnp.bfloat16), fc1w_ref[...],
                 preferred_element_type=jnp.float32) + fc1b_ref[...]
    h2 = jnp.maximum(h2, 0.0)
    logits = jnp.dot(h2.astype(jnp.bfloat16), fc2w_ref[...],
                     preferred_element_type=jnp.float32) + fc2b_ref[...]    # (M, CPAD)

    # ---- 9) cross_entropy (mean over RoIs) / B (matches reference) -----------
    cl = jax.lax.broadcasted_iota(jnp.int32, (M, CPAD), 1)
    logits = jnp.where(cl < NUM_CLASSES, logits, -1e30)    # mask padded lanes
    mx = jnp.max(logits, axis=-1, keepdims=True)
    lse = jnp.log(jnp.sum(jnp.exp(logits - mx), axis=-1, keepdims=True)) + mx
    true_logit = jnp.sum(jnp.where(cl == cls_ref[...], logits, 0.0),
                         axis=-1, keepdims=True)
    cls_loss = jnp.sum(lse - true_logit) / float(M) / float(B)

    loss_ref[0, 0] = W_CONF * conf_loss + W_REG * reg_loss + cls_loss


# ================================ JAX wrapper =================================

def init_params(key):
    ks = jax.random.split(key, 7)
    s = 0.1
    return {
        "backbone_proj": jax.random.normal(ks[0], (3, IN_DIM), jnp.float32) * s,
        "conv1_w": jax.random.normal(ks[1], (3, 3, IN_DIM, HIDDEN), jnp.float32) * s,
        "conv1_b": jax.random.normal(ks[2], (1, HIDDEN), jnp.float32) * s,
        "conv2_w": jax.random.normal(ks[3], (HIDDEN, A * 6), jnp.float32) * s,
        "conv2_b": jax.random.normal(ks[4], (1, A * 6), jnp.float32) * s,
        "fc1_w": jax.random.normal(ks[5], (IN_DIM, HIDDEN), jnp.float32) * s,
        "fc1_b": jnp.zeros((1, HIDDEN), jnp.float32),
        "fc2_w": jax.random.normal(ks[6], (HIDDEN, NUM_CLASSES), jnp.float32) * s,
        "fc2_b": jnp.zeros((1, NUM_CLASSES), jnp.float32),
    }


def two_stage_detector_forward(params, images, bboxes, anchor_match):
    """Training-time forward: returns the total scalar loss (rpn_loss + cls_loss)."""
    del bboxes  # GT anchor matching is synthesized in `anchor_match` (see TODO below)

    # ---- FeatureExtractor stand-in ------------------------------------------
    # TODO(synk): FeatureExtractor (torchvision MobileNetV2 backbone) is not
    # defined in the reference; stand-in = average pool + linear channel proj.
    pool = IMG_H // HF
    x = images.reshape(B, 3, HF, pool, WF, pool).mean(axis=(3, 5))          # (B,3,HF,WF)
    feats = jnp.einsum("bchw,cd->bhwd", x, params["backbone_proj"])         # (B,HF,WF,IN_DIM)

    # ---- im2col in the wrapper, bf16 BEFORE the 9x-duplication ---------------
    # TODO(synk): at reference sizes (IN_DIM=1280, larger H'xW') build the 3x3
    # in-kernel (halo BlockSpec / 9 accumulating matmuls), add a parallel
    # row-tile grid axis sized for 64 MiB VMEM (v7x) with weights VMEM-resident
    # via constant index_maps + explicit vmem_limit_bytes.
    feats_bf = feats.astype(jnp.bfloat16)
    xp = jnp.pad(feats_bf, ((0, 0), (1, 1), (1, 1), (0, 0)))
    cols = [xp[:, dy:dy + HF, dx:dx + WF, :] for dy in range(3) for dx in range(3)]
    x2c = jnp.concatenate(cols, axis=-1).reshape(BHW, 9 * IN_DIM)           # bf16
    feats_flat = feats_bf.reshape(BHW, IN_DIM)                              # bf16

    # ---- lane-dense padded weights (zero-pad HIDDEN / A*6 / NUM_CLASSES) -----
    f32 = jnp.float32
    w1p = jnp.zeros((9 * IN_DIM, HPAD), f32).at[:, :HIDDEN].set(
        params["conv1_w"].reshape(9 * IN_DIM, HIDDEN)).astype(jnp.bfloat16)
    b1p = jnp.zeros((1, HPAD), f32).at[:, :HIDDEN].set(params["conv1_b"])
    w2p = jnp.zeros((HPAD, NPAD), f32).at[:HIDDEN, :A * 6].set(
        params["conv2_w"]).astype(jnp.bfloat16)
    b2p = jnp.zeros((1, NPAD), f32).at[:, :A * 6].set(params["conv2_b"])
    fc1wp = jnp.zeros((IN_DIM, HPAD), f32).at[:, :HIDDEN].set(
        params["fc1_w"]).astype(jnp.bfloat16)
    fc1bp = jnp.zeros((1, HPAD), f32).at[:, :HIDDEN].set(params["fc1_b"])
    fc2wp = jnp.zeros((HPAD, CPAD), f32).at[:HIDDEN, :NUM_CLASSES].set(
        params["fc2_w"]).astype(jnp.bfloat16)
    fc2bp = jnp.zeros((1, CPAD), f32).at[:, :NUM_CLASSES].set(params["fc2_b"])

    # ---- per-anchor addresses in the conv-output layout (matches PyTorch's
    #      (B, A, 6, H, W).permute(0,1,3,4,2).view(-1,6) flat indexing) --------
    HW = HF * WF
    anc_per_img = A * HW
    all_idx = jnp.concatenate([anchor_match["pos_anchor_idx"],
                               anchor_match["neg_anchor_idx"]]).astype(jnp.int32)  # (2M,)
    b_i = all_idx // anc_per_img
    a_i = (all_idx % anc_per_img) // HW
    hw_i = all_idx % HW
    row_idx = (b_i * HW + hw_i).reshape(2 * M, 1)
    col_base = (a_i * 6).reshape(2 * M, 1)
    roi_base = (b_i[:M] * HW).reshape(M, 1)
    gt_cls = anchor_match["gt_class"].astype(jnp.int32).reshape(M, 1)

    # ---- single fused Pallas kernel -> scalar loss ----------------------------
    out = pl.pallas_call(
        _fused_detector_kernel,
        out_shape=jax.ShapeDtypeStruct((1, 1), jnp.float32),
        out_specs=pl.BlockSpec(memory_space=pltpu.MemorySpace.SMEM),
    )(x2c, feats_flat, w1p, b1p, w2p, b2p,
      row_idx, col_base, roi_base, gt_cls,
      anchor_match["gt_offsets"], anchor_match["pos_anchor_coord"],
      fc1wp, fc1bp, fc2wp, fc2bp)
    return out[0, 0]


# ================================ main ========================================

if __name__ == "__main__":
    key = jax.random.PRNGKey(0)
    (k_param, k_img, k_box, k_cls, k_pos, k_neg, k_ctr, k_wh, k_off) = jax.random.split(key, 9)

    params = init_params(k_param)

    # Inputs consistent with the module (small): images (B,3,H,W), bboxes (B,N,5)
    images = jax.random.normal(k_img, (B, 3, IMG_H, IMG_W), jnp.float32)
    box_xy = jax.random.uniform(k_box, (B, 2, 4), minval=0.0, maxval=float(IMG_W))
    box_cls = jax.random.randint(k_cls, (B, 2, 1), 0, NUM_CLASSES).astype(jnp.float32)
    bboxes = jnp.concatenate([box_xy, box_cls], axis=-1)                    # (B, 2, 5)

    # TODO(synk): GenerateGrid / GenerateAnchor / IoU / ReferenceOnActivatedAnchors
    # are not defined in the reference; anchor matching outputs are synthesized.
    anc_per_img = A * HF * WF
    total_anchors = B * anc_per_img
    pos_idx = jax.random.randint(k_pos, (M,), 0, total_anchors, dtype=jnp.int32)
    neg_idx = jax.random.randint(k_neg, (M,), 0, total_anchors, dtype=jnp.int32)
    ctr = jax.random.uniform(k_ctr, (M, 2), minval=2.0, maxval=6.0)
    wh = jax.random.uniform(k_wh, (M, 2), minval=1.0, maxval=3.0)
    pos_coord = jnp.concatenate([ctr - wh / 2, ctr + wh / 2], axis=-1)      # (M, 4) xyxy
    gt_offsets = jax.random.normal(k_off, (M, 4), jnp.float32) * 0.1
    gt_class = bboxes[pos_idx // anc_per_img, 0, 4].astype(jnp.int32)       # (M,)

    anchor_match = {
        "pos_anchor_idx": pos_idx,
        "neg_anchor_idx": neg_idx,
        "pos_anchor_coord": pos_coord,
        "gt_offsets": gt_offsets,
        "gt_class": gt_class,
    }

    total_loss = jax.jit(two_stage_detector_forward)(params, images, bboxes, anchor_match)
    total_loss = jax.block_until_ready(total_loss)

    assert total_loss.shape == ()
    assert bool(jnp.isfinite(total_loss))
    print("KERNEL_OK")
</pallas_src>

<mosaic_0001>
module attributes {stable_mosaic.version = 11 : i64} {
  func.func @_fused_detector_kernel(%arg0: memref<128x288xbf16, #tpu.memory_space<vmem>>, %arg1: memref<128x32xbf16, #tpu.memory_space<vmem>>, %arg2: memref<288x128xbf16, #tpu.memory_space<vmem>>, %arg3: memref<1x128xf32, #tpu.memory_space<vmem>>, %arg4: memref<128x128xbf16, #tpu.memory_space<vmem>>, %arg5: memref<1x128xf32, #tpu.memory_space<vmem>>, %arg6: memref<32x1xi32, #tpu.memory_space<vmem>>, %arg7: memref<32x1xi32, #tpu.memory_space<vmem>>, %arg8: memref<16x1xi32, #tpu.memory_space<vmem>>, %arg9: memref<16x1xi32, #tpu.memory_space<vmem>>, %arg10: memref<16x4xf32, #tpu.memory_space<vmem>>, %arg11: memref<16x4xf32, #tpu.memory_space<vmem>>, %arg12: memref<32x128xbf16, #tpu.memory_space<vmem>>, %arg13: memref<1x128xf32, #tpu.memory_space<vmem>>, %arg14: memref<128x128xbf16, #tpu.memory_space<vmem>>, %arg15: memref<1x128xf32, #tpu.memory_space<vmem>>, %arg16: memref<1x1xf32, #tpu.memory_space<smem>>) attributes {dimension_semantics = [], scalar_prefetch = 0 : i64, scratch_operands = 0 : i64, tpu.core_type = #tpu.core_type<tc>} {
    %c0 = arith.constant 0 : index
    %c0_0 = arith.constant 0 : index
    %0 = vector.load %arg0[%c0, %c0_0] : memref<128x288xbf16, #tpu.memory_space<vmem>>, vector<128x288xbf16>
    %c0_1 = arith.constant 0 : index
    %c0_2 = arith.constant 0 : index
    %1 = vector.load %arg2[%c0_1, %c0_2] : memref<288x128xbf16, #tpu.memory_space<vmem>>, vector<288x128xbf16>
    %cst = arith.constant dense<0.000000e+00> : vector<128x128xf32>
    %2 = tpu.matmul %0, %1, %cst {dimension_numbers = #tpu.dot_dimension_numbers<[1], [0], [0], [1], [0, 0, 1, 1], [], []>} : vector<128x288xbf16>, vector<288x128xbf16>, vector<128x128xf32> -> vector<128x128xf32>
    %c0_3 = arith.constant 0 : index
    %c0_4 = arith.constant 0 : index
    %3 = vector.load %arg3[%c0_3, %c0_4] : memref<1x128xf32, #tpu.memory_space<vmem>>, vector<1x128xf32>
    %4 = vector.broadcast %3 : vector<1x128xf32> to vector<128x128xf32>
    %5 = arith.addf %2, %4 : vector<128x128xf32>
    %cst_5 = arith.constant 0.00999999977 : f32
    %6 = vector.broadcast %cst_5 : f32 to vector<128x128xf32>
    %7 = arith.mulf %6, %5 : vector<128x128xf32>
    %8 = arith.maximumf %5, %7 : vector<128x128xf32>
    %9 = arith.truncf %8 : vector<128x128xf32> to vector<128x128xbf16>
    %c0_6 = arith.constant 0 : index
    %c0_7 = arith.constant 0 : index
    %10 = vector.load %arg4[%c0_6, %c0_7] : memref<128x128xbf16, #tpu.memory_space<vmem>>, vector<128x128xbf16>
    %cst_8 = arith.constant dense<0.000000e+00> : vector<128x128xf32>
    %11 = tpu.matmul %9, %10, %cst_8 {dimension_numbers = #tpu.dot_dimension_numbers<[1], [0], [0], [1], [0, 0, 1, 1], [], []>} : vector<128x128xbf16>, vector<128x128xbf16>, vector<128x128xf32> -> vector<128x128xf32>
    %c0_9 = arith.constant 0 : index
    %c0_10 = arith.constant 0 : index
    %12 = vector.load %arg5[%c0_9, %c0_10] : memref<1x128xf32, #tpu.memory_space<vmem>>, vector<1x128xf32>
    %13 = vector.broadcast %12 : vector<1x128xf32> to vector<128x128xf32>
    %14 = arith.addf %11, %13 : vector<128x128xf32>
    %c0_11 = arith.constant 0 : index
    %c0_12 = arith.constant 0 : index
    %15 = vector.load %arg6[%c0_11, %c0_12] : memref<32x1xi32, #tpu.memory_space<vmem>>, vector<32x1xi32>
    %16 = tpu.iota {dimensions = array<i32: 1>} : vector<32x128xi32>
    %17 = vector.broadcast %15 : vector<32x1xi32> to vector<32x128xi32>
    %18 = arith.cmpi eq, %16, %17 : vector<32x128xi32>
    %19 = arith.extui %18 : vector<32x128xi1> to vector<32x128xi32>
    %20 = arith.sitofp %19 : vector<32x128xi32> to vector<32x128xf32>
    %cst_13 = arith.constant dense<0.000000e+00> : vector<32x128xf32>
    %21 = tpu.matmul %20, %14, %cst_13 {dimension_numbers = #tpu.dot_dimension_numbers<[1], [0], [0], [1], [0, 0, 1, 1], [], []>} : vector<32x128xf32>, vector<128x128xf32>, vector<32x128xf32> -> vector<32x128xf32>
    %22 = tpu.iota {dimensions = array<i32: 1>} : vector<32x128xi32>
    %c0_14 = arith.constant 0 : index
    %c0_15 = arith.constant 0 : index
    %23 = vector.load %arg7[%c0_14, %c0_15] : memref<32x1xi32, #tpu.memory_space<vmem>>, vector<32x1xi32>
    %c0_i32 = arith.constant 0 : i32
    %24 = vector.broadcast %c0_i32 : i32 to vector<32x1xi32>
    %25 = arith.addi %23, %24 : vector<32x1xi32>
    %26 = vector.broadcast %25 : vector<32x1xi32> to vector<32x128xi32>
    %27 = arith.cmpi eq, %22, %26 : vector<32x128xi32>
    %cst_16 = arith.constant 0.000000e+00 : f32
    %28 = vector.broadcast %cst_16 : f32 to vector<32x128xf32>
    %29 = arith.select %27, %21, %28 : vector<32x128xi1>, vector<32x128xf32>
    %cst_17 = arith.constant dense<0.000000e+00> : vector<32xf32>
    %30 = vector.multi_reduction <add>, %29, %cst_17 [1] : vector<32x128xf32> to vector<32xf32>
    %31 = vector.shape_cast %30 : vector<32xf32> to vector<32x1xf32>
    %c1_i32 = arith.constant 1 : i32
    %32 = vector.broadcast %c1_i32 : i32 to vector<32x1xi32>
    %33 = arith.addi %23, %32 : vector<32x1xi32>
    %34 = vector.broadcast %33 : vector<32x1xi32> to vector<32x128xi32>
    %35 = arith.cmpi eq, %22, %34 : vector<32x128xi32>
    %cst_18 = arith.constant 0.000000e+00 : f32
    %36 = vector.broadcast %cst_18 : f32 to vector<32x128xf32>
    %37 = arith.select %35, %21, %36 : vector<32x128xi1>, vector<32x128xf32>
    %cst_19 = arith.constant dense<0.000000e+00> : vector<32xf32>
    %38 = vector.multi_reduction <add>, %37, %cst_19 [1] : vector<32x128xf32> to vector<32xf32>
    %39 = vector.shape_cast %38 : vector<32xf32> to vector<32x1xf32>
    %c2_i32 = arith.constant 2 : i32
    %40 = vector.broadcast %c2_i32 : i32 to vector<32x1xi32>
    %41 = arith.addi %23, %40 : vector<32x1xi32>
    %42 = vector.broadcast %41 : vector<32x1xi32> to vector<32x128xi32>
    %43 = arith.cmpi eq, %22, %42 : vector<32x128xi32>
    %cst_20 = arith.constant 0.000000e+00 : f32
    %44 = vector.broadcast %cst_20 : f32 to vector<32x128xf32>
    %45 = arith.select %43, %21, %44 : vector<32x128xi1>, vector<32x128xf32>
    %cst_21 = arith.constant dense<0.000000e+00> : vector<32xf32>
    %46 = vector.multi_reduction <add>, %45, %cst_21 [1] : vector<32x128xf32> to vector<32xf32>
    %47 = vector.shape_cast %46 : vector<32xf32> to vector<32x1xf32>
    %c3_i32 = arith.constant 3 : i32
    %48 = vector.broadcast %c3_i32 : i32 to vector<32x1xi32>
    %49 = arith.addi %23, %48 : vector<32x1xi32>
    %50 = vector.broadcast %49 : vector<32x1xi32> to vector<32x128xi32>
    %51 = arith.cmpi eq, %22, %50 : vector<32x128xi32>
    %cst_22 = arith.constant 0.000000e+00 : f32
    %52 = vector.broadcast %cst_22 : f32 to vector<32x128xf32>
    %53 = arith.select %51, %21, %52 : vector<32x128xi1>, vector<32x128xf32>
    %cst_23 = arith.constant dense<0.000000e+00> : vector<32xf32>
    %54 = vector.multi_reduction <add>, %53, %cst_23 [1] : vector<32x128xf32> to vector<32xf32>
    %55 = vector.shape_cast %54 : vector<32xf32> to vector<32x1xf32>
    %c4_i32 = arith.constant 4 : i32
    %56 = vector.broadcast %c4_i32 : i32 to vector<32x1xi32>
    %57 = arith.addi %23, %56 : vector<32x1xi32>
    %58 = vector.broadcast %57 : vector<32x1xi32> to vector<32x128xi32>
    %59 = arith.cmpi eq, %22, %58 : vector<32x128xi32>
    %cst_24 = arith.constant 0.000000e+00 : f32
    %60 = vector.broadcast %cst_24 : f32 to vector<32x128xf32>
    %61 = arith.select %59, %21, %60 : vector<32x128xi1>, vector<32x128xf32>
    %cst_25 = arith.constant dense<0.000000e+00> : vector<32xf32>
    %62 = vector.multi_reduction <add>, %61, %cst_25 [1] : vector<32x128xf32> to vector<32xf32>
    %63 = vector.shape_cast %62 : vector<32xf32> to vector<32x1xf32>
    %c5_i32 = arith.constant 5 : i32
    %64 = vector.broadcast %c5_i32 : i32 to vector<32x1xi32>
    %65 = arith.addi %23, %64 : vector<32x1xi32>
    %66 = vector.broadcast %65 : vector<32x1xi32> to vector<32x128xi32>
    %67 = arith.cmpi eq, %22, %66 : vector<32x128xi32>
    %cst_26 = arith.constant 0.000000e+00 : f32
    %68 = vector.broadcast %cst_26 : f32 to vector<32x128xf32>
    %69 = arith.select %67, %21, %68 : vector<32x128xi1>, vector<32x128xf32>
    %cst_27 = arith.constant dense<0.000000e+00> : vector<32xf32>
    %70 = vector.multi_reduction <add>, %69, %cst_27 [1] : vector<32x128xf32> to vector<32xf32>
    %71 = vector.shape_cast %70 : vector<32xf32> to vector<32x1xf32>
    %72 = tpu.iota {dimensions = array<i32: 0>} : vector<32x1xi32>
    %c16_i32 = arith.constant 16 : i32
    %73 = vector.broadcast %c16_i32 : i32 to vector<32x1xi32>
    %74 = arith.cmpi slt, %72, %73 : vector<32x1xi32>
    %75 = arith.extui %74 : vector<32x1xi1> to vector<32x1xi32>
    %76 = arith.sitofp %75 : vector<32x1xi32> to vector<32x1xf32>
    %cst_28 = arith.constant 1.000000e+00 : f32
    %77 = vector.broadcast %cst_28 : f32 to vector<32x1xf32>
    %78 = arith.subf %77, %76 : vector<32x1xf32>
    %cst_29 = arith.constant 0.000000e+00 : f32
    %79 = vector.broadcast %cst_29 : f32 to vector<32x1xf32>
    %80 = arith.maximumf %31, %79 : vector<32x1xf32>
    %81 = arith.mulf %31, %76 : vector<32x1xf32>
    %82 = arith.subf %80, %81 : vector<32x1xf32>
    %83 = math.absf %31 : vector<32x1xf32>
    %cst_30 = arith.constant 0.000000e+00 : f32
    %84 = vector.broadcast %cst_30 : f32 to vector<32x1xf32>
    %85 = arith.subf %84, %83 : vector<32x1xf32>
    %86 = math.exp %85 : vector<32x1xf32>
    %87 = math.log1p %86 : vector<32x1xf32>
    %88 = arith.addf %82, %87 : vector<32x1xf32>
    %89 = vector.shape_cast %88 : vector<32x1xf32> to vector<1x32x1xf32>
    %cst_31 = arith.constant dense<0.000000e+00> : vector<1xf32>
    %90 = vector.multi_reduction <add>, %89, %cst_31 [1, 2] : vector<1x32x1xf32> to vector<1xf32>
    %91 = vector.shape_cast %90 : vector<1xf32> to vector<1x1x1xf32>
    %92 = vector.extract %91[0, 0, 0] : f32 from vector<1x1x1xf32>
    %cst_32 = arith.constant 0.000000e+00 : f32
    %93 = vector.broadcast %cst_32 : f32 to vector<32x1xf32>
    %94 = arith.maximumf %39, %93 : vector<32x1xf32>
    %95 = arith.mulf %39, %78 : vector<32x1xf32>
    %96 = arith.subf %94, %95 : vector<32x1xf32>
    %97 = math.absf %39 : vector<32x1xf32>
    %cst_33 = arith.constant 0.000000e+00 : f32
    %98 = vector.broadcast %cst_33 : f32 to vector<32x1xf32>
    %99 = arith.subf %98, %97 : vector<32x1xf32>
    %100 = math.exp %99 : vector<32x1xf32>
    %101 = math.log1p %100 : vector<32x1xf32>
    %102 = arith.addf %96, %101 : vector<32x1xf32>
    %103 = vector.shape_cast %102 : vector<32x1xf32> to vector<1x32x1xf32>
    %cst_34 = arith.constant dense<0.000000e+00> : vector<1xf32>
    %104 = vector.multi_reduction <add>, %103, %cst_34 [1, 2] : vector<1x32x1xf32> to vector<1xf32>
    %105 = vector.shape_cast %104 : vector<1xf32> to vector<1x1x1xf32>
    %106 = vector.extract %105[0, 0, 0] : f32 from vector<1x1x1xf32>
    %107 = arith.addf %92, %106 : f32
    %cst_35 = arith.constant 2.000000e+00 : f32
    %108 = arith.divf %107, %cst_35 : f32
    %109 = vector.extract_strided_slice %47 {offsets = [0, 0], sizes = [16, 1], strides = [1, 1]} : vector<32x1xf32> to vector<16x1xf32>
    %c0_36 = arith.constant 0 : index
    %c0_37 = arith.constant 0 : index
    %110 = vector.load %arg10[%c0_36, %c0_37] : memref<16x4xf32, #tpu.memory_space<vmem>>, vector<16x1xf32>
    %111 = arith.subf %109, %110 : vector<16x1xf32>
    %112 = math.absf %111 : vector<16x1xf32>
    %cst_38 = arith.constant 1.000000e+00 : f32
    %113 = vector.broadcast %cst_38 : f32 to vector<16x1xf32>
    %114 = arith.cmpf olt, %112, %113 : vector<16x1xf32>
    %cst_39 = arith.constant 5.000000e-01 : f32
    %115 = vector.broadcast %cst_39 : f32 to vector<16x1xf32>
    %116 = arith.mulf %115, %111 : vector<16x1xf32>
    %117 = arith.mulf %116, %111 : vector<16x1xf32>
    %cst_40 = arith.constant 5.000000e-01 : f32
    %118 = vector.broadcast %cst_40 : f32 to vector<16x1xf32>
    %119 = arith.subf %112, %118 : vector<16x1xf32>
    %120 = arith.select %114, %117, %119 : vector<16x1xi1>, vector<16x1xf32>
    %121 = vector.shape_cast %120 : vector<16x1xf32> to vector<1x16x1xf32>
    %cst_41 = arith.constant dense<0.000000e+00> : vector<1xf32>
    %122 = vector.multi_reduction <add>, %121, %cst_41 [1, 2] : vector<1x16x1xf32> to vector<1xf32>
    %123 = vector.shape_cast %122 : vector<1xf32> to vector<1x1x1xf32>
    %124 = vector.extract %123[0, 0, 0] : f32 from vector<1x1x1xf32>
    %cst_42 = arith.constant 0.000000e+00 : f32
    %125 = arith.addf %cst_42, %124 : f32
    %126 = vector.extract_strided_slice %55 {offsets = [0, 0], sizes = [16, 1], strides = [1, 1]} : vector<32x1xf32> to vector<16x1xf32>
    %c0_43 = arith.constant 0 : index
    %c1 = arith.constant 1 : index
    %127 = vector.load %arg10[%c0_43, %c1] : memref<16x4xf32, #tpu.memory_space<vmem>>, vector<16x1xf32>
    %128 = arith.subf %126, %127 : vector<16x1xf32>
    %129 = math.absf %128 : vector<16x1xf32>
    %cst_44 = arith.constant 1.000000e+00 : f32
    %130 = vector.broadcast %cst_44 : f32 to vector<16x1xf32>
    %131 = arith.cmpf olt, %129, %130 : vector<16x1xf32>
    %cst_45 = arith.constant 5.000000e-01 : f32
    %132 = vector.broadcast %cst_45 : f32 to vector<16x1xf32>
    %133 = arith.mulf %132, %128 : vector<16x1xf32>
    %134 = arith.mulf %133, %128 : vector<16x1xf32>
    %cst_46 = arith.constant 5.000000e-01 : f32
    %135 = vector.broadcast %cst_46 : f32 to vector<16x1xf32>
    %136 = arith.subf %129, %135 : vector<16x1xf32>
    %137 = arith.select %131, %134, %136 : vector<16x1xi1>, vector<16x1xf32>
    %138 = vector.shape_cast %137 : vector<16x1xf32> to vector<1x16x1xf32>
    %cst_47 = arith.constant dense<0.000000e+00> : vector<1xf32>
    %139 = vector.multi_reduction <add>, %138, %cst_47 [1, 2] : vector<1x16x1xf32> to vector<1xf32>
    %140 = vector.shape_cast %139 : vector<1xf32> to vector<1x1x1xf32>
    %141 = vector.extract %140[0, 0, 0] : f32 from vector<1x1x1xf32>
    %142 = arith.addf %125, %141 : f32
    %143 = vector.extract_strided_slice %63 {offsets = [0, 0], sizes = [16, 1], strides = [1, 1]} : vector<32x1xf32> to vector<16x1xf32>
    %c0_48 = arith.constant 0 : index
    %c2 = arith.constant 2 : index
    %144 = vector.load %arg10[%c0_48, %c2] : memref<16x4xf32, #tpu.memory_space<vmem>>, vector<16x1xf32>
    %145 = arith.subf %143, %144 : vector<16x1xf32>
    %146 = math.absf %145 : vector<16x1xf32>
    %cst_49 = arith.constant 1.000000e+00 : f32
    %147 = vector.broadcast %cst_49 : f32 to vector<16x1xf32>
    %148 = arith.cmpf olt, %146, %147 : vector<16x1xf32>
    %cst_50 = arith.constant 5.000000e-01 : f32
    %149 = vector.broadcast %cst_50 : f32 to vector<16x1xf32>
    %150 = arith.mulf %149, %145 : vector<16x1xf32>
    %151 = arith.mulf %150, %145 : vector<16x1xf32>
    %cst_51 = arith.constant 5.000000e-01 : f32
    %152 = vector.broadcast %cst_51 : f32 to vector<16x1xf32>
    %153 = arith.subf %146, %152 : vector<16x1xf32>
    %154 = arith.select %148, %151, %153 : vector<16x1xi1>, vector<16x1xf32>
    %155 = vector.shape_cast %154 : vector<16x1xf32> to vector<1x16x1xf32>
    %cst_52 = arith.constant dense<0.000000e+00> : vector<1xf32>
    %156 = vector.multi_reduction <add>, %155, %cst_52 [1, 2] : vector<1x16x1xf32> to vector<1xf32>
    %157 = vector.shape_cast %156 : vector<1xf32> to vector<1x1x1xf32>
    %158 = vector.extract %157[0, 0, 0] : f32 from vector<1x1x1xf32>
    %159 = arith.addf %142, %158 : f32
    %160 = vector.extract_strided_slice %71 {offsets = [0, 0], sizes = [16, 1], strides = [1, 1]} : vector<32x1xf32> to vector<16x1xf32>
    %c0_53 = arith.constant 0 : index
    %c3 = arith.constant 3 : index
    %161 = vector.load %arg10[%c0_53, %c3] : memref<16x4xf32, #tpu.memory_space<vmem>>, vector<16x1xf32>
    %162 = arith.subf %160, %161 : vector<16x1xf32>
    %163 = math.absf %162 : vector<16x1xf32>
    %cst_54 = arith.constant 1.000000e+00 : f32
    %164 = vector.broadcast %cst_54 : f32 to vector<16x1xf32>
    %165 = arith.cmpf olt, %163, %164 : vector<16x1xf32>
    %cst_55 = arith.constant 5.000000e-01 : f32
    %166 = vector.broadcast %cst_55 : f32 to vector<16x1xf32>
    %167 = arith.mulf %166, %162 : vector<16x1xf32>
    %168 = arith.mulf %167, %162 : vector<16x1xf32>
    %cst_56 = arith.constant 5.000000e-01 : f32
    %169 = vector.broadcast %cst_56 : f32 to vector<16x1xf32>
    %170 = arith.subf %163, %169 : vector<16x1xf32>
    %171 = arith.select %165, %168, %170 : vector<16x1xi1>, vector<16x1xf32>
    %172 = vector.shape_cast %171 : vector<16x1xf32> to vector<1x16x1xf32>
    %cst_57 = arith.constant dense<0.000000e+00> : vector<1xf32>
    %173 = vector.multi_reduction <add>, %172, %cst_57 [1, 2] : vector<1x16x1xf32> to vector<1xf32>
    %174 = vector.shape_cast %173 : vector<1xf32> to vector<1x1x1xf32>
    %175 = vector.extract %174[0, 0, 0] : f32 from vector<1x1x1xf32>
    %176 = arith.addf %159, %175 : f32
    %cst_58 = arith.constant 2.000000e+00 : f32
    %177 = arith.divf %176, %cst_58 : f32
    %178 = vector.extract_strided_slice %47 {offsets = [0, 0], sizes = [16, 1], strides = [1, 1]} : vector<32x1xf32> to vector<16x1xf32>
    %179 = vector.extract_strided_slice %55 {offsets = [0, 0], sizes = [16, 1], strides = [1, 1]} : vector<32x1xf32> to vector<16x1xf32>
    %180 = vector.extract_strided_slice %63 {offsets = [0, 0], sizes = [16, 1], strides = [1, 1]} : vector<32x1xf32> to vector<16x1xf32>
    %181 = vector.extract_strided_slice %71 {offsets = [0, 0], sizes = [16, 1], strides = [1, 1]} : vector<32x1xf32> to vector<16x1xf32>
    %c0_59 = arith.constant 0 : index
    %c0_60 = arith.constant 0 : index
    %182 = vector.load %arg11[%c0_59, %c0_60] : memref<16x4xf32, #tpu.memory_space<vmem>>, vector<16x1xf32>
    %c0_61 = arith.constant 0 : index
    %c1_62 = arith.constant 1 : index
    %183 = vector.load %arg11[%c0_61, %c1_62] : memref<16x4xf32, #tpu.memory_space<vmem>>, vector<16x1xf32>
    %c0_63 = arith.constant 0 : index
    %c2_64 = arith.constant 2 : index
    %184 = vector.load %arg11[%c0_63, %c2_64] : memref<16x4xf32, #tpu.memory_space<vmem>>, vector<16x1xf32>
    %c0_65 = arith.constant 0 : index
    %c3_66 = arith.constant 3 : index
    %185 = vector.load %arg11[%c0_65, %c3_66] : memref<16x4xf32, #tpu.memory_space<vmem>>, vector<16x1xf32>
    %186 = arith.addf %182, %184 : vector<16x1xf32>
    %cst_67 = arith.constant 5.000000e-01 : f32
    %187 = vector.broadcast %cst_67 : f32 to vector<16x1xf32>
    %188 = arith.mulf %186, %187 : vector<16x1xf32>
    %189 = arith.addf %183, %185 : vector<16x1xf32>
    %cst_68 = arith.constant 5.000000e-01 : f32
    %190 = vector.broadcast %cst_68 : f32 to vector<16x1xf32>
    %191 = arith.mulf %189, %190 : vector<16x1xf32>
    %192 = arith.subf %184, %182 : vector<16x1xf32>
    %193 = arith.subf %185, %183 : vector<16x1xf32>
    %194 = arith.mulf %178, %192 : vector<16x1xf32>
    %195 = arith.addf %188, %194 : vector<16x1xf32>
    %196 = arith.mulf %179, %193 : vector<16x1xf32>
    %197 = arith.addf %191, %196 : vector<16x1xf32>
    %198 = math.exp %180 : vector<16x1xf32>
    %199 = arith.mulf %192, %198 : vector<16x1xf32>
    %200 = math.exp %181 : vector<16x1xf32>
    %201 = arith.mulf %193, %200 : vector<16x1xf32>
    %cst_69 = arith.constant 5.000000e-01 : f32
    %202 = vector.broadcast %cst_69 : f32 to vector<16x1xf32>
    %203 = arith.mulf %199, %202 : vector<16x1xf32>
    %204 = arith.subf %195, %203 : vector<16x1xf32>
    %cst_70 = arith.constant 5.000000e-01 : f32
    %205 = vector.broadcast %cst_70 : f32 to vector<16x1xf32>
    %206 = arith.mulf %201, %205 : vector<16x1xf32>
    %207 = arith.subf %197, %206 : vector<16x1xf32>
    %cst_71 = arith.constant 5.000000e-01 : f32
    %208 = vector.broadcast %cst_71 : f32 to vector<16x1xf32>
    %209 = arith.mulf %199, %208 : vector<16x1xf32>
    %210 = arith.addf %195, %209 : vector<16x1xf32>
    %cst_72 = arith.constant 5.000000e-01 : f32
    %211 = vector.broadcast %cst_72 : f32 to vector<16x1xf32>
    %212 = arith.mulf %201, %211 : vector<16x1xf32>
    %213 = arith.addf %197, %212 : vector<16x1xf32>
    %c0_73 = arith.constant 0 : index
    %c0_74 = arith.constant 0 : index
    %214 = vector.load %arg8[%c0_73, %c0_74] : memref<16x1xi32, #tpu.memory_space<vmem>>, vector<16x1xi32>
    %215 = tpu.iota {dimensions = array<i32: 1>} : vector<16x128xi32>
    %216 = arith.subf %210, %204 : vector<16x1xf32>
    %cst_75 = arith.constant 5.000000e-01 : f32
    %217 = vector.broadcast %cst_75 : f32 to vector<16x1xf32>
    %218 = arith.mulf %216, %217 : vector<16x1xf32>
    %219 = arith.subf %213, %207 : vector<16x1xf32>
    %cst_76 = arith.constant 5.000000e-01 : f32
    %220 = vector.broadcast %cst_76 : f32 to vector<16x1xf32>
    %221 = arith.mulf %219, %220 : vector<16x1xf32>
    %cst_77 = arith.constant 0.000000e+00 : f32
    %222 = vector.broadcast %cst_77 : f32 to vector<16x128xf32>
    %cst_78 = arith.constant 5.000000e-01 : f32
    %223 = vector.broadcast %cst_78 : f32 to vector<16x1xf32>
    %224 = arith.mulf %223, %221 : vector<16x1xf32>
    %225 = arith.addf %207, %224 : vector<16x1xf32>
    %cst_79 = arith.constant 0.000000e+00 : f32
    %cst_80 = arith.constant 7.000000e+00 : f32
    %226 = vector.broadcast %cst_79 : f32 to vector<16x1xf32>
    %227 = arith.maximumf %226, %225 : vector<16x1xf32>
    %228 = vector.broadcast %cst_80 : f32 to vector<16x1xf32>
    %229 = arith.minimumf %228, %227 : vector<16x1xf32>
    %230 = math.floor %229 : vector<16x1xf32>
    %231 = arith.fptosi %230 : vector<16x1xf32> to vector<16x1xi32>
    %c1_i32_81 = arith.constant 1 : i32
    %232 = vector.broadcast %c1_i32_81 : i32 to vector<16x1xi32>
    %233 = arith.addi %231, %232 : vector<16x1xi32>
    %c7_i32 = arith.constant 7 : i32
    %234 = vector.broadcast %c7_i32 : i32 to vector<16x1xi32>
    %235 = arith.minsi %233, %234 : vector<16x1xi32>
    %236 = arith.subf %229, %230 : vector<16x1xf32>
    %cst_82 = arith.constant 5.000000e-01 : f32
    %237 = vector.broadcast %cst_82 : f32 to vector<16x1xf32>
    %238 = arith.mulf %237, %218 : vector<16x1xf32>
    %239 = arith.addf %204, %238 : vector<16x1xf32>
    %cst_83 = arith.constant 0.000000e+00 : f32
    %cst_84 = arith.constant 7.000000e+00 : f32
    %240 = vector.broadcast %cst_83 : f32 to vector<16x1xf32>
    %241 = arith.maximumf %240, %239 : vector<16x1xf32>
    %242 = vector.broadcast %cst_84 : f32 to vector<16x1xf32>
    %243 = arith.minimumf %242, %241 : vector<16x1xf32>
    %244 = math.floor %243 : vector<16x1xf32>
    %245 = arith.fptosi %244 : vector<16x1xf32> to vector<16x1xi32>
    %c1_i32_85 = arith.constant 1 : i32
    %246 = vector.broadcast %c1_i32_85 : i32 to vector<16x1xi32>
    %247 = arith.addi %245, %246 : vector<16x1xi32>
    %c7_i32_86 = arith.constant 7 : i32
    %248 = vector.broadcast %c7_i32_86 : i32 to vector<16x1xi32>
    %249 = arith.minsi %247, %248 : vector<16x1xi32>
    %250 = arith.subf %243, %244 : vector<16x1xf32>
    %cst_87 = arith.constant 1.000000e+00 : f32
    %251 = vector.broadcast %cst_87 : f32 to vector<16x1xf32>
    %252 = arith.subf %251, %236 : vector<16x1xf32>
    %cst_88 = arith.constant 1.000000e+00 : f32
    %253 = vector.broadcast %cst_88 : f32 to vector<16x1xf32>
    %254 = arith.subf %253, %250 : vector<16x1xf32>
    %c8_i32 = arith.constant 8 : i32
    %255 = vector.broadcast %c8_i32 : i32 to vector<16x1xi32>
    %256 = arith.muli %231, %255 : vector<16x1xi32>
    %257 = arith.addi %214, %256 : vector<16x1xi32>
    %258 = arith.addi %257, %245 : vector<16x1xi32>
    %259 = arith.mulf %252, %254 : vector<16x1xf32>
    %cst_89 = arith.constant 2.500000e-01 : f32
    %260 = vector.broadcast %cst_89 : f32 to vector<16x1xf32>
    %261 = arith.mulf %259, %260 : vector<16x1xf32>
    %262 = vector.broadcast %258 : vector<16x1xi32> to vector<16x128xi32>
    %263 = arith.cmpi eq, %215, %262 : vector<16x128xi32>
    %cst_90 = arith.constant 0.000000e+00 : f32
    %264 = vector.shape_cast %261 : vector<16x1xf32> to vector<16x1xf32>
    %265 = vector.broadcast %264 : vector<16x1xf32> to vector<16x128xf32>
    %266 = vector.broadcast %cst_90 : f32 to vector<16x128xf32>
    %267 = arith.select %263, %265, %266 : vector<16x128xi1>, vector<16x128xf32>
    %268 = arith.addf %222, %267 : vector<16x128xf32>
    %c8_i32_91 = arith.constant 8 : i32
    %269 = vector.broadcast %c8_i32_91 : i32 to vector<16x1xi32>
    %270 = arith.muli %231, %269 : vector<16x1xi32>
    %271 = arith.addi %214, %270 : vector<16x1xi32>
    %272 = arith.addi %271, %249 : vector<16x1xi32>
    %273 = arith.mulf %252, %250 : vector<16x1xf32>
    %cst_92 = arith.constant 2.500000e-01 : f32
    %274 = vector.broadcast %cst_92 : f32 to vector<16x1xf32>
    %275 = arith.mulf %273, %274 : vector<16x1xf32>
    %276 = vector.broadcast %272 : vector<16x1xi32> to vector<16x128xi32>
    %277 = arith.cmpi eq, %215, %276 : vector<16x128xi32>
    %cst_93 = arith.constant 0.000000e+00 : f32
    %278 = vector.shape_cast %275 : vector<16x1xf32> to vector<16x1xf32>
    %279 = vector.broadcast %278 : vector<16x1xf32> to vector<16x128xf32>
    %280 = vector.broadcast %cst_93 : f32 to vector<16x128xf32>
    %281 = arith.select %277, %279, %280 : vector<16x128xi1>, vector<16x128xf32>
    %282 = arith.addf %268, %281 : vector<16x128xf32>
    %cst_94 = arith.constant 1.000000e+00 : f32
    %283 = vector.broadcast %cst_94 : f32 to vector<16x1xf32>
    %284 = arith.subf %283, %250 : vector<16x1xf32>
    %c8_i32_95 = arith.constant 8 : i32
    %285 = vector.broadcast %c8_i32_95 : i32 to vector<16x1xi32>
    %286 = arith.muli %235, %285 : vector<16x1xi32>
    %287 = arith.addi %214, %286 : vector<16x1xi32>
    %288 = arith.addi %287, %245 : vector<16x1xi32>
    %289 = arith.mulf %236, %284 : vector<16x1xf32>
    %cst_96 = arith.constant 2.500000e-01 : f32
    %290 = vector.broadcast %cst_96 : f32 to vector<16x1xf32>
    %291 = arith.mulf %289, %290 : vector<16x1xf32>
    %292 = vector.broadcast %288 : vector<16x1xi32> to vector<16x128xi32>
    %293 = arith.cmpi eq, %215, %292 : vector<16x128xi32>
    %cst_97 = arith.constant 0.000000e+00 : f32
    %294 = vector.shape_cast %291 : vector<16x1xf32> to vector<16x1xf32>
    %295 = vector.broadcast %294 : vector<16x1xf32> to vector<16x128xf32>
    %296 = vector.broadcast %cst_97 : f32 to vector<16x128xf32>
    %297 = arith.select %293, %295, %296 : vector<16x128xi1>, vector<16x128xf32>
    %298 = arith.addf %282, %297 : vector<16x128xf32>
    %c8_i32_98 = arith.constant 8 : i32
    %299 = vector.broadcast %c8_i32_98 : i32 to vector<16x1xi32>
    %300 = arith.muli %235, %299 : vector<16x1xi32>
    %301 = arith.addi %214, %300 : vector<16x1xi32>
    %302 = arith.addi %301, %249 : vector<16x1xi32>
    %303 = arith.mulf %236, %250 : vector<16x1xf32>
    %cst_99 = arith.constant 2.500000e-01 : f32
    %304 = vector.broadcast %cst_99 : f32 to vector<16x1xf32>
    %305 = arith.mulf %303, %304 : vector<16x1xf32>
    %306 = vector.broadcast %302 : vector<16x1xi32> to vector<16x128xi32>
    %307 = arith.cmpi eq, %215, %306 : vector<16x128xi32>
    %cst_100 = arith.constant 0.000000e+00 : f32
    %308 = vector.shape_cast %305 : vector<16x1xf32> to vector<16x1xf32>
    %309 = vector.broadcast %308 : vector<16x1xf32> to vector<16x128xf32>
    %310 = vector.broadcast %cst_100 : f32 to vector<16x128xf32>
    %311 = arith.select %307, %309, %310 : vector<16x128xi1>, vector<16x128xf32>
    %312 = arith.addf %298, %311 : vector<16x128xf32>
    %cst_101 = arith.constant 1.500000e+00 : f32
    %313 = vector.broadcast %cst_101 : f32 to vector<16x1xf32>
    %314 = arith.mulf %313, %218 : vector<16x1xf32>
    %315 = arith.addf %204, %314 : vector<16x1xf32>
    %cst_102 = arith.constant 0.000000e+00 : f32
    %cst_103 = arith.constant 7.000000e+00 : f32
    %316 = vector.broadcast %cst_102 : f32 to vector<16x1xf32>
    %317 = arith.maximumf %316, %315 : vector<16x1xf32>
    %318 = vector.broadcast %cst_103 : f32 to vector<16x1xf32>
    %319 = arith.minimumf %318, %317 : vector<16x1xf32>
    %320 = math.floor %319 : vector<16x1xf32>
    %321 = arith.fptosi %320 : vector<16x1xf32> to vector<16x1xi32>
    %c1_i32_104 = arith.constant 1 : i32
    %322 = vector.broadcast %c1_i32_104 : i32 to vector<16x1xi32>
    %323 = arith.addi %321, %322 : vector<16x1xi32>
    %c7_i32_105 = arith.constant 7 : i32
    %324 = vector.broadcast %c7_i32_105 : i32 to vector<16x1xi32>
    %325 = arith.minsi %323, %324 : vector<16x1xi32>
    %326 = arith.subf %319, %320 : vector<16x1xf32>
    %cst_106 = arith.constant 1.000000e+00 : f32
    %327 = vector.broadcast %cst_106 : f32 to vector<16x1xf32>
    %328 = arith.subf %327, %236 : vector<16x1xf32>
    %cst_107 = arith.constant 1.000000e+00 : f32
    %329 = vector.broadcast %cst_107 : f32 to vector<16x1xf32>
    %330 = arith.subf %329, %326 : vector<16x1xf32>
    %c8_i32_108 = arith.constant 8 : i32
    %331 = vector.broadcast %c8_i32_108 : i32 to vector<16x1xi32>
    %332 = arith.muli %231, %331 : vector<16x1xi32>
    %333 = arith.addi %214, %332 : vector<16x1xi32>
    %334 = arith.addi %333, %321 : vector<16x1xi32>
    %335 = arith.mulf %328, %330 : vector<16x1xf32>
    %cst_109 = arith.constant 2.500000e-01 : f32
    %336 = vector.broadcast %cst_109 : f32 to vector<16x1xf32>
    %337 = arith.mulf %335, %336 : vector<16x1xf32>
    %338 = vector.broadcast %334 : vector<16x1xi32> to vector<16x128xi32>
    %339 = arith.cmpi eq, %215, %338 : vector<16x128xi32>
    %cst_110 = arith.constant 0.000000e+00 : f32
    %340 = vector.shape_cast %337 : vector<16x1xf32> to vector<16x1xf32>
    %341 = vector.broadcast %340 : vector<16x1xf32> to vector<16x128xf32>
    %342 = vector.broadcast %cst_110 : f32 to vector<16x128xf32>
    %343 = arith.select %339, %341, %342 : vector<16x128xi1>, vector<16x128xf32>
    %344 = arith.addf %312, %343 : vector<16x128xf32>
    %c8_i32_111 = arith.constant 8 : i32
    %345 = vector.broadcast %c8_i32_111 : i32 to vector<16x1xi32>
    %346 = arith.muli %231, %345 : vector<16x1xi32>
    %347 = arith.addi %214, %346 : vector<16x1xi32>
    %348 = arith.addi %347, %325 : vector<16x1xi32>
    %349 = arith.mulf %328, %326 : vector<16x1xf32>
    %cst_112 = arith.constant 2.500000e-01 : f32
    %350 = vector.broadcast %cst_112 : f32 to vector<16x1xf32>
    %351 = arith.mulf %349, %350 : vector<16x1xf32>
    %352 = vector.broadcast %348 : vector<16x1xi32> to vector<16x128xi32>
    %353 = arith.cmpi eq, %215, %352 : vector<16x128xi32>
    %cst_113 = arith.constant 0.000000e+00 : f32
    %354 = vector.shape_cast %351 : vector<16x1xf32> to vector<16x1xf32>
    %355 = vector.broadcast %354 : vector<16x1xf32> to vector<16x128xf32>
    %356 = vector.broadcast %cst_113 : f32 to vector<16x128xf32>
    %357 = arith.select %353, %355, %356 : vector<16x128xi1>, vector<16x128xf32>
    %358 = arith.addf %344, %357 : vector<16x128xf32>
    %cst_114 = arith.constant 1.000000e+00 : f32
    %359 = vector.broadcast %cst_114 : f32 to vector<16x1xf32>
    %360 = arith.subf %359, %326 : vector<16x1xf32>
    %c8_i32_115 = arith.constant 8 : i32
    %361 = vector.broadcast %c8_i32_115 : i32 to vector<16x1xi32>
    %362 = arith.muli %235, %361 : vector<16x1xi32>
    %363 = arith.addi %214, %362 : vector<16x1xi32>
    %364 = arith.addi %363, %321 : vector<16x1xi32>
    %365 = arith.mulf %236, %360 : vector<16x1xf32>
    %cst_116 = arith.constant 2.500000e-01 : f32
    %366 = vector.broadcast %cst_116 : f32 to vector<16x1xf32>
    %367 = arith.mulf %365, %366 : vector<16x1xf32>
    %368 = vector.broadcast %364 : vector<16x1xi32> to vector<16x128xi32>
    %369 = arith.cmpi eq, %215, %368 : vector<16x128xi32>
    %cst_117 = arith.constant 0.000000e+00 : f32
    %370 = vector.shape_cast %367 : vector<16x1xf32> to vector<16x1xf32>
    %371 = vector.broadcast %370 : vector<16x1xf32> to vector<16x128xf32>
    %372 = vector.broadcast %cst_117 : f32 to vector<16x128xf32>
    %373 = arith.select %369, %371, %372 : vector<16x128xi1>, vector<16x128xf32>
    %374 = arith.addf %358, %373 : vector<16x128xf32>
    %c8_i32_118 = arith.constant 8 : i32
    %375 = vector.broadcast %c8_i32_118 : i32 to vector<16x1xi32>
    %376 = arith.muli %235, %375 : vector<16x1xi32>
    %377 = arith.addi %214, %376 : vector<16x1xi32>
    %378 = arith.addi %377, %325 : vector<16x1xi32>
    %379 = arith.mulf %236, %326 : vector<16x1xf32>
    %cst_119 = arith.constant 2.500000e-01 : f32
    %380 = vector.broadcast %cst_119 : f32 to vector<16x1xf32>
    %381 = arith.mulf %379, %380 : vector<16x1xf32>
    %382 = vector.broadcast %378 : vector<16x1xi32> to vector<16x128xi32>
    %383 = arith.cmpi eq, %215, %382 : vector<16x128xi32>
    %cst_120 = arith.constant 0.000000e+00 : f32
    %384 = vector.shape_cast %381 : vector<16x1xf32> to vector<16x1xf32>
    %385 = vector.broadcast %384 : vector<16x1xf32> to vector<16x128xf32>
    %386 = vector.broadcast %cst_120 : f32 to vector<16x128xf32>
    %387 = arith.select %383, %385, %386 : vector<16x128xi1>, vector<16x128xf32>
    %388 = arith.addf %374, %387 : vector<16x128xf32>
    %cst_121 = arith.constant 1.500000e+00 : f32
    %389 = vector.broadcast %cst_121 : f32 to vector<16x1xf32>
    %390 = arith.mulf %389, %221 : vector<16x1xf32>
    %391 = arith.addf %207, %390 : vector<16x1xf32>
    %cst_122 = arith.constant 0.000000e+00 : f32
    %cst_123 = arith.constant 7.000000e+00 : f32
    %392 = vector.broadcast %cst_122 : f32 to vector<16x1xf32>
    %393 = arith.maximumf %392, %391 : vector<16x1xf32>
    %394 = vector.broadcast %cst_123 : f32 to vector<16x1xf32>
    %395 = arith.minimumf %394, %393 : vector<16x1xf32>
    %396 = math.floor %395 : vector<16x1xf32>
    %397 = arith.fptosi %396 : vector<16x1xf32> to vector<16x1xi32>
    %c1_i32_124 = arith.constant 1 : i32
    %398 = vector.broadcast %c1_i32_124 : i32 to vector<16x1xi32>
    %399 = arith.addi %397, %398 : vector<16x1xi32>
    %c7_i32_125 = arith.constant 7 : i32
    %400 = vector.broadcast %c7_i32_125 : i32 to vector<16x1xi32>
    %401 = arith.minsi %399, %400 : vector<16x1xi32>
    %402 = arith.subf %395, %396 : vector<16x1xf32>
    %cst_126 = arith.constant 5.000000e-01 : f32
    %403 = vector.broadcast %cst_126 : f32 to vector<16x1xf32>
    %404 = arith.mulf %403, %218 : vector<16x1xf32>
    %405 = arith.addf %204, %404 : vector<16x1xf32>
    %cst_127 = arith.constant 0.000000e+00 : f32
    %cst_128 = arith.constant 7.000000e+00 : f32
    %406 = vector.broadcast %cst_127 : f32 to vector<16x1xf32>
    %407 = arith.maximumf %406, %405 : vector<16x1xf32>
    %408 = vector.broadcast %cst_128 : f32 to vector<16x1xf32>
    %409 = arith.minimumf %408, %407 : vector<16x1xf32>
    %410 = math.floor %409 : vector<16x1xf32>
    %411 = arith.fptosi %410 : vector<16x1xf32> to vector<16x1xi32>
    %c1_i32_129 = arith.constant 1 : i32
    %412 = vector.broadcast %c1_i32_129 : i32 to vector<16x1xi32>
    %413 = arith.addi %411, %412 : vector<16x1xi32>
    %c7_i32_130 = arith.constant 7 : i32
    %414 = vector.broadcast %c7_i32_130 : i32 to vector<16x1xi32>
    %415 = arith.minsi %413, %414 : vector<16x1xi32>
    %416 = arith.subf %409, %410 : vector<16x1xf32>
    %cst_131 = arith.constant 1.000000e+00 : f32
    %417 = vector.broadcast %cst_131 : f32 to vector<16x1xf32>
    %418 = arith.subf %417, %402 : vector<16x1xf32>
    %cst_132 = arith.constant 1.000000e+00 : f32
    %419 = vector.broadcast %cst_132 : f32 to vector<16x1xf32>
    %420 = arith.subf %419, %416 : vector<16x1xf32>
    %c8_i32_133 = arith.constant 8 : i32
    %421 = vector.broadcast %c8_i32_133 : i32 to vector<16x1xi32>
    %422 = arith.muli %397, %421 : vector<16x1xi32>
    %423 = arith.addi %214, %422 : vector<16x1xi32>
    %424 = arith.addi %423, %411 : vector<16x1xi32>
    %425 = arith.mulf %418, %420 : vector<16x1xf32>
    %cst_134 = arith.constant 2.500000e-01 : f32
    %426 = vector.broadcast %cst_134 : f32 to vector<16x1xf32>
    %427 = arith.mulf %425, %426 : vector<16x1xf32>
    %428 = vector.broadcast %424 : vector<16x1xi32> to vector<16x128xi32>
    %429 = arith.cmpi eq, %215, %428 : vector<16x128xi32>
    %cst_135 = arith.constant 0.000000e+00 : f32
    %430 = vector.shape_cast %427 : vector<16x1xf32> to vector<16x1xf32>
    %431 = vector.broadcast %430 : vector<16x1xf32> to vector<16x128xf32>
    %432 = vector.broadcast %cst_135 : f32 to vector<16x128xf32>
    %433 = arith.select %429, %431, %432 : vector<16x128xi1>, vector<16x128xf32>
    %434 = arith.addf %388, %433 : vector<16x128xf32>
    %c8_i32_136 = arith.constant 8 : i32
    %435 = vector.broadcast %c8_i32_136 : i32 to vector<16x1xi32>
    %436 = arith.muli %397, %435 : vector<16x1xi32>
    %437 = arith.addi %214, %436 : vector<16x1xi32>
    %438 = arith.addi %437, %415 : vector<16x1xi32>
    %439 = arith.mulf %418, %416 : vector<16x1xf32>
    %cst_137 = arith.constant 2.500000e-01 : f32
    %440 = vector.broadcast %cst_137 : f32 to vector<16x1xf32>
    %441 = arith.mulf %439, %440 : vector<16x1xf32>
    %442 = vector.broadcast %438 : vector<16x1xi32> to vector<16x128xi32>
    %443 = arith.cmpi eq, %215, %442 : vector<16x128xi32>
    %cst_138 = arith.constant 0.000000e+00 : f32
    %444 = vector.shape_cast %441 : vector<16x1xf32> to vector<16x1xf32>
    %445 = vector.broadcast %444 : vector<16x1xf32> to vector<16x128xf32>
    %446 = vector.broadcast %cst_138 : f32 to vector<16x128xf32>
    %447 = arith.select %443, %445, %446 : vector<16x128xi1>, vector<16x128xf32>
    %448 = arith.addf %434, %447 : vector<16x128xf32>
    %cst_139 = arith.constant 1.000000e+00 : f32
    %449 = vector.broadcast %cst_139 : f32 to vector<16x1xf32>
    %450 = arith.subf %449, %416 : vector<16x1xf32>
    %c8_i32_140 = arith.constant 8 : i32
    %451 = vector.broadcast %c8_i32_140 : i32 to vector<16x1xi32>
    %452 = arith.muli %401, %451 : vector<16x1xi32>
    %453 = arith.addi %214, %452 : vector<16x1xi32>
    %454 = arith.addi %453, %411 : vector<16x1xi32>
    %455 = arith.mulf %402, %450 : vector<16x1xf32>
    %cst_141 = arith.constant 2.500000e-01 : f32
    %456 = vector.broadcast %cst_141 : f32 to vector<16x1xf32>
    %457 = arith.mulf %455, %456 : vector<16x1xf32>
    %458 = vector.broadcast %454 : vector<16x1xi32> to vector<16x128xi32>
    %459 = arith.cmpi eq, %215, %458 : vector<16x128xi32>
    %cst_142 = arith.constant 0.000000e+00 : f32
    %460 = vector.shape_cast %457 : vector<16x1xf32> to vector<16x1xf32>
    %461 = vector.broadcast %460 : vector<16x1xf32> to vector<16x128xf32>
    %462 = vector.broadcast %cst_142 : f32 to vector<16x128xf32>
    %463 = arith.select %459, %461, %462 : vector<16x128xi1>, vector<16x128xf32>
    %464 = arith.addf %448, %463 : vector<16x128xf32>
    %c8_i32_143 = arith.constant 8 : i32
    %465 = vector.broadcast %c8_i32_143 : i32 to vector<16x1xi32>
    %466 = arith.muli %401, %465 : vector<16x1xi32>
    %467 = arith.addi %214, %466 : vector<16x1xi32>
    %468 = arith.addi %467, %415 : vector<16x1xi32>
    %469 = arith.mulf %402, %416 : vector<16x1xf32>
    %cst_144 = arith.constant 2.500000e-01 : f32
    %470 = vector.broadcast %cst_144 : f32 to vector<16x1xf32>
    %471 = arith.mulf %469, %470 : vector<16x1xf32>
    %472 = vector.broadcast %468 : vector<16x1xi32> to vector<16x128xi32>
    %473 = arith.cmpi eq, %215, %472 : vector<16x128xi32>
    %cst_145 = arith.constant 0.000000e+00 : f32
    %474 = vector.shape_cast %471 : vector<16x1xf32> to vector<16x1xf32>
    %475 = vector.broadcast %474 : vector<16x1xf32> to vector<16x128xf32>
    %476 = vector.broadcast %cst_145 : f32 to vector<16x128xf32>
    %477 = arith.select %473, %475, %476 : vector<16x128xi1>, vector<16x128xf32>
    %478 = arith.addf %464, %477 : vector<16x128xf32>
    %cst_146 = arith.constant 1.500000e+00 : f32
    %479 = vector.broadcast %cst_146 : f32 to vector<16x1xf32>
    %480 = arith.mulf %479, %218 : vector<16x1xf32>
    %481 = arith.addf %204, %480 : vector<16x1xf32>
    %cst_147 = arith.constant 0.000000e+00 : f32
    %cst_148 = arith.constant 7.000000e+00 : f32
    %482 = vector.broadcast %cst_147 : f32 to vector<16x1xf32>
    %483 = arith.maximumf %482, %481 : vector<16x1xf32>
    %484 = vector.broadcast %cst_148 : f32 to vector<16x1xf32>
    %485 = arith.minimumf %484, %483 : vector<16x1xf32>
    %486 = math.floor %485 : vector<16x1xf32>
    %487 = arith.fptosi %486 : vector<16x1xf32> to vector<16x1xi32>
    %c1_i32_149 = arith.constant 1 : i32
    %488 = vector.broadcast %c1_i32_149 : i32 to vector<16x1xi32>
    %489 = arith.addi %487, %488 : vector<16x1xi32>
    %c7_i32_150 = arith.constant 7 : i32
    %490 = vector.broadcast %c7_i32_150 : i32 to vector<16x1xi32>
    %491 = arith.minsi %489, %490 : vector<16x1xi32>
    %492 = arith.subf %485, %486 : vector<16x1xf32>
    %cst_151 = arith.constant 1.000000e+00 : f32
    %493 = vector.broadcast %cst_151 : f32 to vector<16x1xf32>
    %494 = arith.subf %493, %402 : vector<16x1xf32>
    %cst_152 = arith.constant 1.000000e+00 : f32
    %495 = vector.broadcast %cst_152 : f32 to vector<16x1xf32>
    %496 = arith.subf %495, %492 : vector<16x1xf32>
    %c8_i32_153 = arith.constant 8 : i32
    %497 = vector.broadcast %c8_i32_153 : i32 to vector<16x1xi32>
    %498 = arith.muli %397, %497 : vector<16x1xi32>
    %499 = arith.addi %214, %498 : vector<16x1xi32>
    %500 = arith.addi %499, %487 : vector<16x1xi32>
    %501 = arith.mulf %494, %496 : vector<16x1xf32>
    %cst_154 = arith.constant 2.500000e-01 : f32
    %502 = vector.broadcast %cst_154 : f32 to vector<16x1xf32>
    %503 = arith.mulf %501, %502 : vector<16x1xf32>
    %504 = vector.broadcast %500 : vector<16x1xi32> to vector<16x128xi32>
    %505 = arith.cmpi eq, %215, %504 : vector<16x128xi32>
    %cst_155 = arith.constant 0.000000e+00 : f32
    %506 = vector.shape_cast %503 : vector<16x1xf32> to vector<16x1xf32>
    %507 = vector.broadcast %506 : vector<16x1xf32> to vector<16x128xf32>
    %508 = vector.broadcast %cst_155 : f32 to vector<16x128xf32>
    %509 = arith.select %505, %507, %508 : vector<16x128xi1>, vector<16x128xf32>
    %510 = arith.addf %478, %509 : vector<16x128xf32>
    %c8_i32_156 = arith.constant 8 : i32
    %511 = vector.broadcast %c8_i32_156 : i32 to vector<16x1xi32>
    %512 = arith.muli %397, %511 : vector<16x1xi32>
    %513 = arith.addi %214, %512 : vector<16x1xi32>
    %514 = arith.addi %513, %491 : vector<16x1xi32>
    %515 = arith.mulf %494, %492 : vector<16x1xf32>
    %cst_157 = arith.constant 2.500000e-01 : f32
    %516 = vector.broadcast %cst_157 : f32 to vector<16x1xf32>
    %517 = arith.mulf %515, %516 : vector<16x1xf32>
    %518 = vector.broadcast %514 : vector<16x1xi32> to vector<16x128xi32>
    %519 = arith.cmpi eq, %215, %518 : vector<16x128xi32>
    %cst_158 = arith.constant 0.000000e+00 : f32
    %520 = vector.shape_cast %517 : vector<16x1xf32> to vector<16x1xf32>
    %521 = vector.broadcast %520 : vector<16x1xf32> to vector<16x128xf32>
    %522 = vector.broadcast %cst_158 : f32 to vector<16x128xf32>
    %523 = arith.select %519, %521, %522 : vector<16x128xi1>, vector<16x128xf32>
    %524 = arith.addf %510, %523 : vector<16x128xf32>
    %cst_159 = arith.constant 1.000000e+00 : f32
    %525 = vector.broadcast %cst_159 : f32 to vector<16x1xf32>
    %526 = arith.subf %525, %492 : vector<16x1xf32>
    %c8_i32_160 = arith.constant 8 : i32
    %527 = vector.broadcast %c8_i32_160 : i32 to vector<16x1xi32>
    %528 = arith.muli %401, %527 : vector<16x1xi32>
    %529 = arith.addi %214, %528 : vector<16x1xi32>
    %530 = arith.addi %529, %487 : vector<16x1xi32>
    %531 = arith.mulf %402, %526 : vector<16x1xf32>
    %cst_161 = arith.constant 2.500000e-01 : f32
    %532 = vector.broadcast %cst_161 : f32 to vector<16x1xf32>
    %533 = arith.mulf %531, %532 : vector<16x1xf32>
    %534 = vector.broadcast %530 : vector<16x1xi32> to vector<16x128xi32>
    %535 = arith.cmpi eq, %215, %534 : vector<16x128xi32>
    %cst_162 = arith.constant 0.000000e+00 : f32
    %536 = vector.shape_cast %533 : vector<16x1xf32> to vector<16x1xf32>
    %537 = vector.broadcast %536 : vector<16x1xf32> to vector<16x128xf32>
    %538 = vector.broadcast %cst_162 : f32 to vector<16x128xf32>
    %539 = arith.select %535, %537, %538 : vector<16x128xi1>, vector<16x128xf32>
    %540 = arith.addf %524, %539 : vector<16x128xf32>
    %c8_i32_163 = arith.constant 8 : i32
    %541 = vector.broadcast %c8_i32_163 : i32 to vector<16x1xi32>
    %542 = arith.muli %401, %541 : vector<16x1xi32>
    %543 = arith.addi %214, %542 : vector<16x1xi32>
    %544 = arith.addi %543, %491 : vector<16x1xi32>
    %545 = arith.mulf %402, %492 : vector<16x1xf32>
    %cst_164 = arith.constant 2.500000e-01 : f32
    %546 = vector.broadcast %cst_164 : f32 to vector<16x1xf32>
    %547 = arith.mulf %545, %546 : vector<16x1xf32>
    %548 = vector.broadcast %544 : vector<16x1xi32> to vector<16x128xi32>
    %549 = arith.cmpi eq, %215, %548 : vector<16x128xi32>
    %cst_165 = arith.constant 0.000000e+00 : f32
    %550 = vector.shape_cast %547 : vector<16x1xf32> to vector<16x1xf32>
    %551 = vector.broadcast %550 : vector<16x1xf32> to vector<16x128xf32>
    %552 = vector.broadcast %cst_165 : f32 to vector<16x128xf32>
    %553 = arith.select %549, %551, %552 : vector<16x128xi1>, vector<16x128xf32>
    %554 = arith.addf %540, %553 : vector<16x128xf32>
    %555 = arith.truncf %554 : vector<16x128xf32> to vector<16x128xbf16>
    %c0_166 = arith.constant 0 : index
    %c0_167 = arith.constant 0 : index
    %556 = vector.load %arg1[%c0_166, %c0_167] : memref<128x32xbf16, #tpu.memory_space<vmem>>, vector<128x32xbf16>
    %cst_168 = arith.constant dense<0.000000e+00> : vector<16x32xf32>
    %557 = tpu.matmul %555, %556, %cst_168 {dimension_numbers = #tpu.dot_dimension_numbers<[1], [0], [0], [1], [0, 0, 1, 1], [], []>} : vector<16x128xbf16>, vector<128x32xbf16>, vector<16x32xf32> -> vector<16x32xf32>
    %558 = arith.truncf %557 : vector<16x32xf32> to vector<16x32xbf16>
    %c0_169 = arith.constant 0 : index
    %c0_170 = arith.constant 0 : index
    %559 = vector.load %arg12[%c0_169, %c0_170] : memref<32x128xbf16, #tpu.memory_space<vmem>>, vector<32x128xbf16>
    %cst_171 = arith.constant dense<0.000000e+00> : vector<16x128xf32>
    %560 = tpu.matmul %558, %559, %cst_171 {dimension_numbers = #tpu.dot_dimension_numbers<[1], [0], [0], [1], [0, 0, 1, 1], [], []>} : vector<16x32xbf16>, vector<32x128xbf16>, vector<16x128xf32> -> vector<16x128xf32>
    %c0_172 = arith.constant 0 : index
    %c0_173 = arith.constant 0 : index
    %561 = vector.load %arg13[%c0_172, %c0_173] : memref<1x128xf32, #tpu.memory_space<vmem>>, vector<1x128xf32>
    %562 = vector.broadcast %561 : vector<1x128xf32> to vector<16x128xf32>
    %563 = arith.addf %560, %562 : vector<16x128xf32>
    %cst_174 = arith.constant 0.000000e+00 : f32
    %564 = vector.broadcast %cst_174 : f32 to vector<16x128xf32>
    %565 = arith.maximumf %563, %564 : vector<16x128xf32>
    %566 = arith.truncf %565 : vector<16x128xf32> to vector<16x128xbf16>
    %c0_175 = arith.constant 0 : index
    %c0_176 = arith.constant 0 : index
    %567 = vector.load %arg14[%c0_175, %c0_176] : memref<128x128xbf16, #tpu.memory_space<vmem>>, vector<128x128xbf16>
    %cst_177 = arith.constant dense<0.000000e+00> : vector<16x128xf32>
    %568 = tpu.matmul %566, %567, %cst_177 {dimension_numbers = #tpu.dot_dimension_numbers<[1], [0], [0], [1], [0, 0, 1, 1], [], []>} : vector<16x128xbf16>, vector<128x128xbf16>, vector<16x128xf32> -> vector<16x128xf32>
    %c0_178 = arith.constant 0 : index
    %c0_179 = arith.constant 0 : index
    %569 = vector.load %arg15[%c0_178, %c0_179] : memref<1x128xf32, #tpu.memory_space<vmem>>, vector<1x128xf32>
    %570 = vector.broadcast %569 : vector<1x128xf32> to vector<16x128xf32>
    %571 = arith.addf %568, %570 : vector<16x128xf32>
    %572 = tpu.iota {dimensions = array<i32: 1>} : vector<16x128xi32>
    %c8_i32_180 = arith.constant 8 : i32
    %573 = vector.broadcast %c8_i32_180 : i32 to vector<16x128xi32>
    %574 = arith.cmpi slt, %572, %573 : vector<16x128xi32>
    %cst_181 = arith.constant -1.000000e+30 : f32
    %575 = vector.broadcast %cst_181 : f32 to vector<16x128xf32>
    %576 = arith.select %574, %571, %575 : vector<16x128xi1>, vector<16x128xf32>
    %cst_182 = arith.constant dense<0xFF800000> : vector<16xf32>
    %577 = vector.multi_reduction <maximumf>, %576, %cst_182 [1] : vector<16x128xf32> to vector<16xf32>
    %578 = vector.shape_cast %577 : vector<16xf32> to vector<16x1xf32>
    %579 = vector.broadcast %578 : vector<16x1xf32> to vector<16x128xf32>
    %580 = arith.subf %576, %579 : vector<16x128xf32>
    %581 = math.exp %580 : vector<16x128xf32>
    %cst_183 = arith.constant dense<0.000000e+00> : vector<16xf32>
    %582 = vector.multi_reduction <add>, %581, %cst_183 [1] : vector<16x128xf32> to vector<16xf32>
    %583 = vector.shape_cast %582 : vector<16xf32> to vector<16x1xf32>
    %584 = math.log %583 : vector<16x1xf32>
    %585 = arith.addf %584, %578 : vector<16x1xf32>
    %c0_184 = arith.constant 0 : index
    %c0_185 = arith.constant 0 : index
    %586 = vector.load %arg9[%c0_184, %c0_185] : memref<16x1xi32, #tpu.memory_space<vmem>>, vector<16x1xi32>
    %587 = vector.broadcast %586 : vector<16x1xi32> to vector<16x128xi32>
    %588 = arith.cmpi eq, %572, %587 : vector<16x128xi32>
    %cst_186 = arith.constant 0.000000e+00 : f32
    %589 = vector.broadcast %cst_186 : f32 to vector<16x128xf32>
    %590 = arith.select %588, %576, %589 : vector<16x128xi1>, vector<16x128xf32>
    %cst_187 = arith.constant dense<0.000000e+00> : vector<16xf32>
    %591 = vector.multi_reduction <add>, %590, %cst_187 [1] : vector<16x128xf32> to vector<16xf32>
    %592 = vector.shape_cast %591 : vector<16xf32> to vector<16x1xf32>
    %593 = arith.subf %585, %592 : vector<16x1xf32>
    %594 = vector.shape_cast %593 : vector<16x1xf32> to vector<1x16x1xf32>
    %cst_188 = arith.constant dense<0.000000e+00> : vector<1xf32>
    %595 = vector.multi_reduction <add>, %594, %cst_188 [1, 2] : vector<1x16x1xf32> to vector<1xf32>
    %596 = vector.shape_cast %595 : vector<1xf32> to vector<1x1x1xf32>
    %597 = vector.extract %596[0, 0, 0] : f32 from vector<1x1x1xf32>
    %cst_189 = arith.constant 1.600000e+01 : f32
    %598 = arith.divf %597, %cst_189 : f32
    %cst_190 = arith.constant 2.000000e+00 : f32
    %599 = arith.divf %598, %cst_190 : f32
    %cst_191 = arith.constant 1.000000e+00 : f32
    %600 = arith.mulf %cst_191, %108 : f32
    %cst_192 = arith.constant 5.000000e+00 : f32
    %601 = arith.mulf %cst_192, %177 : f32
    %602 = arith.addf %600, %601 : f32
    %603 = arith.addf %602, %599 : f32
    %c0_193 = arith.constant 0 : index
    %c0_194 = arith.constant 0 : index
    %604 = memref.load %arg16[%c0_193, %c0_194] : memref<1x1xf32, #tpu.memory_space<smem>>
    memref.store %603, %arg16[%c0_193, %c0_194] : memref<1x1xf32, #tpu.memory_space<smem>>
    return
  }
}

</mosaic_0001>

<llo_original>
// kernel: two_stage_detector_forward.1
$region0: #{two_stage_detector_forward.1}
  #allocation0 [shape = 'u32[]', space=smem, size = 0x4, offset = 0x4, fixed_abs, tag = 'smem constant byte address 0x4 - core index']
  #allocation1 [shape = 'u32[144,128]{1,0:T(1,128)}', space=vmem, size = 0x12000, scoped, tag = 'internal scratch']
  %s0 = inlined_call_operand.vmem [shape: bf16[128,288], index: 0, kind: input, shape index: {}]
  %s1 = inlined_call_operand.vmem [shape: bf16[128,32], index: 1, kind: input, shape index: {}]
  %s2 = inlined_call_operand.vmem [shape: bf16[288,128], index: 2, kind: input, shape index: {}]
  %s3 = inlined_call_operand.vmem [shape: f32[1,128], index: 3, kind: input, shape index: {}]
  %s4 = inlined_call_operand.vmem [shape: bf16[128,128], index: 4, kind: input, shape index: {}]
  %s5 = inlined_call_operand.vmem [shape: f32[1,128], index: 5, kind: input, shape index: {}]
  %s6 = inlined_call_operand.vmem [shape: s32[32,1], index: 6, kind: input, shape index: {}]
  %s7 = inlined_call_operand.vmem [shape: s32[32,1], index: 7, kind: input, shape index: {}]
  %s8 = inlined_call_operand.vmem [shape: s32[16,1], index: 8, kind: input, shape index: {}]
  %s9 = inlined_call_operand.vmem [shape: s32[16,1], index: 9, kind: input, shape index: {}]
  %s10 = inlined_call_operand.vmem [shape: f32[16,4], index: 10, kind: input, shape index: {}]
  %s11 = inlined_call_operand.vmem [shape: f32[16,4], index: 11, kind: input, shape index: {}]
  %s12 = inlined_call_operand.vmem [shape: bf16[32,128], index: 12, kind: input, shape index: {}]
  %s13 = inlined_call_operand.vmem [shape: f32[1,128], index: 13, kind: input, shape index: {}]
  %s14 = inlined_call_operand.vmem [shape: bf16[128,128], index: 14, kind: input, shape index: {}]
  %s15 = inlined_call_operand.vmem [shape: f32[1,128], index: 15, kind: input, shape index: {}]
  %s16 = inlined_call_operand.hbm [shape: f32[1,1], index: 16, kind: output, shape index: {}]
  %s17 = sld [smem:[#allocation0]]
  $region74: #{two_stage_detector_forward.1} parent=0
    _
  %s19 = ssub.s32 1, %s17
  %s20 = scalar_select 0, %s19, %s17
  $region1: #{two_stage_detector_forward.1} parent=0
    #allocation2 [shape = 'u8[512]{0}', space=smem, size = 0x200, scoped, tag = 'output window, operand 0, single buffered']
    #allocation3 [shape = 's32[1]{0}', space=sflag, size = 0x4, scoped, tag = 'scoped memory for two_stage_detector_forward.1']
    %21 = vsyncpa [#allocation3], 0
    // Predicated region
    $region2: #{two_stage_detector_forward.1} parent=1 // pred_check
      _
    $region3: #{two_stage_detector_forward.1} parent=1 // pred_check_branch
      %23 = sbr.rel (0) target = $region5
    $region4: #{two_stage_detector_forward.1} parent=1 // pred_region
      _
    $region5: #{two_stage_detector_forward.1} parent=1 // pred_fallthru
      _
    // Predicated region
    $region6: #{two_stage_detector_forward.1} parent=1 // pred_check
      _
    $region7: #{two_stage_detector_forward.1} parent=1 // pred_check_branch
      %25 = sbr.rel (0) target = $region9
    $region8: #{two_stage_detector_forward.1} parent=1 // pred_region
      _
    $region9: #{two_stage_detector_forward.1} parent=1 // pred_fallthru
      _
    // Predicated region
    $region10: #{two_stage_detector_forward.1} parent=1 // pred_check
      _
    $region11: #{two_stage_detector_forward.1} parent=1 // pred_check_branch
      %27 = sbr.rel (0) target = $region13
    $region12: #{two_stage_detector_forward.1} parent=1 // pred_region
      _
    $region13: #{two_stage_detector_forward.1} parent=1 // pred_fallthru
      _
    // Predicated region
    $region14: #{two_stage_detector_forward.1} parent=1 // pred_check
      _
    $region15: #{two_stage_detector_forward.1} parent=1 // pred_check_branch
      %29 = sbr.rel (0) target = $region17
    $region16: #{two_stage_detector_forward.1} parent=1 // pred_region
      _
    $region17: #{two_stage_detector_forward.1} parent=1 // pred_fallthru
      _
    // Predicated region
    $region18: #{two_stage_detector_forward.1} parent=1 // pred_check
      _
    $region19: #{two_stage_detector_forward.1} parent=1 // pred_check_branch
      %31 = sbr.rel (0) target = $region21
    $region20: #{two_stage_detector_forward.1} parent=1 // pred_region
      _
    $region21: #{two_stage_detector_forward.1} parent=1 // pred_fallthru
      _
    // Predicated region
    $region22: #{two_stage_detector_forward.1} parent=1 // pred_check
      _
    $region23: #{two_stage_detector_forward.1} parent=1 // pred_check_branch
      %33 = sbr.rel (0) target = $region25
    $region24: #{two_stage_detector_forward.1} parent=1 // pred_region
      _
    $region25: #{two_stage_detector_forward.1} parent=1 // pred_fallthru
      _
    // Predicated region
    $region26: #{two_stage_detector_forward.1} parent=1 // pred_check
      _
    $region27: #{two_stage_detector_forward.1} parent=1 // pred_check_branch
      %35 = sbr.rel (0) target = $region29
    $region28: #{two_stage_detector_forward.1} parent=1 // pred_region
      _
    $region29: #{two_stage_detector_forward.1} parent=1 // pred_fallthru
      _
    // Predicated region
    $region30: #{two_stage_detector_forward.1} parent=1 // pred_check
      _
    $region31: #{two_stage_detector_forward.1} parent=1 // pred_check_branch
      %37 = sbr.rel (0) target = $region33
    $region32: #{two_stage_detector_forward.1} parent=1 // pred_region
      _
    $region33: #{two_stage_detector_forward.1} parent=1 // pred_fallthru
      _
    // Predicated region
    $region34: #{two_stage_detector_forward.1} parent=1 // pred_check
      _
    $region35: #{two_stage_detector_forward.1} parent=1 // pred_check_branch
      %39 = sbr.rel (0) target = $region37
    $region36: #{two_stage_detector_forward.1} parent=1 // pred_region
      _
    $region37: #{two_stage_detector_forward.1} parent=1 // pred_fallthru
      _
    // Predicated region
    $region38: #{two_stage_detector_forward.1} parent=1 // pred_check
      _
    $region39: #{two_stage_detector_forward.1} parent=1 // pred_check_branch
      %41 = sbr.rel (0) target = $region41
    $region40: #{two_stage_detector_forward.1} parent=1 // pred_region
      _
    $region41: #{two_stage_detector_forward.1} parent=1 // pred_fallthru
      _
    // Predicated region
    $region42: #{two_stage_detector_forward.1} parent=1 // pred_check
      _
    $region43: #{two_stage_detector_forward.1} parent=1 // pred_check_branch
      %43 = sbr.rel (0) target = $region45
    $region44: #{two_stage_detector_forward.1} parent=1 // pred_region
      _
    $region45: #{two_stage_detector_forward.1} parent=1 // pred_fallthru
      _
    // Predicated region
    $region46: #{two_stage_detector_forward.1} parent=1 // pred_check
      _
    $region47: #{two_stage_detector_forward.1} parent=1 // pred_check_branch
      %45 = sbr.rel (0) target = $region49
    $region48: #{two_stage_detector_forward.1} parent=1 // pred_region
      _
    $region49: #{two_stage_detector_forward.1} parent=1 // pred_fallthru
      _
    // Predicated region
    $region50: #{two_stage_detector_forward.1} parent=1 // pred_check
      _
    $region51: #{two_stage_detector_forward.1} parent=1 // pred_check_branch
      %47 = sbr.rel (0) target = $region53
    $region52: #{two_stage_detector_forward.1} parent=1 // pred_region
      _
    $region53: #{two_stage_detector_forward.1} parent=1 // pred_fallthru
      _
    // Predicated region
    $region54: #{two_stage_detector_forward.1} parent=1 // pred_check
      _
    $region55: #{two_stage_detector_forward.1} parent=1 // pred_check_branch
      %49 = sbr.rel (0) target = $region57
    $region56: #{two_stage_detector_forward.1} parent=1 // pred_region
      _
    $region57: #{two_stage_detector_forward.1} parent=1 // pred_fallthru
      _
    // Predicated region
    $region58: #{two_stage_detector_forward.1} parent=1 // pred_check
      _
    $region59: #{two_stage_detector_forward.1} parent=1 // pred_check_branch
      %51 = sbr.rel (0) target = $region61
    $region60: #{two_stage_detector_forward.1} parent=1 // pred_region
      _
    $region61: #{two_stage_detector_forward.1} parent=1 // pred_fallthru
      _
    // Predicated region
    $region62: #{two_stage_detector_forward.1} parent=1 // pred_check
      _
    $region63: #{two_stage_detector_forward.1} parent=1 // pred_check_branch
      %53 = sbr.rel (0) target = $region65
    $region64: #{two_stage_detector_forward.1} parent=1 // pred_region
      _
    $region65: #{two_stage_detector_forward.1} parent=1 // pred_fallthru
      _
    %v55 = vld [vmem:[%s0] sm:$0xff]
    %v56 = vld [vmem:[%s0 + $0x8] sm:$0xf]
    %v57 = vld [vmem:[%s0 + $0xc] sm:$0xff]
    %v58 = vld [vmem:[%s0 + $0x14] sm:$0xf]
    %v59 = vld [vmem:[%s0 + $0x18] sm:$0xff]
    %v60 = vld [vmem:[%s0 + $0x20] sm:$0xf]
    %v61 = vld [vmem:[%s0 + $0x24] sm:$0xff]
    %v62 = vld [vmem:[%s0 + $0x2c] sm:$0xf]
    %v63 = vld [vmem:[%s0 + $0x30] sm:$0xff]
    %v64 = vld [vmem:[%s0 + $0x38] sm:$0xf]
    %v65 = vld [vmem:[%s0 + $0x3c] sm:$0xff]
    %v66 = vld [vmem:[%s0 + $0x44] sm:$0xf]
    %v67 = vld [vmem:[%s0 + $0x48] sm:$0xff]
    %v68 = vld [vmem:[%s0 + $0x50] sm:$0xf]
    %v69 = vld [vmem:[%s0 + $0x54] sm:$0xff]
    %v70 = vld [vmem:[%s0 + $0x5c] sm:$0xf]
    %v71 = vld [vmem:[%s0 + $0x60] sm:$0xff]
    %v72 = vld [vmem:[%s0 + $0x68] sm:$0xf]
    %v73 = vld [vmem:[%s0 + $0x6c] sm:$0xff]
    %v74 = vld [vmem:[%s0 + $0x74] sm:$0xf]
    %v75 = vld [vmem:[%s0 + $0x78] sm:$0xff]
    %v76 = vld [vmem:[%s0 + $0x80] sm:$0xf]
    %v77 = vld [vmem:[%s0 + $0x84] sm:$0xff]
    %v78 = vld [vmem:[%s0 + $0x8c] sm:$0xf]
    %v79 = vld [vmem:[%s0 + $0x90] sm:$0xff]
    %v80 = vld [vmem:[%s0 + $0x98] sm:$0xf]
    %v81 = vld [vmem:[%s0 + $0x9c] sm:$0xff]
    %v82 = vld [vmem:[%s0 + $0xa4] sm:$0xf]
    %v83 = vld [vmem:[%s0 + $0xa8] sm:$0xff]
    %v84 = vld [vmem:[%s0 + $0xb0] sm:$0xf]
    %v85 = vld [vmem:[%s0 + $0xb4] sm:$0xff]
    %v86 = vld [vmem:[%s0 + $0xbc] sm:$0xf]
    %v87 = vld [vmem:[%s2] sm:$0xf]
    %v88 = vld [vmem:[%s2 + $0x4] sm:$0xf]
    %v89 = vld [vmem:[%s2 + $0x8] sm:$0xf]
    %v90 = vld [vmem:[%s2 + $0xc] sm:$0xf]
    %v91 = vld [vmem:[%s2 + $0x10] sm:$0xf]
    %v92 = vld [vmem:[%s2 + $0x14] sm:$0xf]
    %v93 = vld [vmem:[%s2 + $0x18] sm:$0xf]
    %v94 = vld [vmem:[%s2 + $0x1c] sm:$0xf]
    %v95 = vld [vmem:[%s2 + $0x20] sm:$0xf]
    %v96 = vld [vmem:[%s2 + $0x24] sm:$0xf]
    %v97 = vld [vmem:[%s2 + $0x28] sm:$0xf]
    %v98 = vld [vmem:[%s2 + $0x2c] sm:$0xf]
    %v99 = vld [vmem:[%s2 + $0x30] sm:$0xf]
    %v100 = vld [vmem:[%s2 + $0x34] sm:$0xf]
    %v101 = vld [vmem:[%s2 + $0x38] sm:$0xf]
    %v102 = vld [vmem:[%s2 + $0x3c] sm:$0xf]
    %v103 = vld [vmem:[%s2 + $0x40] sm:$0xf]
    %v104 = vld [vmem:[%s2 + $0x44] sm:$0xf]
    %v105 = vld [vmem:[%s2 + $0x48] sm:$0xf]
    %v106 = vld [vmem:[%s2 + $0x4c] sm:$0xf]
    %v107 = vld [vmem:[%s2 + $0x50] sm:$0xf]
    %v108 = vld [vmem:[%s2 + $0x54] sm:$0xf]
    %v109 = vld [vmem:[%s2 + $0x58] sm:$0xf]
    %v110 = vld [vmem:[%s2 + $0x5c] sm:$0xf]
    %v111 = vld [vmem:[%s2 + $0x60] sm:$0xf]
    %v112 = vld [vmem:[%s2 + $0x64] sm:$0xf]
    %v113 = vld [vmem:[%s2 + $0x68] sm:$0xf]
    %v114 = vld [vmem:[%s2 + $0x6c] sm:$0xf]
    %v115 = vld [vmem:[%s2 + $0x70] sm:$0xf]
    %v116 = vld [vmem:[%s2 + $0x74] sm:$0xf]
    %v117 = vld [vmem:[%s2 + $0x78] sm:$0xf]
    %v118 = vld [vmem:[%s2 + $0x7c] sm:$0xf]
    %v119 = vld [vmem:[%s2 + $0x80] sm:$0xf]
    %v120 = vld [vmem:[%s2 + $0x84] sm:$0xf]
    %v121 = vld [vmem:[%s2 + $0x88] sm:$0xf]
    %v122 = vld [vmem:[%s2 + $0x8c] sm:$0xf]
    %v123 = vld [vmem:[%s3] sm:$0x1]
    %v125 = vlaneseq
    %v126 = vshrl.u32 %v125, 7
    %v127 = vsub.s32 0, %v126
    %v128 = vrot.slane %v123, %v127
    %v162 = vunpack.c.l.b16 %v55
    %v163 = vunpack.c.h.b16 %v55
    %v164 = vunpack.c.l.b16 %v56
    %v165 = vunpack.c.l.b16 %v57
    %v166 = vunpack.c.h.b16 %v57
    %v167 = vunpack.c.l.b16 %v58
    %v168 = vunpack.c.l.b16 %v59
    %v169 = vunpack.c.h.b16 %v59
    %v170 = vunpack.c.l.b16 %v60
    %v171 = vunpack.c.l.b16 %v61
    %v172 = vunpack.c.h.b16 %v61
    %v173 = vunpack.c.l.b16 %v62
    %v174 = vunpack.c.l.b16 %v63
    %v175 = vunpack.c.h.b16 %v63
    %v176 = vunpack.c.l.b16 %v64
    %v177 = vunpack.c.l.b16 %v65
    %v178 = vunpack.c.h.b16 %v65
    %v179 = vunpack.c.l.b16 %v66
    %v180 = vunpack.c.l.b16 %v67
    %v181 = vunpack.c.h.b16 %v67
    %v182 = vunpack.c.l.b16 %v68
    %v183 = vunpack.c.l.b16 %v69
    %v184 = vunpack.c.h.b16 %v69
    %v185 = vunpack.c.l.b16 %v70
    %v186 = vunpack.c.l.b16 %v71
    %v187 = vunpack.c.h.b16 %v71
    %v188 = vunpack.c.l.b16 %v72
    %v189 = vunpack.c.l.b16 %v73
    %v190 = vunpack.c.h.b16 %v73
    %v191 = vunpack.c.l.b16 %v74
    %v192 = vunpack.c.l.b16 %v75
    %v193 = vunpack.c.h.b16 %v75
    %v194 = vunpack.c.l.b16 %v76
    %v195 = vunpack.c.l.b16 %v77
    %v196 = vunpack.c.h.b16 %v77
    %v197 = vunpack.c.l.b16 %v78
    %v198 = vunpack.c.l.b16 %v79
    %v199 = vunpack.c.h.b16 %v79
    %v200 = vunpack.c.l.b16 %v80
    %v201 = vunpack.c.l.b16 %v81
    %v202 = vunpack.c.h.b16 %v81
    %v203 = vunpack.c.l.b16 %v82
    %v204 = vunpack.c.l.b16 %v83
    %v205 = vunpack.c.h.b16 %v83
    %v206 = vunpack.c.l.b16 %v84
    %v207 = vunpack.c.l.b16 %v85
    %v208 = vunpack.c.h.b16 %v85
    %v209 = vunpack.c.l.b16 %v86
    %v210 = vpack.c.b16 %v165, %v162
    %v211 = vpack.c.b16 %v166, %v163
    %v212 = vpack.c.b16 %v167, %v164
    %v213 = vpack.c.b16 %v171, %v168
    %v214 = vpack.c.b16 %v172, %v169
    %v215 = vpack.c.b16 %v173, %v170
    %v216 = vpack.c.b16 %v177, %v174
    %v217 = vpack.c.b16 %v178, %v175
    %v218 = vpack.c.b16 %v179, %v176
    %v219 = vpack.c.b16 %v183, %v180
    %v220 = vpack.c.b16 %v184, %v181
    %v221 = vpack.c.b16 %v185, %v182
    %v222 = vpack.c.b16 %v189, %v186
    %v223 = vpack.c.b16 %v190, %v187
    %v224 = vpack.c.b16 %v191, %v188
    %v225 = vpack.c.b16 %v195, %v192
    %v226 = vpack.c.b16 %v196, %v193
    %v227 = vpack.c.b16 %v197, %v194
    %v228 = vpack.c.b16 %v201, %v198
    %v229 = vpack.c.b16 %v202, %v199
    %v230 = vpack.c.b16 %v203, %v200
    %v231 = vpack.c.b16 %v207, %v204
    %v232 = vpack.c.b16 %v208, %v205
    %v233 = vpack.c.b16 %v209, %v206
    %v286 = vunpack.c.l.b16 %v87
    %v287 = vunpack.c.l.b16 %v88
    %v288 = vunpack.c.l.b16 %v89
    %v289 = vunpack.c.l.b16 %v90
    %v290 = vunpack.c.l.b16 %v91
    %v291 = vunpack.c.l.b16 %v92
    %v292 = vunpack.c.l.b16 %v93
    %v293 = vunpack.c.l.b16 %v94
    %v294 = vunpack.c.l.b16 %v95
    %v295 = vunpack.c.l.b16 %v96
    %v296 = vunpack.c.l.b16 %v97
    %v297 = vunpack.c.l.b16 %v98
    %v298 = vunpack.c.l.b16 %v99
    %v299 = vunpack.c.l.b16 %v100
    %v300 = vunpack.c.l.b16 %v101
    %v301 = vunpack.c.l.b16 %v102
    %v302 = vunpack.c.l.b16 %v103
    %v303 = vunpack.c.l.b16 %v104
    %v304 = vunpack.c.l.b16 %v105
    %v305 = vunpack.c.l.b16 %v106
    %v306 = vunpack.c.l.b16 %v107
    %v307 = vunpack.c.l.b16 %v108
    %v308 = vunpack.c.l.b16 %v109
    %v309 = vunpack.c.l.b16 %v110
    %v310 = vunpack.c.l.b16 %v111
    %v311 = vunpack.c.l.b16 %v112
    %v312 = vunpack.c.l.b16 %v113
    %v313 = vunpack.c.l.b16 %v114
    %v314 = vunpack.c.l.b16 %v115
    %v315 = vunpack.c.l.b16 %v116
    %v316 = vunpack.c.l.b16 %v117
    %v317 = vunpack.c.l.b16 %v118
    %v318 = vunpack.c.l.b16 %v119
    %v319 = vunpack.c.l.b16 %v120
    %v320 = vunpack.c.l.b16 %v121
    %v321 = vunpack.c.l.b16 %v122
    %v322 = vpack.c.b16 %v287, %v286
    %v323 = vpack.c.b16 %v289, %v288
    %v324 = vpack.c.b16 %v291, %v290
    %v325 = vpack.c.b16 %v293, %v292
    %v326 = vpack.c.b16 %v295, %v294
    %v327 = vpack.c.b16 %v297, %v296
    %v328 = vpack.c.b16 %v299, %v298
    %v329 = vpack.c.b16 %v301, %v300
    %v330 = vpack.c.b16 %v303, %v302
    %v331 = vpack.c.b16 %v305, %v304
    %v332 = vpack.c.b16 %v307, %v306
    %v333 = vpack.c.b16 %v309, %v308
    %v334 = vpack.c.b16 %v311, %v310
    %v335 = vpack.c.b16 %v313, %v312
    %v336 = vpack.c.b16 %v315, %v314
    %v337 = vpack.c.b16 %v317, %v316
    %v338 = vpack.c.b16 %v319, %v318
    %v339 = vpack.c.b16 %v321, %v320
    %vm358 = vcmask 261120
    %v360 = vsel %vm358, %v212, 0
    %v363 = vsel %vm358, %v215, 0
    %v366 = vsel %vm358, %v218, 0
    %v369 = vsel %vm358, %v221, 0
    %v372 = vsel %vm358, %v224, 0
    %v375 = vsel %vm358, %v227, 0
    %v378 = vsel %vm358, %v230, 0
    %v381 = vsel %vm358, %v233, 0
    %383 = vmatprep.subr.bf16.mxu0 0
    %384 = vmatpush1.bf16.msra.mxu0 %v322
    %385 = vmatprep.subr.bf16.mxu0 0
    %386 = vmatpush1.bf16.msra.mxu0 %v323
    %387 = vmatprep.subr.bf16.mxu0 0
    %388 = vmatpush1.bf16.msra.mxu0 %v324
    %389 = vmatprep.subr.bf16.mxu0 0
    %390 = vmatpush1.bf16.msra.mxu0 %v325
    %391 = vmatprep.subr.bf16.mxu0 0
    %392 = vmatpush1.bf16.msra.mxu0 %v326
    %393 = vmatprep.subr.bf16.mxu0 0
    %394 = vmatpush1.bf16.msra.mxu0 %v327
    %395 = vmatprep.subr.bf16.mxu0 0
    %396 = vmatpush1.bf16.msra.mxu0 %v328
    %397 = vmatprep.subr.bf16.mxu0 0
    %398 = vmatpush1.bf16.msra.mxu0 %v329
    %399 = vmatprep.subr.bf16.mxu0 0
    %400 = vmatpush1.bf16.msra.mxu0 %v330
    %401 = vmatprep.subr.bf16.mxu0 0
    %402 = vmatpush1.bf16.msra.mxu0 %v331
    %403 = vmatprep.subr.bf16.mxu0 0
    %404 = vmatpush1.bf16.msra.mxu0 %v332
    %405 = vmatprep.subr.bf16.mxu0 0
    %406 = vmatpush1.bf16.msra.mxu0 %v333
    %407 = vmatprep.subr.bf16.mxu0 0
    %408 = vmatpush1.bf16.msra.mxu0 %v334
    %409 = vmatprep.subr.bf16.mxu0 0
    %410 = vmatpush1.bf16.msra.mxu0 %v335
    %411 = vmatprep.subr.bf16.mxu0 0
    %412 = vmatpush1.bf16.msra.mxu0 %v336
    %413 = vmatprep.subr.bf16.mxu0 0
    %414 = vmatpush1.bf16.msra.mxu0 %v337
    %415 = vmatprep.mubr.bf16.mxu0 %v211
    %416 = vmatmul.mubr.bf16.gmra.mrb[0].mxu0 %v210
    %v417 = vpop.f32.mrb[0].mxu0
    %v418 = vadd.f32 %v128, %v417
    %v419 = vpop.f32.mrb[0].mxu0
    %v420 = vpop.f32.mrb[0].mxu0
    %v421 = vadd.f32 %v128, %v420
    %v422 = vpop.f32.mrb[0].mxu0
    %423 = vmatprep.mubr.bf16.mxu0 %v214
    %424 = vmatmul.mubr.bf16.gmra.mrb[0].mxu0 %v213
    %v425 = vpop.f32.mrb[0].mxu0
    %v426 = vadd.f32 %v128, %v425
    %v427 = vpop.f32.mrb[0].mxu0
    %v428 = vpop.f32.mrb[0].mxu0
    %v429 = vadd.f32 %v128, %v428
    %v430 = vpop.f32.mrb[0].mxu0
    %431 = vmatprep.mubr.bf16.mxu0 %v217
    %432 = vmatmul.mubr.bf16.gmra.mrb[0].mxu0 %v216
    %v433 = vpop.f32.mrb[0].mxu0
    %v434 = vadd.f32 %v128, %v433
    %v435 = vpop.f32.mrb[0].mxu0
    %v436 = vpop.f32.mrb[0].mxu0
    %v437 = vadd.f32 %v128, %v436
    %v438 = vpop.f32.mrb[0].mxu0
    %439 = vmatprep.mubr.bf16.mxu0 %v220
    %440 = vmatmul.mubr.bf16.gmra.mrb[0].mxu0 %v219
    %v441 = vpop.f32.mrb[0].mxu0
    %v442 = vadd.f32 %v128, %v441
    %v443 = vpop.f32.mrb[0].mxu0
    %v444 = vpop.f32.mrb[0].mxu0
    %v445 = vadd.f32 %v128, %v444
    %v446 = vpop.f32.mrb[0].mxu0
    %447 = vmatprep.mubr.bf16.mxu0 %v223
    %448 = vmatmul.mubr.bf16.gmra.mrb[0].mxu0 %v222
    %v449 = vpop.f32.mrb[0].mxu0
    %v450 = vadd.f32 %v128, %v449
    %v451 = vpop.f32.mrb[0].mxu0
    %v452 = vpop.f32.mrb[0].mxu0
    %v453 = vadd.f32 %v128, %v452
    %v454 = vpop.f32.mrb[0].mxu0
    %455 = vmatprep.mubr.bf16.mxu0 %v226
    %456 = vmatmul.mubr.bf16.gmra.mrb[0].mxu0 %v225
    %v457 = vpop.f32.mrb[0].mxu0
    %v458 = vadd.f32 %v128, %v457
    %v459 = vpop.f32.mrb[0].mxu0
    %v460 = vpop.f32.mrb[0].mxu0
    %v461 = vadd.f32 %v128, %v460
    %v462 = vpop.f32.mrb[0].mxu0
    %463 = vmatprep.mubr.bf16.mxu0 %v229
    %464 = vmatmul.mubr.bf16.gmra.mrb[0].mxu0 %v228
    %v465 = vpop.f32.mrb[0].mxu0
    %v466 = vadd.f32 %v128, %v465
    %v467 = vpop.f32.mrb[0].mxu0
    %v468 = vpop.f32.mrb[0].mxu0
    %v469 = vadd.f32 %v128, %v468
    %v470 = vpop.f32.mrb[0].mxu0
    %471 = vmatprep.mubr.bf16.mxu0 %v232
    %472 = vmatmul.mubr.bf16.gmra.mrb[0].mxu0 %v231
    %v473 = vpop.f32.mrb[0].mxu0
    %v474 = vadd.f32 %v128, %v473
    %v475 = vpop.f32.mrb[0].mxu0
    %v476 = vpop.f32.mrb[0].mxu0
    %v477 = vadd.f32 %v128, %v476
    %v478 = vpop.f32.mrb[0].mxu0
    %479 = vdwg.mxu0
    %480 = vmatprep.subr.bf16.mxu0 0
    %481 = vmatpush1.bf16.msra.mxu0 %v338
    %482 = vmatprep.subr.bf16.mxu0 0
    %483 = vmatpush1.bf16.msra.mxu0 %v339
    %484 = vmatprep.subr.bf16.mxu0 0
    %485 = vmatpush1.bf16.msra.mxu0 0
    %486 = vmatprep.subr.bf16.mxu0 0
    %487 = vmatpush1.bf16.msra.mxu0 0
    %488 = vmatprep.subr.bf16.mxu0 0
    %489 = vmatpush1.bf16.msra.mxu0 0
    %490 = vmatprep.subr.bf16.mxu0 0
    %491 = vmatpush1.bf16.msra.mxu0 0
    %492 = vmatprep.subr.bf16.mxu0 0
    %493 = vmatpush1.bf16.msra.mxu0 0
    %494 = vmatprep.subr.bf16.mxu0 0
    %495 = vmatpush1.bf16.msra.mxu0 0
    %496 = vmatprep.subr.bf16.mxu0 0
    %497 = vmatpush1.bf16.msra.mxu0 0
    %498 = vmatprep.subr.bf16.mxu0 0
    %499 = vmatpush1.bf16.msra.mxu0 0
    %500 = vmatprep.subr.bf16.mxu0 0
    %501 = vmatpush1.bf16.msra.mxu0 0
    %502 = vmatprep.subr.bf16.mxu0 0
    %503 = vmatpush1.bf16.msra.mxu0 0
    %504 = vmatprep.subr.bf16.mxu0 0
    %505 = vmatpush1.bf16.msra.mxu0 0
    %506 = vmatprep.subr.bf16.mxu0 0
    %507 = vmatpush1.bf16.msra.mxu0 0
    %508 = vmatprep.subr.bf16.mxu0 0
    %509 = vmatpush1.bf16.msra.mxu0 0
    %510 = vmatprep.subr.bf16.mxu0 0
    %511 = vmatpush1.bf16.msra.mxu0 0
    %512 = vmatprep.mubr.bf16.mxu0 0
    %513 = vmatmul.mubr.bf16.gmra.mrb[0].mxu0 %v360
    %v514 = vpop.f32.mrb[0].mxu0
    %v515 = vadd.f32 %v418, %v514
    %v516 = vpop.f32.mrb[0].mxu0
    %v517 = vpop.f32.mrb[0].mxu0
    %v518 = vadd.f32 %v421, %v517
    %v519 = vpop.f32.mrb[0].mxu0
    %520 = vmatprep.mubr.bf16.mxu0 0
    %521 = vmatmul.mubr.bf16.gmra.mrb[0].mxu0 %v363
    %v522 = vpop.f32.mrb[0].mxu0
    %v523 = vadd.f32 %v426, %v522
    %v524 = vpop.f32.mrb[0].mxu0
    %v525 = vpop.f32.mrb[0].mxu0
    %v526 = vadd.f32 %v429, %v525
    %v527 = vpop.f32.mrb[0].mxu0
    %528 = vmatprep.mubr.bf16.mxu0 0
    %529 = vmatmul.mubr.bf16.gmra.mrb[0].mxu0 %v366
    %v530 = vpop.f32.mrb[0].mxu0
    %v531 = vadd.f32 %v434, %v530
    %v532 = vpop.f32.mrb[0].mxu0
    %v533 = vpop.f32.mrb[0].mxu0
    %v534 = vadd.f32 %v437, %v533
    %v535 = vpop.f32.mrb[0].mxu0
    %536 = vmatprep.mubr.bf16.mxu0 0
    %537 = vmatmul.mubr.bf16.gmra.mrb[0].mxu0 %v369
    %v538 = vpop.f32.mrb[0].mxu0
    %v539 = vadd.f32 %v442, %v538
    %v540 = vpop.f32.mrb[0].mxu0
    %v541 = vpop.f32.mrb[0].mxu0
    %v542 = vadd.f32 %v445, %v541
    %v543 = vpop.f32.mrb[0].mxu0
    %544 = vmatprep.mubr.bf16.mxu0 0
    %545 = vmatmul.mubr.bf16.gmra.mrb[0].mxu0 %v372
    %v546 = vpop.f32.mrb[0].mxu0
    %v547 = vadd.f32 %v450, %v546
    %v548 = vpop.f32.mrb[0].mxu0
    %v549 = vpop.f32.mrb[0].mxu0
    %v550 = vadd.f32 %v453, %v549
    %v551 = vpop.f32.mrb[0].mxu0
    %552 = vmatprep.mubr.bf16.mxu0 0
    %553 = vmatmul.mubr.bf16.gmra.mrb[0].mxu0 %v375
    %v554 = vpop.f32.mrb[0].mxu0
    %v555 = vadd.f32 %v458, %v554
    %v556 = vpop.f32.mrb[0].mxu0
    %v557 = vpop.f32.mrb[0].mxu0
    %v558 = vadd.f32 %v461, %v557
    %v559 = vpop.f32.mrb[0].mxu0
    %560 = vmatprep.mubr.bf16.mxu0 0
    %561 = vmatmul.mubr.bf16.gmra.mrb[0].mxu0 %v378
    %v562 = vpop.f32.mrb[0].mxu0
    %v563 = vadd.f32 %v466, %v562
    %v564 = vpop.f32.mrb[0].mxu0
    %v565 = vpop.f32.mrb[0].mxu0
    %v566 = vadd.f32 %v469, %v565
    %v567 = vpop.f32.mrb[0].mxu0
    %568 = vmatprep.mubr.bf16.mxu0 0
    %569 = vmatmul.mubr.bf16.gmra.mrb[0].mxu0 %v381
    %v570 = vpop.f32.mrb[0].mxu0
    %v571 = vadd.f32 %v474, %v570
    %v572 = vpop.f32.mrb[0].mxu0
    %v573 = vpop.f32.mrb[0].mxu0
    %v574 = vadd.f32 %v477, %v573
    %v575 = vpop.f32.mrb[0].mxu0
    %576 = vdwg.mxu0
    %v577 = vmul.f32 %v515, 0.01
    %v578 = vmul.f32 %v518, 0.01
    %v579 = vmul.f32 %v523, 0.01
    %v580 = vmul.f32 %v526, 0.01
    %v581 = vmul.f32 %v531, 0.01
    %v582 = vmul.f32 %v534, 0.01
    %v583 = vmul.f32 %v539, 0.01
    %v584 = vmul.f32 %v542, 0.01
    %v585 = vmul.f32 %v547, 0.01
    %v586 = vmul.f32 %v550, 0.01
    %v587 = vmul.f32 %v555, 0.01
    %v588 = vmul.f32 %v558, 0.01
    %v589 = vmul.f32 %v563, 0.01
    %v590 = vmul.f32 %v566, 0.01
    %v591 = vmul.f32 %v571, 0.01
    %v592 = vmul.f32 %v574, 0.01
    %v593 = vmax.f32 %v515, %v577
    %v594 = vmax.f32 %v518, %v578
    %v595 = vmax.f32 %v523, %v579
    %v596 = vmax.f32 %v526, %v580
    %v597 = vmax.f32 %v531, %v581
    %v598 = vmax.f32 %v534, %v582
    %v599 = vmax.f32 %v539, %v583
    %v600 = vmax.f32 %v542, %v584
    %v601 = vmax.f32 %v547, %v585
    %v602 = vmax.f32 %v550, %v586
    %v603 = vmax.f32 %v555, %v587
    %v604 = vmax.f32 %v558, %v588
    %v605 = vmax.f32 %v563, %v589
    %v606 = vmax.f32 %v566, %v590
    %v607 = vmax.f32 %v571, %v591
    %v608 = vmax.f32 %v574, %v592
    %v609 = vpack.c.bf16 %v594, %v593
    %v610 = vpack.c.bf16 %v596, %v595
    %v611 = vpack.c.bf16 %v598, %v597
    %v612 = vpack.c.bf16 %v600, %v599
    %v613 = vpack.c.bf16 %v602, %v601
    %v614 = vpack.c.bf16 %v604, %v603
    %v615 = vpack.c.bf16 %v606, %v605
    %v616 = vpack.c.bf16 %v608, %v607
    %v617 = vld [vmem:[%s4] sm:$0xf]
    %v618 = vld [vmem:[%s4 + $0x4] sm:$0xf]
    %v619 = vld [vmem:[%s4 + $0x8] sm:$0xf]
    %v620 = vld [vmem:[%s4 + $0xc] sm:$0xf]
    %v621 = vld [vmem:[%s4 + $0x10] sm:$0xf]
    %v622 = vld [vmem:[%s4 + $0x14] sm:$0xf]
    %v623 = vld [vmem:[%s4 + $0x18] sm:$0xf]
    %v624 = vld [vmem:[%s4 + $0x1c] sm:$0xf]
    %v625 = vld [vmem:[%s4 + $0x20] sm:$0xf]
    %v626 = vld [vmem:[%s4 + $0x24] sm:$0xf]
    %v627 = vld [vmem:[%s4 + $0x28] sm:$0xf]
    %v628 = vld [vmem:[%s4 + $0x2c] sm:$0xf]
    %v629 = vld [vmem:[%s4 + $0x30] sm:$0xf]
    %v630 = vld [vmem:[%s4 + $0x34] sm:$0xf]
    %v631 = vld [vmem:[%s4 + $0x38] sm:$0xf]
    %v632 = vld [vmem:[%s4 + $0x3c] sm:$0xf]
    %v633 = vld [vmem:[%s5] sm:$0x1]
    %v635 = vlaneseq
    %v636 = vshrl.u32 %v635, 7
    %v637 = vsub.s32 0, %v636
    %v638 = vrot.slane %v633, %v637
    %v656 = vunpack.c.l.b16 %v617
    %v657 = vunpack.c.l.b16 %v618
    %v658 = vunpack.c.l.b16 %v619
    %v659 = vunpack.c.l.b16 %v620
    %v660 = vunpack.c.l.b16 %v621
    %v661 = vunpack.c.l.b16 %v622
    %v662 = vunpack.c.l.b16 %v623
    %v663 = vunpack.c.l.b16 %v624
    %v664 = vunpack.c.l.b16 %v625
    %v665 = vunpack.c.l.b16 %v626
    %v666 = vunpack.c.l.b16 %v627
    %v667 = vunpack.c.l.b16 %v628
    %v668 = vunpack.c.l.b16 %v629
    %v669 = vunpack.c.l.b16 %v630
    %v670 = vunpack.c.l.b16 %v631
    %v671 = vunpack.c.l.b16 %v632
    %v672 = vpack.c.b16 %v657, %v656
    %v673 = vpack.c.b16 %v659, %v658
    %v674 = vpack.c.b16 %v661, %v660
    %v675 = vpack.c.b16 %v663, %v662
    %v676 = vpack.c.b16 %v665, %v664
    %v677 = vpack.c.b16 %v667, %v666
    %v678 = vpack.c.b16 %v669, %v668
    %v679 = vpack.c.b16 %v671, %v670
    %688 = vmatprep.subr.bf16.mxu0 0
    %689 = vmatpush1.bf16.msra.mxu0 %v672
    %690 = vmatprep.subr.bf16.mxu0 0
    %691 = vmatpush1.bf16.msra.mxu0 %v673
    %692 = vmatprep.subr.bf16.mxu0 0
    %693 = vmatpush1.bf16.msra.mxu0 %v674
    %694 = vmatprep.subr.bf16.mxu0 0
    %695 = vmatpush1.bf16.msra.mxu0 %v675
    %696 = vmatprep.subr.bf16.mxu0 0
    %697 = vmatpush1.bf16.msra.mxu0 %v676
    %698 = vmatprep.subr.bf16.mxu0 0
    %699 = vmatpush1.bf16.msra.mxu0 %v677
    %700 = vmatprep.subr.bf16.mxu0 0
    %701 = vmatpush1.bf16.msra.mxu0 %v678
    %702 = vmatprep.subr.bf16.mxu0 0
    %703 = vmatpush1.bf16.msra.mxu0 %v679
    %704 = vmatprep.subr.bf16.mxu0 0
    %705 = vmatpush1.bf16.msra.mxu0 0
    %706 = vmatprep.subr.bf16.mxu0 0
    %707 = vmatpush1.bf16.msra.mxu0 0
    %708 = vmatprep.subr.bf16.mxu0 0
    %709 = vmatpush1.bf16.msra.mxu0 0
    %710 = vmatprep.subr.bf16.mxu0 0
    %711 = vmatpush1.bf16.msra.mxu0 0
    %712 = vmatprep.subr.bf16.mxu0 0
    %713 = vmatpush1.bf16.msra.mxu0 0
    %714 = vmatprep.subr.bf16.mxu0 0
    %715 = vmatpush1.bf16.msra.mxu0 0
    %716 = vmatprep.subr.bf16.mxu0 0
    %717 = vmatpush1.bf16.msra.mxu0 0
    %718 = vmatprep.subr.bf16.mxu0 0
    %719 = vmatpush1.bf16.msra.mxu0 0
    %720 = vmatprep.mubr.bf16.mxu0 0
    %721 = vmatmul.mubr.bf16.gmra.mrb[0].mxu0 %v609
    %v722 = vpop.f32.mrb[0].mxu0
    %v723 = vadd.f32 %v638, %v722
    %v724 = vpop.f32.mrb[0].mxu0
    %v725 = vpop.f32.mrb[0].mxu0
    %v726 = vadd.f32 %v638, %v725
    %v727 = vpop.f32.mrb[0].mxu0
    %728 = vmatprep.mubr.bf16.mxu0 0
    %729 = vmatmul.mubr.bf16.gmra.mrb[0].mxu0 %v610
    %v730 = vpop.f32.mrb[0].mxu0
    %v731 = vadd.f32 %v638, %v730
    %v732 = vpop.f32.mrb[0].mxu0
    %v733 = vpop.f32.mrb[0].mxu0
    %v734 = vadd.f32 %v638, %v733
    %v735 = vpop.f32.mrb[0].mxu0
    %736 = vmatprep.mubr.bf16.mxu0 0
    %737 = vmatmul.mubr.bf16.gmra.mrb[0].mxu0 %v611
    %v738 = vpop.f32.mrb[0].mxu0
    %v739 = vadd.f32 %v638, %v738
    %v740 = vpop.f32.mrb[0].mxu0
    %v741 = vpop.f32.mrb[0].mxu0
    %v742 = vadd.f32 %v638, %v741
    %v743 = vpop.f32.mrb[0].mxu0
    %744 = vmatprep.mubr.bf16.mxu0 0
    %745 = vmatmul.mubr.bf16.gmra.mrb[0].mxu0 %v612
    %v746 = vpop.f32.mrb[0].mxu0
    %v747 = vadd.f32 %v638, %v746
    %v748 = vpop.f32.mrb[0].mxu0
    %v749 = vpop.f32.mrb[0].mxu0
    %v750 = vadd.f32 %v638, %v749
    %v751 = vpop.f32.mrb[0].mxu0
    %752 = vmatprep.mubr.bf16.mxu0 0
    %753 = vmatmul.mubr.bf16.gmra.mrb[0].mxu0 %v613
    %v754 = vpop.f32.mrb[0].mxu0
    %v755 = vadd.f32 %v638, %v754
    %v756 = vpop.f32.mrb[0].mxu0
    %v757 = vpop.f32.mrb[0].mxu0
    %v758 = vadd.f32 %v638, %v757
    %v759 = vpop.f32.mrb[0].mxu0
    %760 = vmatprep.mubr.bf16.mxu0 0
    %761 = vmatmul.mubr.bf16.gmra.mrb[0].mxu0 %v614
    %v762 = vpop.f32.mrb[0].mxu0
    %v763 = vadd.f32 %v638, %v762
    %v764 = vpop.f32.mrb[0].mxu0
    %v765 = vpop.f32.mrb[0].mxu0
    %v766 = vadd.f32 %v638, %v765
    %v767 = vpop.f32.mrb[0].mxu0
    %768 = vmatprep.mubr.bf16.mxu0 0
    %769 = vmatmul.mubr.bf16.gmra.mrb[0].mxu0 %v615
    %v770 = vpop.f32.mrb[0].mxu0
    %v771 = vadd.f32 %v638, %v770
    %v772 = vpop.f32.mrb[0].mxu0
    %v773 = vpop.f32.mrb[0].mxu0
    %v774 = vadd.f32 %v638, %v773
    %v775 = vpop.f32.mrb[0].mxu0
    %776 = vmatprep.mubr.bf16.mxu0 0
    %777 = vmatmul.mubr.bf16.gmra.mrb[0].mxu0 %v616
    %v778 = vpop.f32.mrb[0].mxu0
    %v779 = vadd.f32 %v638, %v778
    %v780 = vpop.f32.mrb[0].mxu0
    %v781 = vpop.f32.mrb[0].mxu0
    %v782 = vadd.f32 %v638, %v781
    %v783 = vpop.f32.mrb[0].mxu0
    %784 = vdwg.mxu0
    %v785 = vld [vmem:[%s6] sm:$0xff]
    %v786 = vld [vmem:[%s6 + $0x8] sm:$0xff]
    %v787 = vld [vmem:[%s6 + $0x10] sm:$0xff]
    %v788 = vld [vmem:[%s6 + $0x18] sm:$0xff]
    %v789 = vlaneseq
    %v790 = vand.u32 %v789, 127
    %791 = vset.pattern.permute.xlu0 0
    %792 = vperm.xlu0 %791, %v785
    %v793 = vpop.permute.xlu0 %792
    %794 = vset.pattern.permute.xlu0 0
    %795 = vperm.xlu0 %794, %v786
    %v796 = vpop.permute.xlu0 %795
    %797 = vset.pattern.permute.xlu0 0
    %798 = vperm.xlu0 %797, %v787
    %v799 = vpop.permute.xlu0 %798
    %800 = vset.pattern.permute.xlu0 0
    %801 = vperm.xlu0 %800, %v788
    %v802 = vpop.permute.xlu0 %801
    %vm803 = vcmp.eq.s32.totalorder %v790, %v793
    %vm804 = vcmp.eq.s32.totalorder %v790, %v796
    %vm805 = vcmp.eq.s32.totalorder %v790, %v799
    %vm806 = vcmp.eq.s32.totalorder %v790, %v802
    %v807 = vsel %vm803, 1, 0
    %v808 = vsel %vm804, 1, 0
    %v809 = vsel %vm805, 1, 0
    %v810 = vsel %vm806, 1, 0
    %v811 = vcvt.s32.f32 %v807
    %v812 = vcvt.s32.f32 %v808
    %v813 = vcvt.s32.f32 %v809
    %v814 = vcvt.s32.f32 %v810
    %815 = vmatprep.subr.mxu0 0.0
    %816 = vmatpush1.msra.mxu0 %v723
    %817 = vmatprep.subr.mxu0 0.0
    %818 = vmatpush1.msra.mxu0 %v726
    %819 = vmatprep.subr.mxu0 0.0
    %820 = vmatpush1.msra.mxu0 %v731
    %821 = vmatprep.subr.mxu0 0.0
    %822 = vmatpush1.msra.mxu0 %v734
    %823 = vmatprep.subr.mxu0 0.0
    %824 = vmatpush1.msra.mxu0 %v739
    %825 = vmatprep.subr.mxu0 0.0
    %826 = vmatpush1.msra.mxu0 %v742
    %827 = vmatprep.subr.mxu0 0.0
    %828 = vmatpush1.msra.mxu0 %v747
    %829 = vmatprep.subr.mxu0 0.0
    %830 = vmatpush1.msra.mxu0 %v750
    %831 = vmatprep.subr.mxu0 0.0
    %832 = vmatpush1.msra.mxu0 %v755
    %833 = vmatprep.subr.mxu0 0.0
    %834 = vmatpush1.msra.mxu0 %v758
    %835 = vmatprep.subr.mxu0 0.0
    %836 = vmatpush1.msra.mxu0 %v763
    %837 = vmatprep.subr.mxu0 0.0
    %838 = vmatpush1.msra.mxu0 %v766
    %839 = vmatprep.subr.mxu0 0.0
    %840 = vmatpush1.msra.mxu0 %v771
    %841 = vmatprep.subr.mxu0 0.0
    %842 = vmatpush1.msra.mxu0 %v774
    %843 = vmatprep.subr.mxu0 0.0
    %844 = vmatpush1.msra.mxu0 %v779
    %845 = vmatprep.subr.mxu0 0.0
    %846 = vmatpush1.msra.mxu0 %v782
    %847 = vmatprep.subr.mxu0 0.0
    %848 = vmatpush1.msra.mxu0 0.0
    %849 = vmatprep.subr.mxu0 0.0
    %850 = vmatpush1.msra.mxu0 0.0
    %851 = vmatprep.subr.mxu0 0.0
    %852 = vmatpush1.msra.mxu0 0.0
    %853 = vmatprep.subr.mxu0 0.0
    %854 = vmatpush1.msra.mxu0 0.0
    %855 = vmatprep.subr.mxu0 0.0
    %856 = vmatpush1.msra.mxu0 0.0
    %857 = vmatprep.subr.mxu0 0.0
    %858 = vmatpush1.msra.mxu0 0.0
    %859 = vmatprep.subr.mxu0 0.0
    %860 = vmatpush1.msra.mxu0 0.0
    %861 = vmatprep.subr.mxu0 0.0
    %862 = vmatpush1.msra.mxu0 0.0
    %863 = vmatprep.subr.mxu0 0.0
    %864 = vmatpush1.msra.mxu0 0.0
    %865 = vmatprep.subr.mxu0 0.0
    %866 = vmatpush1.msra.mxu0 0.0
    %867 = vmatprep.subr.mxu0 0.0
    %868 = vmatpush1.msra.mxu0 0.0
    %869 = vmatprep.subr.mxu0 0.0
    %870 = vmatpush1.msra.mxu0 0.0
    %871 = vmatprep.subr.mxu0 0.0
    %872 = vmatpush1.msra.mxu0 0.0
    %873 = vmatprep.subr.mxu0 0.0
    %874 = vmatpush1.msra.mxu0 0.0
    %875 = vmatprep.subr.mxu0 0.0
    %876 = vmatpush1.msra.mxu0 0.0
    %877 = vmatprep.subr.mxu0 0.0
    %878 = vmatpush1.msra.mxu0 0.0
    %879 = vmatprep.mubr.f32.mxu0 0.0
    %880 = vmatmul.mubr.f32.gmra.mrb[0].mxu0 %v811
    %v881 = vpop.f32.mrb[0].mxu0
    %v882 = vadd.f32 0.0, %v881
    %v883 = vpop.f32.mrb[0].mxu0
    %884 = vmatprep.mubr.f32.mxu0 0.0
    %885 = vmatmul.mubr.f32.gmra.mrb[0].mxu0 %v812
    %v886 = vpop.f32.mrb[0].mxu0
    %v887 = vadd.f32 0.0, %v886
    %v888 = vpop.f32.mrb[0].mxu0
    %889 = vmatprep.mubr.f32.mxu0 0.0
    %890 = vmatmul.mubr.f32.gmra.mrb[0].mxu0 %v813
    %v891 = vpop.f32.mrb[0].mxu0
    %v892 = vadd.f32 0.0, %v891
    %v893 = vpop.f32.mrb[0].mxu0
    %894 = vmatprep.mubr.f32.mxu0 0.0
    %895 = vmatmul.mubr.f32.gmra.mrb[0].mxu0 %v814
    %v896 = vpop.f32.mrb[0].mxu0
    %v897 = vadd.f32 0.0, %v896
    %v898 = vpop.f32.mrb[0].mxu0
    %899 = vdwg.mxu0
    %v900 = vld [vmem:[%s7] sm:$0xff]
    %v901 = vld [vmem:[%s7 + $0x8] sm:$0xff]
    %v902 = vld [vmem:[%s7 + $0x10] sm:$0xff]
    %v903 = vld [vmem:[%s7 + $0x18] sm:$0xff]
    %904 = vset.pattern.permute.xlu0 0
    %905 = vperm.xlu0 %904, %v900
    %v906 = vpop.permute.xlu0 %905
    %907 = vset.pattern.permute.xlu0 0
    %908 = vperm.xlu0 %907, %v901
    %v909 = vpop.permute.xlu0 %908
    %910 = vset.pattern.permute.xlu0 0
    %911 = vperm.xlu0 %910, %v902
    %v912 = vpop.permute.xlu0 %911
    %913 = vset.pattern.permute.xlu0 0
    %914 = vperm.xlu0 %913, %v903
    %v915 = vpop.permute.xlu0 %914
    %vm916 = vcmp.eq.s32.totalorder %v790, %v906
    %vm917 = vcmp.eq.s32.totalorder %v790, %v909
    %vm918 = vcmp.eq.s32.totalorder %v790, %v912
    %vm919 = vcmp.eq.s32.totalorder %v790, %v915
    %v920 = vsel %vm916, %v882, 0.0
    %v921 = vsel %vm917, %v887, 0.0
    %v922 = vsel %vm918, %v892, 0.0
    %v923 = vsel %vm919, %v897, 0.0
    %924 = vadd.xlane.f32.xlu0 %v920
    %v925 = vpop.xlane.xlu0 %924
    %926 = vadd.xlane.f32.xlu0 %v921
    %v927 = vpop.xlane.xlu0 %926
    %928 = vadd.xlane.f32.xlu0 %v922
    %v929 = vpop.xlane.xlu0 %928
    %930 = vadd.xlane.f32.xlu0 %v923
    %v931 = vpop.xlane.xlu0 %930
    %v932 = vadd.s32 %v900, 1
    %v933 = vadd.s32 %v901, 1
    %v934 = vadd.s32 %v902, 1
    %v935 = vadd.s32 %v903, 1
    %936 = vset.pattern.permute.xlu0 0
    %937 = vperm.xlu0 %936, %v932
    %v938 = vpop.permute.xlu0 %937
    %939 = vset.pattern.permute.xlu0 0
    %940 = vperm.xlu0 %939, %v933
    %v941 = vpop.permute.xlu0 %940
    %942 = vset.pattern.permute.xlu0 0
    %943 = vperm.xlu0 %942, %v934
    %v944 = vpop.permute.xlu0 %943
    %945 = vset.pattern.permute.xlu0 0
    %946 = vperm.xlu0 %945, %v935
    %v947 = vpop.permute.xlu0 %946
    %vm948 = vcmp.eq.s32.totalorder %v790, %v938
    %vm949 = vcmp.eq.s32.totalorder %v790, %v941
    %vm950 = vcmp.eq.s32.totalorder %v790, %v944
    %vm951 = vcmp.eq.s32.totalorder %v790, %v947
    %v952 = vsel %vm948, %v882, 0.0
    %v953 = vsel %vm949, %v887, 0.0
    %v954 = vsel %vm950, %v892, 0.0
    %v955 = vsel %vm951, %v897, 0.0
    %956 = vadd.xlane.f32.xlu0 %v952
    %v957 = vpop.xlane.xlu0 %956
    %958 = vadd.xlane.f32.xlu0 %v953
    %v959 = vpop.xlane.xlu0 %958
    %960 = vadd.xlane.f32.xlu0 %v954
    %v961 = vpop.xlane.xlu0 %960
    %962 = vadd.xlane.f32.xlu0 %v955
    %v963 = vpop.xlane.xlu0 %962
    %v964 = vadd.s32 %v900, 2
    %v965 = vadd.s32 %v901, 2
    %966 = vset.pattern.permute.xlu0 0
    %967 = vperm.xlu0 %966, %v964
    %v968 = vpop.permute.xlu0 %967
    %969 = vset.pattern.permute.xlu0 0
    %970 = vperm.xlu0 %969, %v965
    %v971 = vpop.permute.xlu0 %970
    %vm972 = vcmp.eq.s32.totalorder %v790, %v968
    %vm973 = vcmp.eq.s32.totalorder %v790, %v971
    %v974 = vsel %vm972, %v882, 0.0
    %v975 = vsel %vm973, %v887, 0.0
    %976 = vadd.xlane.f32.xlu0 %v974
    %v977 = vpop.xlane.xlu0 %976
    %978 = vadd.xlane.f32.xlu0 %v975
    %v979 = vpop.xlane.xlu0 %978
    %v980 = vadd.s32 %v900, 3
    %v981 = vadd.s32 %v901, 3
    %982 = vset.pattern.permute.xlu0 0
    %983 = vperm.xlu0 %982, %v980
    %v984 = vpop.permute.xlu0 %983
    %985 = vset.pattern.permute.xlu0 0
    %986 = vperm.xlu0 %985, %v981
    %v987 = vpop.permute.xlu0 %986
    %vm988 = vcmp.eq.s32.totalorder %v790, %v984
    %vm989 = vcmp.eq.s32.totalorder %v790, %v987
    %v990 = vsel %vm988, %v882, 0.0
    %v991 = vsel %vm989, %v887, 0.0
    %992 = vadd.xlane.f32.xlu0 %v990
    %v993 = vpop.xlane.xlu0 %992
    %994 = vadd.xlane.f32.xlu0 %v991
    %v995 = vpop.xlane.xlu0 %994
    %v996 = vadd.s32 %v900, 4
    %v997 = vadd.s32 %v901, 4
    %998 = vset.pattern.permute.xlu0 0
    %999 = vperm.xlu0 %998, %v996
    %v1000 = vpop.permute.xlu0 %999
    %1001 = vset.pattern.permute.xlu0 0
    %1002 = vperm.xlu0 %1001, %v997
    %v1003 = vpop.permute.xlu0 %1002
    %vm1004 = vcmp.eq.s32.totalorder %v790, %v1000
    %vm1005 = vcmp.eq.s32.totalorder %v790, %v1003
    %v1006 = vsel %vm1004, %v882, 0.0
    %v1007 = vsel %vm1005, %v887, 0.0
    %1008 = vadd.xlane.f32.xlu0 %v1006
    %v1009 = vpop.xlane.xlu0 %1008
    %1010 = vadd.xlane.f32.xlu0 %v1007
    %v1011 = vpop.xlane.xlu0 %1010
    %v1012 = vadd.s32 %v900, 5
    %v1013 = vadd.s32 %v901, 5
    %1014 = vset.pattern.permute.xlu0 0
    %1015 = vperm.xlu0 %1014, %v1012
    %v1016 = vpop.permute.xlu0 %1015
    %1017 = vset.pattern.permute.xlu0 0
    %1018 = vperm.xlu0 %1017, %v1013
    %v1019 = vpop.permute.xlu0 %1018
    %vm1020 = vcmp.eq.s32.totalorder %v790, %v1016
    %vm1021 = vcmp.eq.s32.totalorder %v790, %v1019
    %v1022 = vsel %vm1020, %v882, 0.0
    %v1023 = vsel %vm1021, %v887, 0.0
    %1024 = vadd.xlane.f32.xlu0 %v1022
    %v1025 = vpop.xlane.xlu0 %1024
    %1026 = vadd.xlane.f32.xlu0 %v1023
    %v1027 = vpop.xlane.xlu0 %1026
    %v1028 = vlaneseq
    %v1029 = vshrl.u32 %v1028, 7
    %v1030 = vadd.s32 %v1029, 8
    %v1031 = vadd.s32 %v1029, 16
    %v1032 = vadd.s32 %v1029, 24
    %vm1033 = vcmp.lt.s32.totalorder %v1029, 16
    %vm1034 = vcmp.lt.s32.totalorder %v1030, 16
    %vm1035 = vcmp.lt.s32.totalorder %v1031, 16
    %vm1036 = vcmp.lt.s32.totalorder %v1032, 16
    %v1037 = vsel %vm1033, 1, 0
    %v1038 = vsel %vm1034, 1, 0
    %v1039 = vsel %vm1035, 1, 0
    %v1040 = vsel %vm1036, 1, 0
    %v1041 = vcvt.s32.f32 %v1037
    %v1042 = vcvt.s32.f32 %v1038
    %v1043 = vcvt.s32.f32 %v1039
    %v1044 = vcvt.s32.f32 %v1040
    %v1045 = vsub.f32 1.0, %v1041
    %v1046 = vsub.f32 1.0, %v1042
    %v1047 = vsub.f32 1.0, %v1043
    %v1048 = vsub.f32 1.0, %v1044
    %v1049 = vmax.f32 %v925, 0.0
    %v1050 = vmax.f32 %v927, 0.0
    %v1051 = vmax.f32 %v929, 0.0
    %v1052 = vmax.f32 %v931, 0.0
    %v1053 = vmul.f32 %v925, %v1041
    %v1054 = vmul.f32 %v927, %v1042
    %v1055 = vmul.f32 %v929, %v1043
    %v1056 = vmul.f32 %v931, %v1044
    %v1057 = vsub.f32 %v1049, %v1053
    %v1058 = vsub.f32 %v1050, %v1054
    %v1059 = vsub.f32 %v1051, %v1055
    %v1060 = vsub.f32 %v1052, %v1056
    %v1061 = vand.u32 2147483647, %v925
    %v1062 = vand.u32 2147483647, %v927
    %v1063 = vand.u32 2147483647, %v929
    %v1064 = vand.u32 2147483647, %v931
    %v1065 = vsub.f32 0.0, %v1061
    %v1066 = vsub.f32 0.0, %v1062
    %v1067 = vsub.f32 0.0, %v1063
    %v1068 = vsub.f32 0.0, %v1064
    %v1069 = vmul.f32 %v1065, 1.442695
    %v1070 = vpow.pop %v1069
    %v1071 = vmul.f32 %v1066, 1.442695
    %v1072 = vpow.pop %v1071
    %v1073 = vmul.f32 %v1067, 1.442695
    %v1074 = vpow.pop %v1073
    %v1075 = vmul.f32 %v1068, 1.442695
    %v1076 = vpow.pop %v1075
    %v1077 = vadd.f32 %v1070, 1.0
    %v1078 = vlog2.pop %v1077
    %v1079 = vmul.f32 %v1078, 0.6931472
    %v1080 = vmul.f32 -0.5, %v1070
    %v1081 = vadd.f32 %v1080, 1.0
    %v1082 = vmul.f32 %v1081, %v1070
    %v1083 = vand.u32 2147483647, %v1070
    %vm1084 = vcmp.lt.f32.partialorder %v1083, 0.0004427343
    %v1085 = vsel %vm1084, %v1082, %v1079
    %v1086 = vadd.f32 %v1072, 1.0
    %v1087 = vlog2.pop %v1086
    %v1088 = vmul.f32 %v1087, 0.6931472
    %v1089 = vmul.f32 -0.5, %v1072
    %v1090 = vadd.f32 %v1089, 1.0
    %v1091 = vmul.f32 %v1090, %v1072
    %v1092 = vand.u32 2147483647, %v1072
    %vm1093 = vcmp.lt.f32.partialorder %v1092, 0.0004427343
    %v1094 = vsel %vm1093, %v1091, %v1088
    %v1095 = vadd.f32 %v1074, 1.0
    %v1096 = vlog2.pop %v1095
    %v1097 = vmul.f32 %v1096, 0.6931472
    %v1098 = vmul.f32 -0.5, %v1074
    %v1099 = vadd.f32 %v1098, 1.0
    %v1100 = vmul.f32 %v1099, %v1074
    %v1101 = vand.u32 2147483647, %v1074
    %vm1102 = vcmp.lt.f32.partialorder %v1101, 0.0004427343
    %v1103 = vsel %vm1102, %v1100, %v1097
    %v1104 = vadd.f32 %v1076, 1.0
    %v1105 = vlog2.pop %v1104
    %v1106 = vmul.f32 %v1105, 0.6931472
    %v1107 = vmul.f32 -0.5, %v1076
    %v1108 = vadd.f32 %v1107, 1.0
    %v1109 = vmul.f32 %v1108, %v1076
    %v1110 = vand.u32 2147483647, %v1076
    %vm1111 = vcmp.lt.f32.partialorder %v1110, 0.0004427343
    %v1112 = vsel %vm1111, %v1109, %v1106
    %v1113 = vadd.f32 %v1057, %v1085
    %v1114 = vadd.f32 %v1058, %v1094
    %v1115 = vadd.f32 %v1059, %v1103
    %v1116 = vadd.f32 %v1060, %v1112
    %vm1117 = vcmask 7168
    %v1118 = vsel %vm1117, %v1113, 0.0
    %v1119 = vsel %vm1117, %v1114, 0.0
    %v1120 = vadd.f32 %v1118, %v1119
    %v1121 = vsel %vm1117, %v1115, 0.0
    %v1122 = vadd.f32 %v1120, %v1121
    %v1123 = vsel %vm1117, %v1116, 0.0
    %v1124 = vadd.f32 %v1122, %v1123
    %1125 = vadd.xlane.f32.xlu0 %v1124
    %v1126 = vpop.xlane.xlu0 %1125
    %v1127 = vrot.slane %v1126, 4
    %v1128 = vadd.f32 %v1126, %v1127
    %v1129 = vrot.slane %v1128, 2
    %v1130 = vadd.f32 %v1128, %v1129
    %v1131 = vrot.slane %v1130, 1
    %v1132 = vadd.f32 %v1130, %v1131
    %s1133 = vtos %v1132
    %v1134 = vmax.f32 %v957, 0.0
    %v1135 = vmax.f32 %v959, 0.0
    %v1136 = vmax.f32 %v961, 0.0
    %v1137 = vmax.f32 %v963, 0.0
    %v1138 = vmul.f32 %v957, %v1045
    %v1139 = vmul.f32 %v959, %v1046
    %v1140 = vmul.f32 %v961, %v1047
    %v1141 = vmul.f32 %v963, %v1048
    %v1142 = vsub.f32 %v1134, %v1138
    %v1143 = vsub.f32 %v1135, %v1139
    %v1144 = vsub.f32 %v1136, %v1140
    %v1145 = vsub.f32 %v1137, %v1141
    %v1146 = vand.u32 2147483647, %v957
    %v1147 = vand.u32 2147483647, %v959
    %v1148 = vand.u32 2147483647, %v961
    %v1149 = vand.u32 2147483647, %v963
    %v1150 = vsub.f32 0.0, %v1146
    %v1151 = vsub.f32 0.0, %v1147
    %v1152 = vsub.f32 0.0, %v1148
    %v1153 = vsub.f32 0.0, %v1149
    %v1154 = vmul.f32 %v1150, 1.442695
    %v1155 = vpow.pop %v1154
    %v1156 = vmul.f32 %v1151, 1.442695
    %v1157 = vpow.pop %v1156
    %v1158 = vmul.f32 %v1152, 1.442695
    %v1159 = vpow.pop %v1158
    %v1160 = vmul.f32 %v1153, 1.442695
    %v1161 = vpow.pop %v1160
    %v1162 = vadd.f32 %v1155, 1.0
    %v1163 = vlog2.pop %v1162
    %v1164 = vmul.f32 %v1163, 0.6931472
    %v1165 = vmul.f32 -0.5, %v1155
    %v1166 = vadd.f32 %v1165, 1.0
    %v1167 = vmul.f32 %v1166, %v1155
    %v1168 = vand.u32 2147483647, %v1155
    %vm1169 = vcmp.lt.f32.partialorder %v1168, 0.0004427343
    %v1170 = vsel %vm1169, %v1167, %v1164
    %v1171 = vadd.f32 %v1157, 1.0
    %v1172 = vlog2.pop %v1171
    %v1173 = vmul.f32 %v1172, 0.6931472
    %v1174 = vmul.f32 -0.5, %v1157
    %v1175 = vadd.f32 %v1174, 1.0
    %v1176 = vmul.f32 %v1175, %v1157
    %v1177 = vand.u32 2147483647, %v1157
    %vm1178 = vcmp.lt.f32.partialorder %v1177, 0.0004427343
    %v1179 = vsel %vm1178, %v1176, %v1173
    %v1180 = vadd.f32 %v1159, 1.0
    %v1181 = vlog2.pop %v1180
    %v1182 = vmul.f32 %v1181, 0.6931472
    %v1183 = vmul.f32 -0.5, %v1159
    %v1184 = vadd.f32 %v1183, 1.0
    %v1185 = vmul.f32 %v1184, %v1159
    %v1186 = vand.u32 2147483647, %v1159
    %vm1187 = vcmp.lt.f32.partialorder %v1186, 0.0004427343
    %v1188 = vsel %vm1187, %v1185, %v1182
    %v1189 = vadd.f32 %v1161, 1.0
    %v1190 = vlog2.pop %v1189
    %v1191 = vmul.f32 %v1190, 0.6931472
    %v1192 = vmul.f32 -0.5, %v1161
    %v1193 = vadd.f32 %v1192, 1.0
    %v1194 = vmul.f32 %v1193, %v1161
    %v1195 = vand.u32 2147483647, %v1161
    %vm1196 = vcmp.lt.f32.partialorder %v1195, 0.0004427343
    %v1197 = vsel %vm1196, %v1194, %v1191
    %v1198 = vadd.f32 %v1142, %v1170
    %v1199 = vadd.f32 %v1143, %v1179
    %v1200 = vadd.f32 %v1144, %v1188
    %v1201 = vadd.f32 %v1145, %v1197
    %v1202 = vsel %vm1117, %v1198, 0.0
    %v1203 = vsel %vm1117, %v1199, 0.0
    %v1204 = vadd.f32 %v1202, %v1203
    %v1205 = vsel %vm1117, %v1200, 0.0
    %v1206 = vadd.f32 %v1204, %v1205
    %v1207 = vsel %vm1117, %v1201, 0.0
    %v1208 = vadd.f32 %v1206, %v1207
    %1209 = vadd.xlane.f32.xlu0 %v1208
    %v1210 = vpop.xlane.xlu0 %1209
    %v1211 = vrot.slane %v1210, 4
    %v1212 = vadd.f32 %v1210, %v1211
    %v1213 = vrot.slane %v1212, 2
    %v1214 = vadd.f32 %v1212, %v1213
    %v1215 = vrot.slane %v1214, 1
    %v1216 = vadd.f32 %v1214, %v1215
    %s1217 = vtos %v1216
    %s1218 = sadd.f32 %s1133, %s1217
    %v1219 = vrcp.pop 2.0
    %s1220 = vtos %v1219
    %s1221 = smul.f32 %s1218, %s1220
    %v1222 = vld [vmem:[%s10] sm:$0xff]
    %v1223 = vld [vmem:[%s10 + $0x8] sm:$0xff]
    %v1224 = vsub.f32 %v977, %v1222
    %v1225 = vsub.f32 %v979, %v1223
    %v1226 = vand.u32 2147483647, %v1224
    %v1227 = vand.u32 2147483647, %v1225
    %vm1228 = vcmp.lt.f32.partialorder %v1226, 1.0
    %vm1229 = vcmp.lt.f32.partialorder %v1227, 1.0
    %v1230 = vmul.f32 %v1224, 0.5
    %v1231 = vmul.f32 %v1225, 0.5
    %v1232 = vmul.f32 %v1230, %v1224
    %v1233 = vmul.f32 %v1231, %v1225
    %v1234 = vsub.f32 %v1226, 0.5
    %v1235 = vsub.f32 %v1227, 0.5
    %v1236 = vsel %vm1228, %v1232, %v1234
    %v1237 = vsel %vm1229, %v1233, %v1235
    %v1238 = vsel %vm1117, %v1236, 0.0
    %v1239 = vsel %vm1117, %v1237, 0.0
    %v1240 = vadd.f32 %v1238, %v1239
    %1241 = vadd.xlane.f32.xlu0 %v1240
    %v1242 = vpop.xlane.xlu0 %1241
    %v1243 = vrot.slane %v1242, 4
    %v1244 = vadd.f32 %v1242, %v1243
    %v1245 = vrot.slane %v1244, 2
    %v1246 = vadd.f32 %v1244, %v1245
    %v1247 = vrot.slane %v1246, 1
    %v1248 = vadd.f32 %v1246, %v1247
    %s1249 = vtos %v1248
    %s1250 = sadd.f32 %s1249, 0.0
    %v1251 = vsub.f32 %v993, %v1222
    %v1252 = vsub.f32 %v995, %v1223
    %v1253 = vand.u32 2147483647, %v1251
    %v1254 = vand.u32 2147483647, %v1252
    %vm1255 = vcmp.lt.f32.partialorder %v1253, 1.0
    %vm1256 = vcmp.lt.f32.partialorder %v1254, 1.0
    %v1257 = vmul.f32 %v1251, 0.5
    %v1258 = vmul.f32 %v1252, 0.5
    %v1259 = vmul.f32 %v1257, %v1251
    %v1260 = vmul.f32 %v1258, %v1252
    %v1261 = vsub.f32 %v1253, 0.5
    %v1262 = vsub.f32 %v1254, 0.5
    %v1263 = vsel %vm1255, %v1259, %v1261
    %v1264 = vsel %vm1256, %v1260, %v1262
    %1267 = vrot.lane.b32.xlu0 %v1263, 127
    %v1268 = vpop.permute.xlu0 %1267
    %1269 = vrot.lane.b32.xlu0 %v1264, 127
    %v1270 = vpop.permute.xlu0 %1269
    %v1273 = vsel %vm1117, %v1268, 0.0
    %v1274 = vsel %vm1117, %v1270, 0.0
    %v1275 = vadd.f32 %v1273, %v1274
    %1276 = vadd.xlane.f32.xlu0 %v1275
    %v1277 = vpop.xlane.xlu0 %1276
    %v1278 = vrot.slane %v1277, 4
    %v1279 = vadd.f32 %v1277, %v1278
    %v1280 = vrot.slane %v1279, 2
    %v1281 = vadd.f32 %v1279, %v1280
    %v1282 = vrot.slane %v1281, 1
    %v1283 = vadd.f32 %v1281, %v1282
    %s1284 = vtos %v1283
    %s1285 = sadd.f32 %s1250, %s1284
    %v1286 = vsub.f32 %v1009, %v1222
    %v1287 = vsub.f32 %v1011, %v1223
    %v1288 = vand.u32 2147483647, %v1286
    %v1289 = vand.u32 2147483647, %v1287
    %vm1290 = vcmp.lt.f32.partialorder %v1288, 1.0
    %vm1291 = vcmp.lt.f32.partialorder %v1289, 1.0
    %v1292 = vmul.f32 %v1286, 0.5
    %v1293 = vmul.f32 %v1287, 0.5
    %v1294 = vmul.f32 %v1292, %v1286
    %v1295 = vmul.f32 %v1293, %v1287
    %v1296 = vsub.f32 %v1288, 0.5
    %v1297 = vsub.f32 %v1289, 0.5
    %v1298 = vsel %vm1290, %v1294, %v1296
    %v1299 = vsel %vm1291, %v1295, %v1297
    %1302 = vrot.lane.b32.xlu0 %v1298, 126
    %v1303 = vpop.permute.xlu0 %1302
    %1304 = vrot.lane.b32.xlu0 %v1299, 126
    %v1305 = vpop.permute.xlu0 %1304
    %v1308 = vsel %vm1117, %v1303, 0.0
    %v1309 = vsel %vm1117, %v1305, 0.0
    %v1310 = vadd.f32 %v1308, %v1309
    %1311 = vadd.xlane.f32.xlu0 %v1310
    %v1312 = vpop.xlane.xlu0 %1311
    %v1313 = vrot.slane %v1312, 4
    %v1314 = vadd.f32 %v1312, %v1313
    %v1315 = vrot.slane %v1314, 2
    %v1316 = vadd.f32 %v1314, %v1315
    %v1317 = vrot.slane %v1316, 1
    %v1318 = vadd.f32 %v1316, %v1317
    %s1319 = vtos %v1318
    %s1320 = sadd.f32 %s1285, %s1319
    %v1321 = vsub.f32 %v1025, %v1222
    %v1322 = vsub.f32 %v1027, %v1223
    %v1323 = vand.u32 2147483647, %v1321
    %v1324 = vand.u32 2147483647, %v1322
    %vm1325 = vcmp.lt.f32.partialorder %v1323, 1.0
    %vm1326 = vcmp.lt.f32.partialorder %v1324, 1.0
    %v1327 = vmul.f32 %v1321, 0.5
    %v1328 = vmul.f32 %v1322, 0.5
    %v1329 = vmul.f32 %v1327, %v1321
    %v1330 = vmul.f32 %v1328, %v1322
    %v1331 = vsub.f32 %v1323, 0.5
    %v1332 = vsub.f32 %v1324, 0.5
    %v1333 = vsel %vm1325, %v1329, %v1331
    %v1334 = vsel %vm1326, %v1330, %v1332
    %1337 = vrot.lane.b32.xlu0 %v1333, 125
    %v1338 = vpop.permute.xlu0 %1337
    %1339 = vrot.lane.b32.xlu0 %v1334, 125
    %v1340 = vpop.permute.xlu0 %1339
    %v1343 = vsel %vm1117, %v1338, 0.0
    %v1344 = vsel %vm1117, %v1340, 0.0
    %v1345 = vadd.f32 %v1343, %v1344
    %1346 = vadd.xlane.f32.xlu0 %v1345
    %v1347 = vpop.xlane.xlu0 %1346
    %v1348 = vrot.slane %v1347, 4
    %v1349 = vadd.f32 %v1347, %v1348
    %v1350 = vrot.slane %v1349, 2
    %v1351 = vadd.f32 %v1349, %v1350
    %v1352 = vrot.slane %v1351, 1
    %v1353 = vadd.f32 %v1351, %v1352
    %s1354 = vtos %v1353
    %s1355 = sadd.f32 %s1320, %s1354
    %v1356 = vrcp.pop 2.0
    %s1357 = vtos %v1356
    %s1358 = smul.f32 %s1355, %s1357
    %v1359 = vld [vmem:[%s11] sm:$0xff]
    %v1360 = vld [vmem:[%s11 + $0x8] sm:$0xff]
    %1363 = vrot.lane.b32.xlu0 %v1359, 126
    %v1364 = vpop.permute.xlu0 %1363
    %1365 = vrot.lane.b32.xlu0 %v1360, 126
    %v1366 = vpop.permute.xlu0 %1365
    %v1369 = vadd.f32 %v1359, %v1364
    %v1370 = vadd.f32 %v1360, %v1366
    %v1371 = vmul.f32 %v1369, 0.5
    %v1372 = vmul.f32 %v1370, 0.5
    %1373 = vrot.lane.b32.xlu0 %v1359, 2
    %v1374 = vpop.permute.xlu0 %1373
    %1375 = vrot.lane.b32.xlu0 %v1360, 2
    %v1376 = vpop.permute.xlu0 %1375
    %v1379 = vsub.f32 %v1359, %v1374
    %v1380 = vsub.f32 %v1360, %v1376
    %v1381 = vmul.f32 %v977, %v1379
    %v1382 = vmul.f32 %v979, %v1380
    %1385 = vrot.lane.b32.xlu0 %v1381, 126
    %v1386 = vpop.permute.xlu0 %1385
    %1387 = vrot.lane.b32.xlu0 %v1382, 126
    %v1388 = vpop.permute.xlu0 %1387
    %v1391 = vadd.f32 %v1371, %v1386
    %v1392 = vadd.f32 %v1372, %v1388
    %v1393 = vmul.f32 %v993, %v1379
    %v1394 = vmul.f32 %v995, %v1380
    %1397 = vrot.lane.b32.xlu0 %v1393, 126
    %v1398 = vpop.permute.xlu0 %1397
    %1399 = vrot.lane.b32.xlu0 %v1394, 126
    %v1400 = vpop.permute.xlu0 %1399
    %v1403 = vadd.f32 %v1371, %v1398
    %v1404 = vadd.f32 %v1372, %v1400
    %v1405 = vmul.f32 %v1009, 1.442695
    %v1406 = vpow.pop %v1405
    %v1407 = vmul.f32 %v1011, 1.442695
    %v1408 = vpow.pop %v1407
    %v1409 = vmul.f32 %v1379, %v1406
    %v1410 = vmul.f32 %v1380, %v1408
    %v1411 = vmul.f32 %v1025, 1.442695
    %v1412 = vpow.pop %v1411
    %v1413 = vmul.f32 %v1027, 1.442695
    %v1414 = vpow.pop %v1413
    %v1415 = vmul.f32 %v1379, %v1412
    %v1416 = vmul.f32 %v1380, %v1414
    %v1417 = vmul.f32 %v1409, 0.5
    %v1418 = vmul.f32 %v1410, 0.5
    %1421 = vrot.lane.b32.xlu0 %v1417, 126
    %v1422 = vpop.permute.xlu0 %1421
    %1423 = vrot.lane.b32.xlu0 %v1418, 126
    %v1424 = vpop.permute.xlu0 %1423
    %v1427 = vsub.f32 %v1391, %v1422
    %v1428 = vsub.f32 %v1392, %v1424
    %v1429 = vmul.f32 %v1415, 0.5
    %v1430 = vmul.f32 %v1416, 0.5
    %1433 = vrot.lane.b32.xlu0 %v1429, 126
    %v1434 = vpop.permute.xlu0 %1433
    %1435 = vrot.lane.b32.xlu0 %v1430, 126
    %v1436 = vpop.permute.xlu0 %1435
    %v1439 = vsub.f32 %v1403, %v1434
    %v1440 = vsub.f32 %v1404, %v1436
    %v1441 = vadd.f32 %v1391, %v1422
    %v1442 = vadd.f32 %v1392, %v1424
    %v1443 = vadd.f32 %v1403, %v1434
    %v1444 = vadd.f32 %v1404, %v1436
    %v1445 = vld [vmem:[%s8] sm:$0xff]
    %v1446 = vld [vmem:[%s8 + $0x8] sm:$0xff]
    %v1447 = vsub.f32 %v1441, %v1427
    %v1448 = vsub.f32 %v1442, %v1428
    %v1449 = vmul.f32 %v1447, 0.5
    %v1450 = vmul.f32 %v1448, 0.5
    %v1451 = vsub.f32 %v1443, %v1439
    %v1452 = vsub.f32 %v1444, %v1440
    %v1453 = vmul.f32 %v1451, 0.5
    %v1454 = vmul.f32 %v1452, 0.5
    %v1455 = vmul.f32 %v1453, 0.5
    %v1456 = vmul.f32 %v1454, 0.5
    %v1457 = vadd.f32 %v1439, %v1455
    %v1458 = vadd.f32 %v1440, %v1456
    %v1459 = vmax.f32 %v1457, 0.0
    %v1460 = vmax.f32 %v1458, 0.0
    %v1461 = vmin.f32 %v1459, 7.0
    %v1462 = vmin.f32 %v1460, 7.0
    %v1463 = vfloor.f32 %v1461
    %v1464 = vfloor.f32 %v1462
    %v1465 = vcvt.f32.s32.to.zero.pseudo %v1463
    %v1466 = vcvt.f32.s32.to.zero.pseudo %v1464
    %v1467 = vadd.s32 %v1465, 1
    %v1468 = vadd.s32 %v1466, 1
    %vm1469 = vcmp.lt.s32.totalorder %v1467, 7
    %v1470 = vsel %vm1469, %v1467, 7
    %vm1471 = vcmp.lt.s32.totalorder %v1468, 7
    %v1472 = vsel %vm1471, %v1468, 7
    %v1473 = vsub.f32 %v1461, %v1463
    %v1474 = vsub.f32 %v1462, %v1464
    %v1475 = vmul.f32 %v1449, 0.5
    %v1476 = vmul.f32 %v1450, 0.5
    %v1477 = vadd.f32 %v1427, %v1475
    %v1478 = vadd.f32 %v1428, %v1476
    %v1479 = vmax.f32 %v1477, 0.0
    %v1480 = vmax.f32 %v1478, 0.0
    %v1481 = vmin.f32 %v1479, 7.0
    %v1482 = vmin.f32 %v1480, 7.0
    %v1483 = vfloor.f32 %v1481
    %v1484 = vfloor.f32 %v1482
    %v1485 = vcvt.f32.s32.to.zero.pseudo %v1483
    %v1486 = vcvt.f32.s32.to.zero.pseudo %v1484
    %v1487 = vadd.s32 %v1485, 1
    %v1488 = vadd.s32 %v1486, 1
    %vm1489 = vcmp.lt.s32.totalorder %v1487, 7
    %v1490 = vsel %vm1489, %v1487, 7
    %vm1491 = vcmp.lt.s32.totalorder %v1488, 7
    %v1492 = vsel %vm1491, %v1488, 7
    %v1493 = vsub.f32 %v1481, %v1483
    %v1494 = vsub.f32 %v1482, %v1484
    %v1495 = vsub.f32 1.0, %v1473
    %v1496 = vsub.f32 1.0, %v1474
    %v1497 = vsub.f32 1.0, %v1493
    %v1498 = vsub.f32 1.0, %v1494
    %v1499 = vmul.u32 %v1465, 8
    %v1500 = vmul.u32 %v1466, 8
    %1501 = vrot.lane.b32.xlu0 %v1499, 127
    %v1502 = vpop.permute.xlu0 %1501
    %1503 = vrot.lane.b32.xlu0 %v1500, 127
    %v1504 = vpop.permute.xlu0 %1503
    %v1505 = vadd.s32 %v1445, %v1502
    %v1506 = vadd.s32 %v1446, %v1504
    %v1507 = vadd.s32 %v1505, %v1485
    %v1508 = vadd.s32 %v1506, %v1486
    %1511 = vrot.lane.b32.xlu0 %v1497, 1
    %v1512 = vpop.permute.xlu0 %1511
    %1513 = vrot.lane.b32.xlu0 %v1498, 1
    %v1514 = vpop.permute.xlu0 %1513
    %v1517 = vmul.f32 %v1495, %v1512
    %v1518 = vmul.f32 %v1496, %v1514
    %v1519 = vmul.f32 %v1517, 0.25
    %v1520 = vmul.f32 %v1518, 0.25
    %1521 = vset.pattern.permute.xlu0 0
    %1522 = vperm.xlu0 %1521, %v1507
    %v1523 = vpop.permute.xlu0 %1522
    %1524 = vset.pattern.permute.xlu0 0
    %1525 = vperm.xlu0 %1524, %v1508
    %v1526 = vpop.permute.xlu0 %1525
    %vm1527 = vcmp.eq.s32.totalorder %v790, %v1523
    %vm1528 = vcmp.eq.s32.totalorder %v790, %v1526
    %1530 = vset.pattern.permute.xlu0 1
    %1531 = vperm.xlu0 %1530, %v1519
    %v1532 = vpop.permute.xlu0 %1531
    %1535 = vset.pattern.permute.xlu0 1
    %1536 = vperm.xlu0 %1535, %v1520
    %v1537 = vpop.permute.xlu0 %1536
    %v1539 = vsel %vm1527, %v1532, 0.0
    %v1540 = vsel %vm1528, %v1537, 0.0
    %v1541 = vadd.f32 %v1539, 0.0
    %v1542 = vadd.f32 %v1540, 0.0
    %v1543 = vadd.s32 %v1505, %v1490
    %v1544 = vadd.s32 %v1506, %v1492
    %1547 = vrot.lane.b32.xlu0 %v1493, 1
    %v1548 = vpop.permute.xlu0 %1547
    %1549 = vrot.lane.b32.xlu0 %v1494, 1
    %v1550 = vpop.permute.xlu0 %1549
    %v1553 = vmul.f32 %v1495, %v1548
    %v1554 = vmul.f32 %v1496, %v1550
    %v1555 = vmul.f32 %v1553, 0.25
    %v1556 = vmul.f32 %v1554, 0.25
    %1557 = vset.pattern.permute.xlu0 0
    %1558 = vperm.xlu0 %1557, %v1543
    %v1559 = vpop.permute.xlu0 %1558
    %1560 = vset.pattern.permute.xlu0 0
    %1561 = vperm.xlu0 %1560, %v1544
    %v1562 = vpop.permute.xlu0 %1561
    %vm1563 = vcmp.eq.s32.totalorder %v790, %v1559
    %vm1564 = vcmp.eq.s32.totalorder %v790, %v1562
    %1566 = vset.pattern.permute.xlu0 1
    %1567 = vperm.xlu0 %1566, %v1555
    %v1568 = vpop.permute.xlu0 %1567
    %1571 = vset.pattern.permute.xlu0 1
    %1572 = vperm.xlu0 %1571, %v1556
    %v1573 = vpop.permute.xlu0 %1572
    %v1575 = vsel %vm1563, %v1568, 0.0
    %v1576 = vsel %vm1564, %v1573, 0.0
    %v1577 = vadd.f32 %v1541, %v1575
    %v1578 = vadd.f32 %v1542, %v1576
    %v1579 = vmul.u32 %v1470, 8
    %v1580 = vmul.u32 %v1472, 8
    %1581 = vrot.lane.b32.xlu0 %v1579, 127
    %v1582 = vpop.permute.xlu0 %1581
    %1583 = vrot.lane.b32.xlu0 %v1580, 127
    %v1584 = vpop.permute.xlu0 %1583
    %v1585 = vadd.s32 %v1445, %v1582
    %v1586 = vadd.s32 %v1446, %v1584
    %v1587 = vadd.s32 %v1585, %v1485
    %v1588 = vadd.s32 %v1586, %v1486
    %v1589 = vmul.f32 %v1473, %v1512
    %v1590 = vmul.f32 %v1474, %v1514
    %v1591 = vmul.f32 %v1589, 0.25
    %v1592 = vmul.f32 %v1590, 0.25
    %1593 = vset.pattern.permute.xlu0 0
    %1594 = vperm.xlu0 %1593, %v1587
    %v1595 = vpop.permute.xlu0 %1594
    %1596 = vset.pattern.permute.xlu0 0
    %1597 = vperm.xlu0 %1596, %v1588
    %v1598 = vpop.permute.xlu0 %1597
    %vm1599 = vcmp.eq.s32.totalorder %v790, %v1595
    %vm1600 = vcmp.eq.s32.totalorder %v790, %v1598
    %1602 = vset.pattern.permute.xlu0 1
    %1603 = vperm.xlu0 %1602, %v1591
    %v1604 = vpop.permute.xlu0 %1603
    %1607 = vset.pattern.permute.xlu0 1
    %1608 = vperm.xlu0 %1607, %v1592
    %v1609 = vpop.permute.xlu0 %1608
    %v1611 = vsel %vm1599, %v1604, 0.0
    %v1612 = vsel %vm1600, %v1609, 0.0
    %v1613 = vadd.f32 %v1577, %v1611
    %v1614 = vadd.f32 %v1578, %v1612
    %v1615 = vadd.s32 %v1585, %v1490
    %v1616 = vadd.s32 %v1586, %v1492
    %v1617 = vmul.f32 %v1473, %v1548
    %v1618 = vmul.f32 %v1474, %v1550
    %v1619 = vmul.f32 %v1617, 0.25
    %v1620 = vmul.f32 %v1618, 0.25
    %1621 = vset.pattern.permute.xlu0 0
    %1622 = vperm.xlu0 %1621, %v1615
    %v1623 = vpop.permute.xlu0 %1622
    %1624 = vset.pattern.permute.xlu0 0
    %1625 = vperm.xlu0 %1624, %v1616
    %v1626 = vpop.permute.xlu0 %1625
    %vm1627 = vcmp.eq.s32.totalorder %v790, %v1623
    %vm1628 = vcmp.eq.s32.totalorder %v790, %v1626
    %1630 = vset.pattern.permute.xlu0 1
    %1631 = vperm.xlu0 %1630, %v1619
    %v1632 = vpop.permute.xlu0 %1631
    %1635 = vset.pattern.permute.xlu0 1
    %1636 = vperm.xlu0 %1635, %v1620
    %v1637 = vpop.permute.xlu0 %1636
    %v1639 = vsel %vm1627, %v1632, 0.0
    %v1640 = vsel %vm1628, %v1637, 0.0
    %v1641 = vadd.f32 %v1613, %v1639
    %v1642 = vadd.f32 %v1614, %v1640
    %v1643 = vmul.f32 %v1449, 1.5
    %v1644 = vmul.f32 %v1450, 1.5
    %v1645 = vadd.f32 %v1427, %v1643
    %v1646 = vadd.f32 %v1428, %v1644
    %v1647 = vmax.f32 %v1645, 0.0
    %v1648 = vmax.f32 %v1646, 0.0
    %v1649 = vmin.f32 %v1647, 7.0
    %v1650 = vmin.f32 %v1648, 7.0
    %v1651 = vfloor.f32 %v1649
    %v1652 = vfloor.f32 %v1650
    %v1653 = vcvt.f32.s32.to.zero.pseudo %v1651
    %v1654 = vcvt.f32.s32.to.zero.pseudo %v1652
    %v1655 = vadd.s32 %v1653, 1
    %v1656 = vadd.s32 %v1654, 1
    %vm1657 = vcmp.lt.s32.totalorder %v1655, 7
    %v1658 = vsel %vm1657, %v1655, 7
    %vm1659 = vcmp.lt.s32.totalorder %v1656, 7
    %v1660 = vsel %vm1659, %v1656, 7
    %v1661 = vsub.f32 %v1649, %v1651
    %v1662 = vsub.f32 %v1650, %v1652
    %v1663 = vsub.f32 1.0, %v1661
    %v1664 = vsub.f32 1.0, %v1662
    %v1665 = vadd.s32 %v1505, %v1653
    %v1666 = vadd.s32 %v1506, %v1654
    %1669 = vrot.lane.b32.xlu0 %v1663, 1
    %v1670 = vpop.permute.xlu0 %1669
    %1671 = vrot.lane.b32.xlu0 %v1664, 1
    %v1672 = vpop.permute.xlu0 %1671
    %v1675 = vmul.f32 %v1495, %v1670
    %v1676 = vmul.f32 %v1496, %v1672
    %v1677 = vmul.f32 %v1675, 0.25
    %v1678 = vmul.f32 %v1676, 0.25
    %1679 = vset.pattern.permute.xlu0 0
    %1680 = vperm.xlu0 %1679, %v1665
    %v1681 = vpop.permute.xlu0 %1680
    %1682 = vset.pattern.permute.xlu0 0
    %1683 = vperm.xlu0 %1682, %v1666
    %v1684 = vpop.permute.xlu0 %1683
    %vm1685 = vcmp.eq.s32.totalorder %v790, %v1681
    %vm1686 = vcmp.eq.s32.totalorder %v790, %v1684
    %1688 = vset.pattern.permute.xlu0 1
    %1689 = vperm.xlu0 %1688, %v1677
    %v1690 = vpop.permute.xlu0 %1689
    %1693 = vset.pattern.permute.xlu0 1
    %1694 = vperm.xlu0 %1693, %v1678
    %v1695 = vpop.permute.xlu0 %1694
    %v1697 = vsel %vm1685, %v1690, 0.0
    %v1698 = vsel %vm1686, %v1695, 0.0
    %v1699 = vadd.f32 %v1641, %v1697
    %v1700 = vadd.f32 %v1642, %v1698
    %v1701 = vadd.s32 %v1505, %v1658
    %v1702 = vadd.s32 %v1506, %v1660
    %1705 = vrot.lane.b32.xlu0 %v1661, 1
    %v1706 = vpop.permute.xlu0 %1705
    %1707 = vrot.lane.b32.xlu0 %v1662, 1
    %v1708 = vpop.permute.xlu0 %1707
    %v1711 = vmul.f32 %v1495, %v1706
    %v1712 = vmul.f32 %v1496, %v1708
    %v1713 = vmul.f32 %v1711, 0.25
    %v1714 = vmul.f32 %v1712, 0.25
    %1715 = vset.pattern.permute.xlu0 0
    %1716 = vperm.xlu0 %1715, %v1701
    %v1717 = vpop.permute.xlu0 %1716
    %1718 = vset.pattern.permute.xlu0 0
    %1719 = vperm.xlu0 %1718, %v1702
    %v1720 = vpop.permute.xlu0 %1719
    %vm1721 = vcmp.eq.s32.totalorder %v790, %v1717
    %vm1722 = vcmp.eq.s32.totalorder %v790, %v1720
    %1724 = vset.pattern.permute.xlu0 1
    %1725 = vperm.xlu0 %1724, %v1713
    %v1726 = vpop.permute.xlu0 %1725
    %1729 = vset.pattern.permute.xlu0 1
    %1730 = vperm.xlu0 %1729, %v1714
    %v1731 = vpop.permute.xlu0 %1730
    %v1733 = vsel %vm1721, %v1726, 0.0
    %v1734 = vsel %vm1722, %v1731, 0.0
    %v1735 = vadd.f32 %v1699, %v1733
    %v1736 = vadd.f32 %v1700, %v1734
    %v1737 = vadd.s32 %v1585, %v1653
    %v1738 = vadd.s32 %v1586, %v1654
    %v1739 = vmul.f32 %v1473, %v1670
    %v1740 = vmul.f32 %v1474, %v1672
    %v1741 = vmul.f32 %v1739, 0.25
    %v1742 = vmul.f32 %v1740, 0.25
    %1743 = vset.pattern.permute.xlu0 0
    %1744 = vperm.xlu0 %1743, %v1737
    %v1745 = vpop.permute.xlu0 %1744
    %1746 = vset.pattern.permute.xlu0 0
    %1747 = vperm.xlu0 %1746, %v1738
    %v1748 = vpop.permute.xlu0 %1747
    %vm1749 = vcmp.eq.s32.totalorder %v790, %v1745
    %vm1750 = vcmp.eq.s32.totalorder %v790, %v1748
    %1752 = vset.pattern.permute.xlu0 1
    %1753 = vperm.xlu0 %1752, %v1741
    %v1754 = vpop.permute.xlu0 %1753
    %1757 = vset.pattern.permute.xlu0 1
    %1758 = vperm.xlu0 %1757, %v1742
    %v1759 = vpop.permute.xlu0 %1758
    %v1761 = vsel %vm1749, %v1754, 0.0
    %v1762 = vsel %vm1750, %v1759, 0.0
    %v1763 = vadd.f32 %v1735, %v1761
    %v1764 = vadd.f32 %v1736, %v1762
    %v1765 = vadd.s32 %v1585, %v1658
    %v1766 = vadd.s32 %v1586, %v1660
    %v1767 = vmul.f32 %v1473, %v1706
    %v1768 = vmul.f32 %v1474, %v1708
    %v1769 = vmul.f32 %v1767, 0.25
    %v1770 = vmul.f32 %v1768, 0.25
    %1771 = vset.pattern.permute.xlu0 0
    %1772 = vperm.xlu0 %1771, %v1765
    %v1773 = vpop.permute.xlu0 %1772
    %1774 = vset.pattern.permute.xlu0 0
    %1775 = vperm.xlu0 %1774, %v1766
    %v1776 = vpop.permute.xlu0 %1775
    %vm1777 = vcmp.eq.s32.totalorder %v790, %v1773
    %vm1778 = vcmp.eq.s32.totalorder %v790, %v1776
    %1780 = vset.pattern.permute.xlu0 1
    %1781 = vperm.xlu0 %1780, %v1769
    %v1782 = vpop.permute.xlu0 %1781
    %1785 = vset.pattern.permute.xlu0 1
    %1786 = vperm.xlu0 %1785, %v1770
    %v1787 = vpop.permute.xlu0 %1786
    %v1789 = vsel %vm1777, %v1782, 0.0
    %v1790 = vsel %vm1778, %v1787, 0.0
    %v1791 = vadd.f32 %v1763, %v1789
    %v1792 = vadd.f32 %v1764, %v1790
    %v1793 = vmul.f32 %v1453, 1.5
    %v1794 = vmul.f32 %v1454, 1.5
    %v1795 = vadd.f32 %v1439, %v1793
    %v1796 = vadd.f32 %v1440, %v1794
    %v1797 = vmax.f32 %v1795, 0.0
    %v1798 = vmax.f32 %v1796, 0.0
    %v1799 = vmin.f32 %v1797, 7.0
    %v1800 = vmin.f32 %v1798, 7.0
    %v1801 = vfloor.f32 %v1799
    %v1802 = vfloor.f32 %v1800
    %v1803 = vcvt.f32.s32.to.zero.pseudo %v1801
    %v1804 = vcvt.f32.s32.to.zero.pseudo %v1802
    %v1805 = vadd.s32 %v1803, 1
    %v1806 = vadd.s32 %v1804, 1
    %vm1807 = vcmp.lt.s32.totalorder %v1805, 7
    %v1808 = vsel %vm1807, %v1805, 7
    %vm1809 = vcmp.lt.s32.totalorder %v1806, 7
    %v1810 = vsel %vm1809, %v1806, 7
    %v1811 = vsub.f32 %v1799, %v1801
    %v1812 = vsub.f32 %v1800, %v1802
    %v1813 = vsub.f32 1.0, %v1811
    %v1814 = vsub.f32 1.0, %v1812
    %v1815 = vmul.u32 %v1803, 8
    %v1816 = vmul.u32 %v1804, 8
    %1817 = vrot.lane.b32.xlu0 %v1815, 127
    %v1818 = vpop.permute.xlu0 %1817
    %1819 = vrot.lane.b32.xlu0 %v1816, 127
    %v1820 = vpop.permute.xlu0 %1819
    %v1821 = vadd.s32 %v1445, %v1818
    %v1822 = vadd.s32 %v1446, %v1820
    %v1823 = vadd.s32 %v1821, %v1485
    %v1824 = vadd.s32 %v1822, %v1486
    %v1825 = vmul.f32 %v1813, %v1512
    %v1826 = vmul.f32 %v1814, %v1514
    %v1827 = vmul.f32 %v1825, 0.25
    %v1828 = vmul.f32 %v1826, 0.25
    %1829 = vset.pattern.permute.xlu0 0
    %1830 = vperm.xlu0 %1829, %v1823
    %v1831 = vpop.permute.xlu0 %1830
    %1832 = vset.pattern.permute.xlu0 0
    %1833 = vperm.xlu0 %1832, %v1824
    %v1834 = vpop.permute.xlu0 %1833
    %vm1835 = vcmp.eq.s32.totalorder %v790, %v1831
    %vm1836 = vcmp.eq.s32.totalorder %v790, %v1834
    %1838 = vset.pattern.permute.xlu0 1
    %1839 = vperm.xlu0 %1838, %v1827
    %v1840 = vpop.permute.xlu0 %1839
    %1843 = vset.pattern.permute.xlu0 1
    %1844 = vperm.xlu0 %1843, %v1828
    %v1845 = vpop.permute.xlu0 %1844
    %v1847 = vsel %vm1835, %v1840, 0.0
    %v1848 = vsel %vm1836, %v1845, 0.0
    %v1849 = vadd.f32 %v1791, %v1847
    %v1850 = vadd.f32 %v1792, %v1848
    %v1851 = vadd.s32 %v1821, %v1490
    %v1852 = vadd.s32 %v1822, %v1492
    %v1853 = vmul.f32 %v1813, %v1548
    %v1854 = vmul.f32 %v1814, %v1550
    %v1855 = vmul.f32 %v1853, 0.25
    %v1856 = vmul.f32 %v1854, 0.25
    %1857 = vset.pattern.permute.xlu0 0
    %1858 = vperm.xlu0 %1857, %v1851
    %v1859 = vpop.permute.xlu0 %1858
    %1860 = vset.pattern.permute.xlu0 0
    %1861 = vperm.xlu0 %1860, %v1852
    %v1862 = vpop.permute.xlu0 %1861
    %vm1863 = vcmp.eq.s32.totalorder %v790, %v1859
    %vm1864 = vcmp.eq.s32.totalorder %v790, %v1862
    %1866 = vset.pattern.permute.xlu0 1
    %1867 = vperm.xlu0 %1866, %v1855
    %v1868 = vpop.permute.xlu0 %1867
    %1871 = vset.pattern.permute.xlu0 1
    %1872 = vperm.xlu0 %1871, %v1856
    %v1873 = vpop.permute.xlu0 %1872
    %v1875 = vsel %vm1863, %v1868, 0.0
    %v1876 = vsel %vm1864, %v1873, 0.0
    %v1877 = vadd.f32 %v1849, %v1875
    %v1878 = vadd.f32 %v1850, %v1876
    %v1879 = vmul.u32 %v1808, 8
    %v1880 = vmul.u32 %v1810, 8
    %1881 = vrot.lane.b32.xlu0 %v1879, 127
    %v1882 = vpop.permute.xlu0 %1881
    %1883 = vrot.lane.b32.xlu0 %v1880, 127
    %v1884 = vpop.permute.xlu0 %1883
    %v1885 = vadd.s32 %v1445, %v1882
    %v1886 = vadd.s32 %v1446, %v1884
    %v1887 = vadd.s32 %v1885, %v1485
    %v1888 = vadd.s32 %v1886, %v1486
    %v1889 = vmul.f32 %v1811, %v1512
    %v1890 = vmul.f32 %v1812, %v1514
    %v1891 = vmul.f32 %v1889, 0.25
    %v1892 = vmul.f32 %v1890, 0.25
    %1893 = vset.pattern.permute.xlu0 0
    %1894 = vperm.xlu0 %1893, %v1887
    %v1895 = vpop.permute.xlu0 %1894
    %1896 = vset.pattern.permute.xlu0 0
    %1897 = vperm.xlu0 %1896, %v1888
    %v1898 = vpop.permute.xlu0 %1897
    %vm1899 = vcmp.eq.s32.totalorder %v790, %v1895
    %vm1900 = vcmp.eq.s32.totalorder %v790, %v1898
    %1902 = vset.pattern.permute.xlu0 1
    %1903 = vperm.xlu0 %1902, %v1891
    %v1904 = vpop.permute.xlu0 %1903
    %1907 = vset.pattern.permute.xlu0 1
    %1908 = vperm.xlu0 %1907, %v1892
    %v1909 = vpop.permute.xlu0 %1908
    %v1911 = vsel %vm1899, %v1904, 0.0
    %v1912 = vsel %vm1900, %v1909, 0.0
    %v1913 = vadd.f32 %v1877, %v1911
    %v1914 = vadd.f32 %v1878, %v1912
    %v1915 = vadd.s32 %v1885, %v1490
    %v1916 = vadd.s32 %v1886, %v1492
    %v1917 = vmul.f32 %v1811, %v1548
    %v1918 = vmul.f32 %v1812, %v1550
    %v1919 = vmul.f32 %v1917, 0.25
    %v1920 = vmul.f32 %v1918, 0.25
    %1921 = vset.pattern.permute.xlu0 0
    %1922 = vperm.xlu0 %1921, %v1915
    %v1923 = vpop.permute.xlu0 %1922
    %1924 = vset.pattern.permute.xlu0 0
    %1925 = vperm.xlu0 %1924, %v1916
    %v1926 = vpop.permute.xlu0 %1925
    %vm1927 = vcmp.eq.s32.totalorder %v790, %v1923
    %vm1928 = vcmp.eq.s32.totalorder %v790, %v1926
    %1930 = vset.pattern.permute.xlu0 1
    %1931 = vperm.xlu0 %1930, %v1919
    %v1932 = vpop.permute.xlu0 %1931
    %1935 = vset.pattern.permute.xlu0 1
    %1936 = vperm.xlu0 %1935, %v1920
    %v1937 = vpop.permute.xlu0 %1936
    %v1939 = vsel %vm1927, %v1932, 0.0
    %v1940 = vsel %vm1928, %v1937, 0.0
    %v1941 = vadd.f32 %v1913, %v1939
    %v1942 = vadd.f32 %v1914, %v1940
    %v1943 = vadd.s32 %v1821, %v1653
    %v1944 = vadd.s32 %v1822, %v1654
    %v1945 = vmul.f32 %v1813, %v1670
    %v1946 = vmul.f32 %v1814, %v1672
    %v1947 = vmul.f32 %v1945, 0.25
    %v1948 = vmul.f32 %v1946, 0.25
    %1949 = vset.pattern.permute.xlu0 0
    %1950 = vperm.xlu0 %1949, %v1943
    %v1951 = vpop.permute.xlu0 %1950
    %1952 = vset.pattern.permute.xlu0 0
    %1953 = vperm.xlu0 %1952, %v1944
    %v1954 = vpop.permute.xlu0 %1953
    %vm1955 = vcmp.eq.s32.totalorder %v790, %v1951
    %vm1956 = vcmp.eq.s32.totalorder %v790, %v1954
    %1958 = vset.pattern.permute.xlu0 1
    %1959 = vperm.xlu0 %1958, %v1947
    %v1960 = vpop.permute.xlu0 %1959
    %1963 = vset.pattern.permute.xlu0 1
    %1964 = vperm.xlu0 %1963, %v1948
    %v1965 = vpop.permute.xlu0 %1964
    %v1967 = vsel %vm1955, %v1960, 0.0
    %v1968 = vsel %vm1956, %v1965, 0.0
    %v1969 = vadd.f32 %v1941, %v1967
    %v1970 = vadd.f32 %v1942, %v1968
    %v1971 = vadd.s32 %v1821, %v1658
    %v1972 = vadd.s32 %v1822, %v1660
    %v1973 = vmul.f32 %v1813, %v1706
    %v1974 = vmul.f32 %v1814, %v1708
    %v1975 = vmul.f32 %v1973, 0.25
    %v1976 = vmul.f32 %v1974, 0.25
    %1977 = vset.pattern.permute.xlu0 0
    %1978 = vperm.xlu0 %1977, %v1971
    %v1979 = vpop.permute.xlu0 %1978
    %1980 = vset.pattern.permute.xlu0 0
    %1981 = vperm.xlu0 %1980, %v1972
    %v1982 = vpop.permute.xlu0 %1981
    %vm1983 = vcmp.eq.s32.totalorder %v790, %v1979
    %vm1984 = vcmp.eq.s32.totalorder %v790, %v1982
    %1986 = vset.pattern.permute.xlu0 1
    %1987 = vperm.xlu0 %1986, %v1975
    %v1988 = vpop.permute.xlu0 %1987
    %1991 = vset.pattern.permute.xlu0 1
    %1992 = vperm.xlu0 %1991, %v1976
    %v1993 = vpop.permute.xlu0 %1992
    %v1995 = vsel %vm1983, %v1988, 0.0
    %v1996 = vsel %vm1984, %v1993, 0.0
    %v1997 = vadd.f32 %v1969, %v1995
    %v1998 = vadd.f32 %v1970, %v1996
    %v1999 = vadd.s32 %v1885, %v1653
    %v2000 = vadd.s32 %v1886, %v1654
    %v2001 = vmul.f32 %v1811, %v1670
    %v2002 = vmul.f32 %v1812, %v1672
    %v2003 = vmul.f32 %v2001, 0.25
    %v2004 = vmul.f32 %v2002, 0.25
    %2005 = vset.pattern.permute.xlu0 0
    %2006 = vperm.xlu0 %2005, %v1999
    %v2007 = vpop.permute.xlu0 %2006
    %2008 = vset.pattern.permute.xlu0 0
    %2009 = vperm.xlu0 %2008, %v2000
    %v2010 = vpop.permute.xlu0 %2009
    %vm2011 = vcmp.eq.s32.totalorder %v790, %v2007
    %vm2012 = vcmp.eq.s32.totalorder %v790, %v2010
    %2014 = vset.pattern.permute.xlu0 1
    %2015 = vperm.xlu0 %2014, %v2003
    %v2016 = vpop.permute.xlu0 %2015
    %2019 = vset.pattern.permute.xlu0 1
    %2020 = vperm.xlu0 %2019, %v2004
    %v2021 = vpop.permute.xlu0 %2020
    %v2023 = vsel %vm2011, %v2016, 0.0
    %v2024 = vsel %vm2012, %v2021, 0.0
    %v2025 = vadd.f32 %v1997, %v2023
    %v2026 = vadd.f32 %v1998, %v2024
    %v2027 = vadd.s32 %v1885, %v1658
    %v2028 = vadd.s32 %v1886, %v1660
    %v2029 = vmul.f32 %v1811, %v1706
    %v2030 = vmul.f32 %v1812, %v1708
    %v2031 = vmul.f32 %v2029, 0.25
    %v2032 = vmul.f32 %v2030, 0.25
    %2033 = vset.pattern.permute.xlu0 0
    %2034 = vperm.xlu0 %2033, %v2027
    %v2035 = vpop.permute.xlu0 %2034
    %2036 = vset.pattern.permute.xlu0 0
    %2037 = vperm.xlu0 %2036, %v2028
    %v2038 = vpop.permute.xlu0 %2037
    %vm2039 = vcmp.eq.s32.totalorder %v790, %v2035
    %vm2040 = vcmp.eq.s32.totalorder %v790, %v2038
    %2042 = vset.pattern.permute.xlu0 1
    %2043 = vperm.xlu0 %2042, %v2031
    %v2044 = vpop.permute.xlu0 %2043
    %2047 = vset.pattern.permute.xlu0 1
    %2048 = vperm.xlu0 %2047, %v2032
    %v2049 = vpop.permute.xlu0 %2048
    %v2051 = vsel %vm2039, %v2044, 0.0
    %v2052 = vsel %vm2040, %v2049, 0.0
    %v2053 = vadd.f32 %v2025, %v2051
    %v2054 = vadd.f32 %v2026, %v2052
    %v2055 = vpack.c.bf16 %v2054, %v2053
    %v2056 = vld [vmem:[%s1] sm:$0xf]
    %v2057 = vld [vmem:[%s1 + $0x4] sm:$0xf]
    %v2058 = vld [vmem:[%s1 + $0x8] sm:$0xf]
    %v2059 = vld [vmem:[%s1 + $0xc] sm:$0xf]
    %v2060 = vld [vmem:[%s1 + $0x10] sm:$0xf]
    %v2061 = vld [vmem:[%s1 + $0x14] sm:$0xf]
    %v2062 = vld [vmem:[%s1 + $0x18] sm:$0xf]
    %v2063 = vld [vmem:[%s1 + $0x1c] sm:$0xf]
    %v2064 = vld [vmem:[%s1 + $0x20] sm:$0xf]
    %v2065 = vld [vmem:[%s1 + $0x24] sm:$0xf]
    %v2066 = vld [vmem:[%s1 + $0x28] sm:$0xf]
    %v2067 = vld [vmem:[%s1 + $0x2c] sm:$0xf]
    %v2068 = vld [vmem:[%s1 + $0x30] sm:$0xf]
    %v2069 = vld [vmem:[%s1 + $0x34] sm:$0xf]
    %v2070 = vld [vmem:[%s1 + $0x38] sm:$0xf]
    %v2071 = vld [vmem:[%s1 + $0x3c] sm:$0xf]
    %v2088 = vunpack.c.l.b16 %v2056
    %v2089 = vunpack.c.l.b16 %v2057
    %v2090 = vunpack.c.l.b16 %v2058
    %v2091 = vunpack.c.l.b16 %v2059
    %v2092 = vunpack.c.l.b16 %v2060
    %v2093 = vunpack.c.l.b16 %v2061
    %v2094 = vunpack.c.l.b16 %v2062
    %v2095 = vunpack.c.l.b16 %v2063
    %v2096 = vunpack.c.l.b16 %v2064
    %v2097 = vunpack.c.l.b16 %v2065
    %v2098 = vunpack.c.l.b16 %v2066
    %v2099 = vunpack.c.l.b16 %v2067
    %v2100 = vunpack.c.l.b16 %v2068
    %v2101 = vunpack.c.l.b16 %v2069
    %v2102 = vunpack.c.l.b16 %v2070
    %v2103 = vunpack.c.l.b16 %v2071
    %v2104 = vpack.c.b16 %v2089, %v2088
    %v2105 = vpack.c.b16 %v2091, %v2090
    %v2106 = vpack.c.b16 %v2093, %v2092
    %v2107 = vpack.c.b16 %v2095, %v2094
    %v2108 = vpack.c.b16 %v2097, %v2096
    %v2109 = vpack.c.b16 %v2099, %v2098
    %v2110 = vpack.c.b16 %v2101, %v2100
    %v2111 = vpack.c.b16 %v2103, %v2102
    %2120 = vmatprep.subr.bf16.mxu0 0
    %2121 = vmatpush1.bf16.msra.mxu0 %v2104
    %2122 = vmatprep.subr.bf16.mxu0 0
    %2123 = vmatpush1.bf16.msra.mxu0 %v2105
    %2124 = vmatprep.subr.bf16.mxu0 0
    %2125 = vmatpush1.bf16.msra.mxu0 %v2106
    %2126 = vmatprep.subr.bf16.mxu0 0
    %2127 = vmatpush1.bf16.msra.mxu0 %v2107
    %2128 = vmatprep.subr.bf16.mxu0 0
    %2129 = vmatpush1.bf16.msra.mxu0 %v2108
    %2130 = vmatprep.subr.bf16.mxu0 0
    %2131 = vmatpush1.bf16.msra.mxu0 %v2109
    %2132 = vmatprep.subr.bf16.mxu0 0
    %2133 = vmatpush1.bf16.msra.mxu0 %v2110
    %2134 = vmatprep.subr.bf16.mxu0 0
    %2135 = vmatpush1.bf16.msra.mxu0 %v2111
    %2136 = vmatprep.subr.bf16.mxu0 0
    %2137 = vmatpush1.bf16.msra.mxu0 0
    %2138 = vmatprep.subr.bf16.mxu0 0
    %2139 = vmatpush1.bf16.msra.mxu0 0
    %2140 = vmatprep.subr.bf16.mxu0 0
    %2141 = vmatpush1.bf16.msra.mxu0 0
    %2142 = vmatprep.subr.bf16.mxu0 0
    %2143 = vmatpush1.bf16.msra.mxu0 0
    %2144 = vmatprep.subr.bf16.mxu0 0
    %2145 = vmatpush1.bf16.msra.mxu0 0
    %2146 = vmatprep.subr.bf16.mxu0 0
    %2147 = vmatpush1.bf16.msra.mxu0 0
    %2148 = vmatprep.subr.bf16.mxu0 0
    %2149 = vmatpush1.bf16.msra.mxu0 0
    %2150 = vmatprep.subr.bf16.mxu0 0
    %2151 = vmatpush1.bf16.msra.mxu0 0
    %2152 = vmatprep.mubr.bf16.mxu0 0
    %2153 = vmatmul.mubr.bf16.gmra.mrb[0].mxu0 %v2055
    %v2154 = vpop.f32.mrb[0].mxu0
    %v2155 = vadd.f32 0.0, %v2154
    %v2156 = vpop.f32.mrb[0].mxu0
    %v2157 = vpop.f32.mrb[0].mxu0
    %v2158 = vadd.f32 0.0, %v2157
    %v2159 = vpop.f32.mrb[0].mxu0
    %2160 = vdwg.mxu0
    %v2161 = vpack.c.bf16 %v2158, %v2155
    %v2162 = vld [vmem:[%s12] sm:$0xf]
    %v2163 = vld [vmem:[%s12 + $0x4] sm:$0xf]
    %v2164 = vld [vmem:[%s12 + $0x8] sm:$0xf]
    %v2165 = vld [vmem:[%s12 + $0xc] sm:$0xf]
    %v2166 = vld [vmem:[%s13] sm:$0x1]
    %v2168 = vlaneseq
    %v2169 = vshrl.u32 %v2168, 7
    %v2170 = vsub.s32 0, %v2169
    %v2171 = vrot.slane %v2166, %v2170
    %v2177 = vunpack.c.l.b16 %v2162
    %v2178 = vunpack.c.l.b16 %v2163
    %v2179 = vunpack.c.l.b16 %v2164
    %v2180 = vunpack.c.l.b16 %v2165
    %v2181 = vpack.c.b16 %v2178, %v2177
    %v2182 = vpack.c.b16 %v2180, %v2179
    %v2186 = vsel %vm358, %v2161, 0
    %2188 = vmatprep.subr.bf16.mxu0 0
    %2189 = vmatpush1.bf16.msra.mxu0 %v2181
    %2190 = vmatprep.subr.bf16.mxu0 0
    %2191 = vmatpush1.bf16.msra.mxu0 %v2182
    %2192 = vmatprep.subr.bf16.mxu0 0
    %2193 = vmatpush1.bf16.msra.mxu0 0
    %2194 = vmatprep.subr.bf16.mxu0 0
    %2195 = vmatpush1.bf16.msra.mxu0 0
    %2196 = vmatprep.subr.bf16.mxu0 0
    %2197 = vmatpush1.bf16.msra.mxu0 0
    %2198 = vmatprep.subr.bf16.mxu0 0
    %2199 = vmatpush1.bf16.msra.mxu0 0
    %2200 = vmatprep.subr.bf16.mxu0 0
    %2201 = vmatpush1.bf16.msra.mxu0 0
    %2202 = vmatprep.subr.bf16.mxu0 0
    %2203 = vmatpush1.bf16.msra.mxu0 0
    %2204 = vmatprep.subr.bf16.mxu0 0
    %2205 = vmatpush1.bf16.msra.mxu0 0
    %2206 = vmatprep.subr.bf16.mxu0 0
    %2207 = vmatpush1.bf16.msra.mxu0 0
    %2208 = vmatprep.subr.bf16.mxu0 0
    %2209 = vmatpush1.bf16.msra.mxu0 0
    %2210 = vmatprep.subr.bf16.mxu0 0
    %2211 = vmatpush1.bf16.msra.mxu0 0
    %2212 = vmatprep.subr.bf16.mxu0 0
    %2213 = vmatpush1.bf16.msra.mxu0 0
    %2214 = vmatprep.subr.bf16.mxu0 0
    %2215 = vmatpush1.bf16.msra.mxu0 0
    %2216 = vmatprep.subr.bf16.mxu0 0
    %2217 = vmatpush1.bf16.msra.mxu0 0
    %2218 = vmatprep.subr.bf16.mxu0 0
    %2219 = vmatpush1.bf16.msra.mxu0 0
    %2220 = vmatprep.mubr.bf16.mxu0 0
    %2221 = vmatmul.mubr.bf16.gmra.mrb[0].mxu0 %v2186
    %v2222 = vpop.f32.mrb[0].mxu0
    %v2223 = vadd.f32 %v2171, %v2222
    %v2224 = vpop.f32.mrb[0].mxu0
    %v2225 = vpop.f32.mrb[0].mxu0
    %v2226 = vadd.f32 %v2171, %v2225
    %v2227 = vpop.f32.mrb[0].mxu0
    %2228 = vdwg.mxu0
    %v2229 = vmax.f32 %v2223, 0.0
    %v2230 = vmax.f32 %v2226, 0.0
    %v2231 = vpack.c.bf16 %v2230, %v2229
    %v2232 = vld [vmem:[%s14] sm:$0xf]
    %v2233 = vld [vmem:[%s14 + $0x4] sm:$0xf]
    %v2234 = vld [vmem:[%s14 + $0x8] sm:$0xf]
    %v2235 = vld [vmem:[%s14 + $0xc] sm:$0xf]
    %v2236 = vld [vmem:[%s14 + $0x10] sm:$0xf]
    %v2237 = vld [vmem:[%s14 + $0x14] sm:$0xf]
    %v2238 = vld [vmem:[%s14 + $0x18] sm:$0xf]
    %v2239 = vld [vmem:[%s14 + $0x1c] sm:$0xf]
    %v2240 = vld [vmem:[%s14 + $0x20] sm:$0xf]
    %v2241 = vld [vmem:[%s14 + $0x24] sm:$0xf]
    %v2242 = vld [vmem:[%s14 + $0x28] sm:$0xf]
    %v2243 = vld [vmem:[%s14 + $0x2c] sm:$0xf]
    %v2244 = vld [vmem:[%s14 + $0x30] sm:$0xf]
    %v2245 = vld [vmem:[%s14 + $0x34] sm:$0xf]
    %v2246 = vld [vmem:[%s14 + $0x38] sm:$0xf]
    %v2247 = vld [vmem:[%s14 + $0x3c] sm:$0xf]
    %v2248 = vld [vmem:[%s15] sm:$0x1]
    %v2250 = vlaneseq
    %v2251 = vshrl.u32 %v2250, 7
    %v2252 = vsub.s32 0, %v2251
    %v2253 = vrot.slane %v2248, %v2252
    %v2271 = vunpack.c.l.b16 %v2232
    %v2272 = vunpack.c.l.b16 %v2233
    %v2273 = vunpack.c.l.b16 %v2234
    %v2274 = vunpack.c.l.b16 %v2235
    %v2275 = vunpack.c.l.b16 %v2236
    %v2276 = vunpack.c.l.b16 %v2237
    %v2277 = vunpack.c.l.b16 %v2238
    %v2278 = vunpack.c.l.b16 %v2239
    %v2279 = vunpack.c.l.b16 %v2240
    %v2280 = vunpack.c.l.b16 %v2241
    %v2281 = vunpack.c.l.b16 %v2242
    %v2282 = vunpack.c.l.b16 %v2243
    %v2283 = vunpack.c.l.b16 %v2244
    %v2284 = vunpack.c.l.b16 %v2245
    %v2285 = vunpack.c.l.b16 %v2246
    %v2286 = vunpack.c.l.b16 %v2247
    %v2287 = vpack.c.b16 %v2272, %v2271
    %v2288 = vpack.c.b16 %v2274, %v2273
    %v2289 = vpack.c.b16 %v2276, %v2275
    %v2290 = vpack.c.b16 %v2278, %v2277
    %v2291 = vpack.c.b16 %v2280, %v2279
    %v2292 = vpack.c.b16 %v2282, %v2281
    %v2293 = vpack.c.b16 %v2284, %v2283
    %v2294 = vpack.c.b16 %v2286, %v2285
    %2303 = vmatprep.subr.bf16.mxu0 0
    %2304 = vmatpush1.bf16.msra.mxu0 %v2287
    %2305 = vmatprep.subr.bf16.mxu0 0
    %2306 = vmatpush1.bf16.msra.mxu0 %v2288
    %2307 = vmatprep.subr.bf16.mxu0 0
    %2308 = vmatpush1.bf16.msra.mxu0 %v2289
    %2309 = vmatprep.subr.bf16.mxu0 0
    %2310 = vmatpush1.bf16.msra.mxu0 %v2290
    %2311 = vmatprep.subr.bf16.mxu0 0
    %2312 = vmatpush1.bf16.msra.mxu0 %v2291
    %2313 = vmatprep.subr.bf16.mxu0 0
    %2314 = vmatpush1.bf16.msra.mxu0 %v2292
    %2315 = vmatprep.subr.bf16.mxu0 0
    %2316 = vmatpush1.bf16.msra.mxu0 %v2293
    %2317 = vmatprep.subr.bf16.mxu0 0
    %2318 = vmatpush1.bf16.msra.mxu0 %v2294
    %2319 = vmatprep.subr.bf16.mxu0 0
    %2320 = vmatpush1.bf16.msra.mxu0 0
    %2321 = vmatprep.subr.bf16.mxu0 0
    %2322 = vmatpush1.bf16.msra.mxu0 0
    %2323 = vmatprep.subr.bf16.mxu0 0
    %2324 = vmatpush1.bf16.msra.mxu0 0
    %2325 = vmatprep.subr.bf16.mxu0 0
    %2326 = vmatpush1.bf16.msra.mxu0 0
    %2327 = vmatprep.subr.bf16.mxu0 0
    %2328 = vmatpush1.bf16.msra.mxu0 0
    %2329 = vmatprep.subr.bf16.mxu0 0
    %2330 = vmatpush1.bf16.msra.mxu0 0
    %2331 = vmatprep.subr.bf16.mxu0 0
    %2332 = vmatpush1.bf16.msra.mxu0 0
    %2333 = vmatprep.subr.bf16.mxu0 0
    %2334 = vmatpush1.bf16.msra.mxu0 0
    %2335 = vmatprep.mubr.bf16.mxu0 0
    %2336 = vmatmul.mubr.bf16.gmra.mrb[0].mxu0 %v2231
    %v2337 = vpop.f32.mrb[0].mxu0
    %v2338 = vadd.f32 %v2253, %v2337
    %v2339 = vpop.f32.mrb[0].mxu0
    %v2340 = vpop.f32.mrb[0].mxu0
    %v2341 = vadd.f32 %v2253, %v2340
    %v2342 = vpop.f32.mrb[0].mxu0
    %2343 = vdwg.mxu0
    %vm2344 = vcmp.lt.s32.totalorder %v790, 8
    %v2345 = vsel %vm2344, %v2338, -1e+30
    %v2346 = vsel %vm2344, %v2341, -1e+30
    %2347 = vmax.xlane.f32.xlu0 %v2345
    %v2348 = vpop.xlane.xlu0 %2347
    %2349 = vmax.xlane.f32.xlu0 %v2346
    %v2350 = vpop.xlane.xlu0 %2349
    %v2351 = vsub.f32 %v2345, %v2348
    %v2352 = vsub.f32 %v2346, %v2350
    %v2353 = vmul.f32 %v2351, 1.442695
    %v2354 = vpow.pop %v2353
    %v2355 = vmul.f32 %v2352, 1.442695
    %v2356 = vpow.pop %v2355
    %2357 = vadd.xlane.f32.xlu0 %v2354
    %v2358 = vpop.xlane.xlu0 %2357
    %2359 = vadd.xlane.f32.xlu0 %v2356
    %v2360 = vpop.xlane.xlu0 %2359
    %v2361 = vlog2.pop %v2358
    %v2362 = vmul.f32 %v2361, 0.6931472
    %v2363 = vlog2.pop %v2360
    %v2364 = vmul.f32 %v2363, 0.6931472
    %v2365 = vadd.f32 %v2362, %v2348
    %v2366 = vadd.f32 %v2364, %v2350
    %v2367 = vld [vmem:[%s9] sm:$0xff]
    %v2368 = vld [vmem:[%s9 + $0x8] sm:$0xff]
    %2369 = vset.pattern.permute.xlu0 0
    %2370 = vperm.xlu0 %2369, %v2367
    %v2371 = vpop.permute.xlu0 %2370
    %2372 = vset.pattern.permute.xlu0 0
    %2373 = vperm.xlu0 %2372, %v2368
    %v2374 = vpop.permute.xlu0 %2373
    %vm2375 = vcmp.eq.s32.totalorder %v790, %v2371
    %vm2376 = vcmp.eq.s32.totalorder %v790, %v2374
    %v2377 = vsel %vm2375, %v2345, 0.0
    %v2378 = vsel %vm2376, %v2346, 0.0
    %2379 = vadd.xlane.f32.xlu0 %v2377
    %v2380 = vpop.xlane.xlu0 %2379
    %2381 = vadd.xlane.f32.xlu0 %v2378
    %v2382 = vpop.xlane.xlu0 %2381
    %v2383 = vsub.f32 %v2365, %v2380
    %v2384 = vsub.f32 %v2366, %v2382
    %v2385 = vsel %vm1117, %v2383, 0.0
    %v2386 = vsel %vm1117, %v2384, 0.0
    %v2387 = vadd.f32 %v2385, %v2386
    %2388 = vadd.xlane.f32.xlu0 %v2387
    %v2389 = vpop.xlane.xlu0 %2388
    %v2390 = vrot.slane %v2389, 4
    %v2391 = vadd.f32 %v2389, %v2390
    %v2392 = vrot.slane %v2391, 2
    %v2393 = vadd.f32 %v2391, %v2392
    %v2394 = vrot.slane %v2393, 1
    %v2395 = vadd.f32 %v2393, %v2394
    %s2396 = vtos %v2395
    %v2397 = vrcp.pop 16.0
    %s2398 = vtos %v2397
    %s2399 = smul.f32 %s2396, %s2398
    %v2400 = vrcp.pop 2.0
    %s2401 = vtos %v2400
    %s2402 = smul.f32 %s2399, %s2401
    %s2403 = smul.f32 %s1358, 5.0
    %s2404 = sadd.f32 %s1221, %s2403
    %s2405 = sadd.f32 %s2404, %s2402
    %s2406 = scalar_lea.smem [#allocation2], 0
    %2407 = sst [smem:[%s2406]] %s2405
    // Predicated region
    $region66: #{two_stage_detector_forward.1} parent=1 // pred_check
      _
    $region67: #{two_stage_detector_forward.1} parent=1 // pred_check_branch
      %2409 = sbr.rel (0) target = $region69
    $region68: #{two_stage_detector_forward.1} parent=1 // pred_region
      %s2411 = ssub.s32 16, 16
      %2412 = vsyncadd [#allocation3], %s2411
      %2415 = dma.smem_to_hbm [#allocation2], 16, %s16, [#allocation3]
    $region69: #{two_stage_detector_forward.1} parent=1 // pred_fallthru
      _
    // Predicated region
    $region70: #{two_stage_detector_forward.1} parent=1 // pred_check
      _
    $region71: #{two_stage_detector_forward.1} parent=1 // pred_check_branch
      %2417 = sbr.rel (0) target = $region73
    $region72: #{two_stage_detector_forward.1} parent=1 // pred_region
      %2418 = dma.done [#allocation3], 16
    $region73: #{two_stage_detector_forward.1} parent=1 // pred_fallthru
      _
    %2419 = sfence
    %2420 = vsyncpa [#allocation3], 1

</llo_original>
